<compile_context>
chip_gen: v5e
topology: v5e:2x2
jax: 0.10.0
libtpu: 0.0.40
codegen_flags: <defaults>
</compile_context>

<pallas_src>
import jax
import jax.numpy as jnp
from jax import lax
from jax.experimental import pallas as pl
from jax.experimental.pallas import tpu as pltpu
import numpy as np

EPS = 1e-5   # nn.BatchNorm2d default
LANE = 128


def _round_up(n, m):
    return ((n + m - 1) // m) * m


def downconv_kernel(x_ref, w1_ref, g1_ref, b1_ref, w2_ref, g2_ref, b2_ref,
                    out_ref, pad1_ref, pad2_ref):
    # x_ref: (N, Hin, Win, Cp) bf16 NHWC, channels pre-padded to a multiple of 128.
    # w1_ref/w2_ref: im2col weights (9*Cp, Cmid_p) / (9*Cmid_p, Cout_p) bf16 (pad rows/cols = 0).
    # g*/b*: (1, C_p) f32.  out_ref: (M, Cout_p) f32, lane-dense.
    N, Hin, Win, Cp = x_ref.shape
    H, W = Hin // 2, Win // 2
    Cmid = w1_ref.shape[-1]
    Cout = w2_ref.shape[-1]
    M = N * H * W
    inv_m = jnp.float32(1.0 / M)

    # ---- 2x2 max pool (bf16; max commutes with monotone rounding so this matches
    #      pooling in f32 then casting). Row pairing = major-dim reshape; column pairing =
    #      fold 2 columns into lanes (Cp is a multiple of 128 -> dense vregs). ------------
    xv = x_ref[...]                                           # (N, Hin, Win, Cp)
    xr = xv.reshape(N, H, 2, Win, Cp)
    rows = jnp.maximum(xr[:, :, 0, :, :], xr[:, :, 1, :, :])  # (N, H, Win, Cp)
    rc = rows.reshape(N, H, W, 2 * Cp)
    pooled = jnp.maximum(rc[..., :Cp], rc[..., Cp:])          # (N, H, W, Cp) bf16

    # ---- conv1: 3x3, pad=1, no bias: 9 accumulated per-tap matmuls (bf16 -> f32 acc) ----
    # one dense zero of the bf16 padded scratch, then a single interior store
    pad1_ref[...] = jnp.zeros(pad1_ref.shape, pad1_ref.dtype)
    pad1_ref[:, 1:H + 1, 1:W + 1, :] = pooled

    def conv3x3(pad_ref, w_ref, cin, cout):
        acc = jnp.zeros((M, cout), jnp.float32)
        k = 0
        for di in range(3):
            for dj in range(3):
                tap = pad_ref[:, di:di + H, dj:dj + W, :].reshape(M, cin)   # bf16
                acc = acc + jnp.dot(tap, w_ref[k * cin:(k + 1) * cin, :],
                                    preferred_element_type=jnp.float32)
                k += 1
        return acc

    a1 = conv3x3(pad1_ref, w1_ref, Cp, Cmid)                  # (M, Cmid) f32

    # ---- BatchNorm2d #1 (training-mode batch stats, two-pass centered) + ReLU ------------
    mean1 = jnp.sum(a1, axis=0, keepdims=True) * inv_m
    d1 = a1 - mean1
    var1 = jnp.sum(d1 * d1, axis=0, keepdims=True) * inv_m
    scale1 = lax.rsqrt(var1 + EPS) * g1_ref[...]
    y1 = jnp.maximum(d1 * scale1 + b1_ref[...], 0.0)          # (M, Cmid) f32

    # ---- conv2: 3x3, pad=1 (bias dropped: cancelled exactly by training-mode BN) ---------
    pad2_ref[...] = jnp.zeros(pad2_ref.shape, pad2_ref.dtype)
    pad2_ref[:, 1:H + 1, 1:W + 1, :] = y1.astype(jnp.bfloat16).reshape(N, H, W, Cmid)

    a2 = conv3x3(pad2_ref, w2_ref, Cmid, Cout)                # (M, Cout) f32

    # ---- BatchNorm2d #2 + ReLU, lane-dense unmasked store ---------------------------------
    mean2 = jnp.sum(a2, axis=0, keepdims=True) * inv_m
    d2 = a2 - mean2
    var2 = jnp.sum(d2 * d2, axis=0, keepdims=True) * inv_m
    scale2 = lax.rsqrt(var2 + EPS) * g2_ref[...]
    out_ref[...] = jnp.maximum(d2 * scale2 + b2_ref[...], 0.0)


def init_raw_params(key, in_channels, out_channels):
    # PyTorch-layout parameters (f32, unpadded). DoubleConv default: mid_channels = out_channels.
    mid = out_channels
    k1, k2, k3, k4, k5, k6, k7 = jax.random.split(key, 7)
    w1_oihw = 0.1 * jax.random.normal(k1, (mid, in_channels, 3, 3), jnp.float32)
    w2_oihw = 0.1 * jax.random.normal(k2, (out_channels, mid, 3, 3), jnp.float32)
    cb2 = 0.1 * jax.random.normal(k3, (out_channels,), jnp.float32)     # conv2 bias
    g1 = 1.0 + 0.1 * jax.random.normal(k4, (mid,), jnp.float32)
    b1 = 0.1 * jax.random.normal(k5, (mid,), jnp.float32)
    g2 = 1.0 + 0.1 * jax.random.normal(k6, (out_channels,), jnp.float32)
    b2 = 0.1 * jax.random.normal(k7, (out_channels,), jnp.float32)
    return (w1_oihw, w2_oihw, cb2, g1, b1, g2, b2)


def pack_params(raw, lane=LANE):
    # OIHW (torch) -> HWIO -> channel-padded im2col layout (9*Ci_p, Co_p), bf16 MXU operands.
    w1_oihw, w2_oihw, cb2, g1, b1, g2, b2 = raw
    del cb2  # exactly cancelled by the training-mode BatchNorm that follows conv2
    cmid, cin = w1_oihw.shape[0], w1_oihw.shape[1]
    cout = w2_oihw.shape[0]
    cp, cmp_, cop = _round_up(cin, lane), _round_up(cmid, lane), _round_up(cout, lane)

    def im2col(w_oihw, ci_p, co_p):
        co, ci = w_oihw.shape[0], w_oihw.shape[1]
        w = jnp.transpose(w_oihw, (2, 3, 1, 0))                          # HWIO
        w = jnp.pad(w, ((0, 0), (0, 0), (0, ci_p - ci), (0, co_p - co)))
        return w.reshape(9 * ci_p, co_p).astype(jnp.bfloat16)

    def padvec(v, n):
        return jnp.pad(v, (0, n - v.shape[0])).reshape(1, n).astype(jnp.float32)

    return dict(
        w1=im2col(w1_oihw, cp, cmp_), g1=padvec(g1, cmp_), b1=padvec(b1, cmp_),
        w2=im2col(w2_oihw, cmp_, cop), g2=padvec(g2, cop), b2=padvec(b2, cop),
        cin=cin, cout=cout, cin_pad=cp, cmid_pad=cmp_, cout_pad=cop)


def downconv_forward(x_nchw, packed):
    # layout: NCHW (PyTorch) in -> channel-padded NHWC bf16 inside the kernel -> NCHW out.
    cp, cmp_, cop = packed['cin_pad'], packed['cmid_pad'], packed['cout_pad']
    cout = packed['cout']
    x = jnp.transpose(x_nchw, (0, 2, 3, 1))                              # NHWC
    N, Hin, Win, cin = x.shape
    H, W = Hin // 2, Win // 2
    M = N * H * W
    x = jnp.pad(x, ((0, 0), (0, 0), (0, 0), (0, cp - cin))).astype(jnp.bfloat16)

    flops = 2 * M * 9 * (cp * cmp_ + cmp_ * cop)
    bytes_accessed = (x.size * 2 + packed['w1'].size * 2 + packed['w2'].size * 2
                      + 4 * 2 * (cmp_ + cop) + M * cop * 4)

    vmem = pl.BlockSpec(memory_space=pltpu.MemorySpace.VMEM)
    out_flat = pl.pallas_call(
        downconv_kernel,
        out_shape=jax.ShapeDtypeStruct((M, cop), jnp.float32),
        in_specs=[vmem] * 7,
        out_specs=vmem,
        scratch_shapes=[
            pltpu.VMEM((N, H + 2, W + 2, cp), jnp.bfloat16),    # padded (halo) input, conv1
            pltpu.VMEM((N, H + 2, W + 2, cmp_), jnp.bfloat16),  # padded (halo) input, conv2
        ],
        compiler_params=pltpu.CompilerParams(vmem_limit_bytes=32 * 1024 * 1024),
        cost_estimate=pl.CostEstimate(flops=flops, transcendentals=0,
                                      bytes_accessed=bytes_accessed),
    )(x, packed['w1'], packed['g1'], packed['b1'],
      packed['w2'], packed['g2'], packed['b2'])

    out = out_flat.reshape(N, H, W, cop)[:, :, :, :cout]
    return jnp.transpose(out, (0, 3, 1, 2))


def downconv_ref(x_nchw, raw):
    # pure-JAX f32 reference with PyTorch semantics (incl. conv2 bias, training-mode BN)
    w1_oihw, w2_oihw, cb2, g1, b1, g2, b2 = raw
    x = jnp.transpose(x_nchw, (0, 2, 3, 1)).astype(jnp.float32)
    N, Hin, Win, Cin = x.shape
    H, W = Hin // 2, Win // 2
    pooled = jnp.max(x.reshape(N, H, 2, W, 2, Cin), axis=(2, 4))

    def conv(y, w_oihw, bias):
        w_hwio = jnp.transpose(w_oihw, (2, 3, 1, 0)).astype(jnp.float32)
        out = lax.conv_general_dilated(y, w_hwio, (1, 1), 'SAME',
                                       dimension_numbers=('NHWC', 'HWIO', 'NHWC'))
        if bias is not None:
            out = out + bias.reshape(1, 1, 1, -1)
        return out

    def bn_relu(y, g, b):
        m = jnp.mean(y, axis=(0, 1, 2), keepdims=True)
        v = jnp.mean((y - m) ** 2, axis=(0, 1, 2), keepdims=True)
        yn = (y - m) * lax.rsqrt(v + EPS) * g.reshape(1, 1, 1, -1) + b.reshape(1, 1, 1, -1)
        return jnp.maximum(yn, 0.0)

    y = bn_relu(conv(pooled, w1_oihw, None), g1, b1)
    y = bn_relu(conv(y, w2_oihw, cb2), g2, b2)
    return jnp.transpose(y, (0, 3, 1, 2))


if __name__ == "__main__":
    key = jax.random.PRNGKey(0)
    kx, kp = jax.random.split(key)
    in_channels, out_channels = 4, 8
    x = jax.random.normal(kx, (2, in_channels, 16, 16), jnp.float32)   # NCHW like PyTorch

    raw = init_raw_params(kp, in_channels, out_channels)
    packed = pack_params(raw)

    out = jax.block_until_ready(downconv_forward(x, packed))
    assert out.shape == (2, out_channels, 8, 8)

    ref = downconv_ref(x, raw)
    # tolerance reflects bf16 MXU operands (f32 accumulation) vs the f32 reference
    np.testing.assert_allclose(np.asarray(out), np.asarray(ref), rtol=1e-2, atol=1e-2)
    print("KERNEL_OK")
</pallas_src>

<mosaic_0001>
module attributes {stable_mosaic.version = 11 : i64} {
  func.func @downconv_kernel(%arg0: memref<2x16x16x128xbf16, #tpu.memory_space<vmem>>, %arg1: memref<1152x128xbf16, #tpu.memory_space<vmem>>, %arg2: memref<1x128xf32, #tpu.memory_space<vmem>>, %arg3: memref<1x128xf32, #tpu.memory_space<vmem>>, %arg4: memref<1152x128xbf16, #tpu.memory_space<vmem>>, %arg5: memref<1x128xf32, #tpu.memory_space<vmem>>, %arg6: memref<1x128xf32, #tpu.memory_space<vmem>>, %arg7: memref<128x128xf32, #tpu.memory_space<vmem>>, %arg8: memref<2x10x10x128xbf16, #tpu.memory_space<vmem>>, %arg9: memref<2x10x10x128xbf16, #tpu.memory_space<vmem>>) attributes {dimension_semantics = [], scalar_prefetch = 0 : i64, scratch_operands = 2 : i64, tpu.core_type = #tpu.core_type<tc>} {
    %c0 = arith.constant 0 : index
    %c0_0 = arith.constant 0 : index
    %c0_1 = arith.constant 0 : index
    %c0_2 = arith.constant 0 : index
    %0 = vector.load %arg0[%c0, %c0_0, %c0_1, %c0_2] : memref<2x16x16x128xbf16, #tpu.memory_space<vmem>>, vector<2x16x16x128xbf16>
    %1 = vector.shape_cast %0 : vector<2x16x16x128xbf16> to vector<2x8x2x16x128xbf16>
    %2 = vector.extract_strided_slice %1 {offsets = [0, 0, 0, 0, 0], sizes = [2, 8, 1, 16, 128], strides = [1, 1, 1, 1, 1]} : vector<2x8x2x16x128xbf16> to vector<2x8x1x16x128xbf16>
    %3 = vector.shape_cast %2 : vector<2x8x1x16x128xbf16> to vector<2x8x16x128xbf16>
    %4 = vector.extract_strided_slice %1 {offsets = [0, 0, 1, 0, 0], sizes = [2, 8, 1, 16, 128], strides = [1, 1, 1, 1, 1]} : vector<2x8x2x16x128xbf16> to vector<2x8x1x16x128xbf16>
    %5 = vector.shape_cast %4 : vector<2x8x1x16x128xbf16> to vector<2x8x16x128xbf16>
    %6 = arith.maximumf %3, %5 : vector<2x8x16x128xbf16>
    %7 = vector.shape_cast %6 : vector<2x8x16x128xbf16> to vector<2x8x8x256xbf16>
    %8 = vector.extract_strided_slice %7 {offsets = [0, 0, 0, 0], sizes = [2, 8, 8, 128], strides = [1, 1, 1, 1]} : vector<2x8x8x256xbf16> to vector<2x8x8x128xbf16>
    %9 = vector.extract_strided_slice %7 {offsets = [0, 0, 0, 128], sizes = [2, 8, 8, 128], strides = [1, 1, 1, 1]} : vector<2x8x8x256xbf16> to vector<2x8x8x128xbf16>
    %10 = arith.maximumf %8, %9 : vector<2x8x8x128xbf16>
    %cst = arith.constant 0.000000e+00 : bf16
    %11 = vector.broadcast %cst : bf16 to vector<2x10x10x128xbf16>
    %c0_3 = arith.constant 0 : index
    %c0_4 = arith.constant 0 : index
    %c0_5 = arith.constant 0 : index
    %c0_6 = arith.constant 0 : index
    %12 = vector.load %arg8[%c0_3, %c0_4, %c0_5, %c0_6] : memref<2x10x10x128xbf16, #tpu.memory_space<vmem>>, vector<2x10x10x128xbf16>
    tpu.vector_store %arg8[%c0_3, %c0_4, %c0_5, %c0_6], %11 {strides = array<i32>} : memref<2x10x10x128xbf16, #tpu.memory_space<vmem>>, vector<2x10x10x128xbf16>,
    %c0_7 = arith.constant 0 : index
    %c1 = arith.constant 1 : index
    %c1_8 = arith.constant 1 : index
    %c0_9 = arith.constant 0 : index
    %13 = vector.load %arg8[%c0_7, %c1, %c1_8, %c0_9] : memref<2x10x10x128xbf16, #tpu.memory_space<vmem>>, vector<2x8x8x128xbf16>
    tpu.vector_store %arg8[%c0_7, %c1, %c1_8, %c0_9], %10 {strides = array<i32>} : memref<2x10x10x128xbf16, #tpu.memory_space<vmem>>, vector<2x8x8x128xbf16>,
    %cst_10 = arith.constant 0.000000e+00 : f32
    %14 = vector.broadcast %cst_10 : f32 to vector<128x128xf32>
    %c0_11 = arith.constant 0 : index
    %c0_12 = arith.constant 0 : index
    %c0_13 = arith.constant 0 : index
    %c0_14 = arith.constant 0 : index
    %15 = vector.load %arg8[%c0_11, %c0_12, %c0_13, %c0_14] : memref<2x10x10x128xbf16, #tpu.memory_space<vmem>>, vector<2x8x8x128xbf16>
    %16 = vector.shape_cast %15 : vector<2x8x8x128xbf16> to vector<128x128xbf16>
    %c0_15 = arith.constant 0 : index
    %c0_16 = arith.constant 0 : index
    %17 = vector.load %arg1[%c0_15, %c0_16] : memref<1152x128xbf16, #tpu.memory_space<vmem>>, vector<128x128xbf16>
    %cst_17 = arith.constant dense<0.000000e+00> : vector<128x128xf32>
    %18 = tpu.matmul %16, %17, %cst_17 {dimension_numbers = #tpu.dot_dimension_numbers<[1], [0], [0], [1], [0, 0, 1, 1], [], []>} : vector<128x128xbf16>, vector<128x128xbf16>, vector<128x128xf32> -> vector<128x128xf32>
    %19 = arith.addf %14, %18 : vector<128x128xf32>
    %c0_18 = arith.constant 0 : index
    %c0_19 = arith.constant 0 : index
    %c1_20 = arith.constant 1 : index
    %c0_21 = arith.constant 0 : index
    %20 = vector.load %arg8[%c0_18, %c0_19, %c1_20, %c0_21] : memref<2x10x10x128xbf16, #tpu.memory_space<vmem>>, vector<2x8x8x128xbf16>
    %21 = vector.shape_cast %20 : vector<2x8x8x128xbf16> to vector<128x128xbf16>
    %c128 = arith.constant 128 : index
    %c0_22 = arith.constant 0 : index
    %22 = vector.load %arg1[%c128, %c0_22] : memref<1152x128xbf16, #tpu.memory_space<vmem>>, vector<128x128xbf16>
    %cst_23 = arith.constant dense<0.000000e+00> : vector<128x128xf32>
    %23 = tpu.matmul %21, %22, %cst_23 {dimension_numbers = #tpu.dot_dimension_numbers<[1], [0], [0], [1], [0, 0, 1, 1], [], []>} : vector<128x128xbf16>, vector<128x128xbf16>, vector<128x128xf32> -> vector<128x128xf32>
    %24 = arith.addf %19, %23 : vector<128x128xf32>
    %c0_24 = arith.constant 0 : index
    %c0_25 = arith.constant 0 : index
    %c2 = arith.constant 2 : index
    %c0_26 = arith.constant 0 : index
    %25 = vector.load %arg8[%c0_24, %c0_25, %c2, %c0_26] : memref<2x10x10x128xbf16, #tpu.memory_space<vmem>>, vector<2x8x8x128xbf16>
    %26 = vector.shape_cast %25 : vector<2x8x8x128xbf16> to vector<128x128xbf16>
    %c256 = arith.constant 256 : index
    %c0_27 = arith.constant 0 : index
    %27 = vector.load %arg1[%c256, %c0_27] : memref<1152x128xbf16, #tpu.memory_space<vmem>>, vector<128x128xbf16>
    %cst_28 = arith.constant dense<0.000000e+00> : vector<128x128xf32>
    %28 = tpu.matmul %26, %27, %cst_28 {dimension_numbers = #tpu.dot_dimension_numbers<[1], [0], [0], [1], [0, 0, 1, 1], [], []>} : vector<128x128xbf16>, vector<128x128xbf16>, vector<128x128xf32> -> vector<128x128xf32>
    %29 = arith.addf %24, %28 : vector<128x128xf32>
    %c0_29 = arith.constant 0 : index
    %c1_30 = arith.constant 1 : index
    %c0_31 = arith.constant 0 : index
    %c0_32 = arith.constant 0 : index
    %30 = vector.load %arg8[%c0_29, %c1_30, %c0_31, %c0_32] : memref<2x10x10x128xbf16, #tpu.memory_space<vmem>>, vector<2x8x8x128xbf16>
    %31 = vector.shape_cast %30 : vector<2x8x8x128xbf16> to vector<128x128xbf16>
    %c384 = arith.constant 384 : index
    %c0_33 = arith.constant 0 : index
    %32 = vector.load %arg1[%c384, %c0_33] : memref<1152x128xbf16, #tpu.memory_space<vmem>>, vector<128x128xbf16>
    %cst_34 = arith.constant dense<0.000000e+00> : vector<128x128xf32>
    %33 = tpu.matmul %31, %32, %cst_34 {dimension_numbers = #tpu.dot_dimension_numbers<[1], [0], [0], [1], [0, 0, 1, 1], [], []>} : vector<128x128xbf16>, vector<128x128xbf16>, vector<128x128xf32> -> vector<128x128xf32>
    %34 = arith.addf %29, %33 : vector<128x128xf32>
    %c0_35 = arith.constant 0 : index
    %c1_36 = arith.constant 1 : index
    %c1_37 = arith.constant 1 : index
    %c0_38 = arith.constant 0 : index
    %35 = vector.load %arg8[%c0_35, %c1_36, %c1_37, %c0_38] : memref<2x10x10x128xbf16, #tpu.memory_space<vmem>>, vector<2x8x8x128xbf16>
    %36 = vector.shape_cast %35 : vector<2x8x8x128xbf16> to vector<128x128xbf16>
    %c512 = arith.constant 512 : index
    %c0_39 = arith.constant 0 : index
    %37 = vector.load %arg1[%c512, %c0_39] : memref<1152x128xbf16, #tpu.memory_space<vmem>>, vector<128x128xbf16>
    %cst_40 = arith.constant dense<0.000000e+00> : vector<128x128xf32>
    %38 = tpu.matmul %36, %37, %cst_40 {dimension_numbers = #tpu.dot_dimension_numbers<[1], [0], [0], [1], [0, 0, 1, 1], [], []>} : vector<128x128xbf16>, vector<128x128xbf16>, vector<128x128xf32> -> vector<128x128xf32>
    %39 = arith.addf %34, %38 : vector<128x128xf32>
    %c0_41 = arith.constant 0 : index
    %c1_42 = arith.constant 1 : index
    %c2_43 = arith.constant 2 : index
    %c0_44 = arith.constant 0 : index
    %40 = vector.load %arg8[%c0_41, %c1_42, %c2_43, %c0_44] : memref<2x10x10x128xbf16, #tpu.memory_space<vmem>>, vector<2x8x8x128xbf16>
    %41 = vector.shape_cast %40 : vector<2x8x8x128xbf16> to vector<128x128xbf16>
    %c640 = arith.constant 640 : index
    %c0_45 = arith.constant 0 : index
    %42 = vector.load %arg1[%c640, %c0_45] : memref<1152x128xbf16, #tpu.memory_space<vmem>>, vector<128x128xbf16>
    %cst_46 = arith.constant dense<0.000000e+00> : vector<128x128xf32>
    %43 = tpu.matmul %41, %42, %cst_46 {dimension_numbers = #tpu.dot_dimension_numbers<[1], [0], [0], [1], [0, 0, 1, 1], [], []>} : vector<128x128xbf16>, vector<128x128xbf16>, vector<128x128xf32> -> vector<128x128xf32>
    %44 = arith.addf %39, %43 : vector<128x128xf32>
    %c0_47 = arith.constant 0 : index
    %c2_48 = arith.constant 2 : index
    %c0_49 = arith.constant 0 : index
    %c0_50 = arith.constant 0 : index
    %45 = vector.load %arg8[%c0_47, %c2_48, %c0_49, %c0_50] : memref<2x10x10x128xbf16, #tpu.memory_space<vmem>>, vector<2x8x8x128xbf16>
    %46 = vector.shape_cast %45 : vector<2x8x8x128xbf16> to vector<128x128xbf16>
    %c768 = arith.constant 768 : index
    %c0_51 = arith.constant 0 : index
    %47 = vector.load %arg1[%c768, %c0_51] : memref<1152x128xbf16, #tpu.memory_space<vmem>>, vector<128x128xbf16>
    %cst_52 = arith.constant dense<0.000000e+00> : vector<128x128xf32>
    %48 = tpu.matmul %46, %47, %cst_52 {dimension_numbers = #tpu.dot_dimension_numbers<[1], [0], [0], [1], [0, 0, 1, 1], [], []>} : vector<128x128xbf16>, vector<128x128xbf16>, vector<128x128xf32> -> vector<128x128xf32>
    %49 = arith.addf %44, %48 : vector<128x128xf32>
    %c0_53 = arith.constant 0 : index
    %c2_54 = arith.constant 2 : index
    %c1_55 = arith.constant 1 : index
    %c0_56 = arith.constant 0 : index
    %50 = vector.load %arg8[%c0_53, %c2_54, %c1_55, %c0_56] : memref<2x10x10x128xbf16, #tpu.memory_space<vmem>>, vector<2x8x8x128xbf16>
    %51 = vector.shape_cast %50 : vector<2x8x8x128xbf16> to vector<128x128xbf16>
    %c896 = arith.constant 896 : index
    %c0_57 = arith.constant 0 : index
    %52 = vector.load %arg1[%c896, %c0_57] : memref<1152x128xbf16, #tpu.memory_space<vmem>>, vector<128x128xbf16>
    %cst_58 = arith.constant dense<0.000000e+00> : vector<128x128xf32>
    %53 = tpu.matmul %51, %52, %cst_58 {dimension_numbers = #tpu.dot_dimension_numbers<[1], [0], [0], [1], [0, 0, 1, 1], [], []>} : vector<128x128xbf16>, vector<128x128xbf16>, vector<128x128xf32> -> vector<128x128xf32>
    %54 = arith.addf %49, %53 : vector<128x128xf32>
    %c0_59 = arith.constant 0 : index
    %c2_60 = arith.constant 2 : index
    %c2_61 = arith.constant 2 : index
    %c0_62 = arith.constant 0 : index
    %55 = vector.load %arg8[%c0_59, %c2_60, %c2_61, %c0_62] : memref<2x10x10x128xbf16, #tpu.memory_space<vmem>>, vector<2x8x8x128xbf16>
    %56 = vector.shape_cast %55 : vector<2x8x8x128xbf16> to vector<128x128xbf16>
    %c1024 = arith.constant 1024 : index
    %c0_63 = arith.constant 0 : index
    %57 = vector.load %arg1[%c1024, %c0_63] : memref<1152x128xbf16, #tpu.memory_space<vmem>>, vector<128x128xbf16>
    %cst_64 = arith.constant dense<0.000000e+00> : vector<128x128xf32>
    %58 = tpu.matmul %56, %57, %cst_64 {dimension_numbers = #tpu.dot_dimension_numbers<[1], [0], [0], [1], [0, 0, 1, 1], [], []>} : vector<128x128xbf16>, vector<128x128xbf16>, vector<128x128xf32> -> vector<128x128xf32>
    %59 = arith.addf %54, %58 : vector<128x128xf32>
    %cst_65 = arith.constant dense<0.000000e+00> : vector<128xf32>
    %60 = vector.multi_reduction <add>, %59, %cst_65 [0] : vector<128x128xf32> to vector<128xf32>
    %61 = vector.shape_cast %60 : vector<128xf32> to vector<1x128xf32>
    %cst_66 = arith.constant 7.812500e-03 : f32
    %62 = vector.broadcast %cst_66 : f32 to vector<1x128xf32>
    %63 = arith.mulf %61, %62 : vector<1x128xf32>
    %64 = vector.broadcast %63 : vector<1x128xf32> to vector<128x128xf32>
    %65 = arith.subf %59, %64 : vector<128x128xf32>
    %66 = arith.mulf %65, %65 : vector<128x128xf32>
    %cst_67 = arith.constant dense<0.000000e+00> : vector<128xf32>
    %67 = vector.multi_reduction <add>, %66, %cst_67 [0] : vector<128x128xf32> to vector<128xf32>
    %68 = vector.shape_cast %67 : vector<128xf32> to vector<1x128xf32>
    %cst_68 = arith.constant 7.812500e-03 : f32
    %69 = vector.broadcast %cst_68 : f32 to vector<1x128xf32>
    %70 = arith.mulf %68, %69 : vector<1x128xf32>
    %cst_69 = arith.constant 9.99999974E-6 : f32
    %71 = vector.broadcast %cst_69 : f32 to vector<1x128xf32>
    %72 = arith.addf %70, %71 : vector<1x128xf32>
    %73 = math.rsqrt %72 : vector<1x128xf32>
    %c0_70 = arith.constant 0 : index
    %c0_71 = arith.constant 0 : index
    %74 = vector.load %arg2[%c0_70, %c0_71] : memref<1x128xf32, #tpu.memory_space<vmem>>, vector<1x128xf32>
    %75 = arith.mulf %73, %74 : vector<1x128xf32>
    %76 = vector.broadcast %75 : vector<1x128xf32> to vector<128x128xf32>
    %77 = arith.mulf %65, %76 : vector<128x128xf32>
    %c0_72 = arith.constant 0 : index
    %c0_73 = arith.constant 0 : index
    %78 = vector.load %arg3[%c0_72, %c0_73] : memref<1x128xf32, #tpu.memory_space<vmem>>, vector<1x128xf32>
    %79 = vector.broadcast %78 : vector<1x128xf32> to vector<128x128xf32>
    %80 = arith.addf %77, %79 : vector<128x128xf32>
    %cst_74 = arith.constant 0.000000e+00 : f32
    %81 = vector.broadcast %cst_74 : f32 to vector<128x128xf32>
    %82 = arith.maximumf %80, %81 : vector<128x128xf32>
    %cst_75 = arith.constant 0.000000e+00 : bf16
    %83 = vector.broadcast %cst_75 : bf16 to vector<2x10x10x128xbf16>
    %c0_76 = arith.constant 0 : index
    %c0_77 = arith.constant 0 : index
    %c0_78 = arith.constant 0 : index
    %c0_79 = arith.constant 0 : index
    %84 = vector.load %arg9[%c0_76, %c0_77, %c0_78, %c0_79] : memref<2x10x10x128xbf16, #tpu.memory_space<vmem>>, vector<2x10x10x128xbf16>
    tpu.vector_store %arg9[%c0_76, %c0_77, %c0_78, %c0_79], %83 {strides = array<i32>} : memref<2x10x10x128xbf16, #tpu.memory_space<vmem>>, vector<2x10x10x128xbf16>,
    %85 = arith.truncf %82 : vector<128x128xf32> to vector<128x128xbf16>
    %86 = vector.shape_cast %85 : vector<128x128xbf16> to vector<2x8x8x128xbf16>
    %c0_80 = arith.constant 0 : index
    %c1_81 = arith.constant 1 : index
    %c1_82 = arith.constant 1 : index
    %c0_83 = arith.constant 0 : index
    %87 = vector.load %arg9[%c0_80, %c1_81, %c1_82, %c0_83] : memref<2x10x10x128xbf16, #tpu.memory_space<vmem>>, vector<2x8x8x128xbf16>
    tpu.vector_store %arg9[%c0_80, %c1_81, %c1_82, %c0_83], %86 {strides = array<i32>} : memref<2x10x10x128xbf16, #tpu.memory_space<vmem>>, vector<2x8x8x128xbf16>,
    %cst_84 = arith.constant 0.000000e+00 : f32
    %88 = vector.broadcast %cst_84 : f32 to vector<128x128xf32>
    %c0_85 = arith.constant 0 : index
    %c0_86 = arith.constant 0 : index
    %c0_87 = arith.constant 0 : index
    %c0_88 = arith.constant 0 : index
    %89 = vector.load %arg9[%c0_85, %c0_86, %c0_87, %c0_88] : memref<2x10x10x128xbf16, #tpu.memory_space<vmem>>, vector<2x8x8x128xbf16>
    %90 = vector.shape_cast %89 : vector<2x8x8x128xbf16> to vector<128x128xbf16>
    %c0_89 = arith.constant 0 : index
    %c0_90 = arith.constant 0 : index
    %91 = vector.load %arg4[%c0_89, %c0_90] : memref<1152x128xbf16, #tpu.memory_space<vmem>>, vector<128x128xbf16>
    %cst_91 = arith.constant dense<0.000000e+00> : vector<128x128xf32>
    %92 = tpu.matmul %90, %91, %cst_91 {dimension_numbers = #tpu.dot_dimension_numbers<[1], [0], [0], [1], [0, 0, 1, 1], [], []>} : vector<128x128xbf16>, vector<128x128xbf16>, vector<128x128xf32> -> vector<128x128xf32>
    %93 = arith.addf %88, %92 : vector<128x128xf32>
    %c0_92 = arith.constant 0 : index
    %c0_93 = arith.constant 0 : index
    %c1_94 = arith.constant 1 : index
    %c0_95 = arith.constant 0 : index
    %94 = vector.load %arg9[%c0_92, %c0_93, %c1_94, %c0_95] : memref<2x10x10x128xbf16, #tpu.memory_space<vmem>>, vector<2x8x8x128xbf16>
    %95 = vector.shape_cast %94 : vector<2x8x8x128xbf16> to vector<128x128xbf16>
    %c128_96 = arith.constant 128 : index
    %c0_97 = arith.constant 0 : index
    %96 = vector.load %arg4[%c128_96, %c0_97] : memref<1152x128xbf16, #tpu.memory_space<vmem>>, vector<128x128xbf16>
    %cst_98 = arith.constant dense<0.000000e+00> : vector<128x128xf32>
    %97 = tpu.matmul %95, %96, %cst_98 {dimension_numbers = #tpu.dot_dimension_numbers<[1], [0], [0], [1], [0, 0, 1, 1], [], []>} : vector<128x128xbf16>, vector<128x128xbf16>, vector<128x128xf32> -> vector<128x128xf32>
    %98 = arith.addf %93, %97 : vector<128x128xf32>
    %c0_99 = arith.constant 0 : index
    %c0_100 = arith.constant 0 : index
    %c2_101 = arith.constant 2 : index
    %c0_102 = arith.constant 0 : index
    %99 = vector.load %arg9[%c0_99, %c0_100, %c2_101, %c0_102] : memref<2x10x10x128xbf16, #tpu.memory_space<vmem>>, vector<2x8x8x128xbf16>
    %100 = vector.shape_cast %99 : vector<2x8x8x128xbf16> to vector<128x128xbf16>
    %c256_103 = arith.constant 256 : index
    %c0_104 = arith.constant 0 : index
    %101 = vector.load %arg4[%c256_103, %c0_104] : memref<1152x128xbf16, #tpu.memory_space<vmem>>, vector<128x128xbf16>
    %cst_105 = arith.constant dense<0.000000e+00> : vector<128x128xf32>
    %102 = tpu.matmul %100, %101, %cst_105 {dimension_numbers = #tpu.dot_dimension_numbers<[1], [0], [0], [1], [0, 0, 1, 1], [], []>} : vector<128x128xbf16>, vector<128x128xbf16>, vector<128x128xf32> -> vector<128x128xf32>
    %103 = arith.addf %98, %102 : vector<128x128xf32>
    %c0_106 = arith.constant 0 : index
    %c1_107 = arith.constant 1 : index
    %c0_108 = arith.constant 0 : index
    %c0_109 = arith.constant 0 : index
    %104 = vector.load %arg9[%c0_106, %c1_107, %c0_108, %c0_109] : memref<2x10x10x128xbf16, #tpu.memory_space<vmem>>, vector<2x8x8x128xbf16>
    %105 = vector.shape_cast %104 : vector<2x8x8x128xbf16> to vector<128x128xbf16>
    %c384_110 = arith.constant 384 : index
    %c0_111 = arith.constant 0 : index
    %106 = vector.load %arg4[%c384_110, %c0_111] : memref<1152x128xbf16, #tpu.memory_space<vmem>>, vector<128x128xbf16>
    %cst_112 = arith.constant dense<0.000000e+00> : vector<128x128xf32>
    %107 = tpu.matmul %105, %106, %cst_112 {dimension_numbers = #tpu.dot_dimension_numbers<[1], [0], [0], [1], [0, 0, 1, 1], [], []>} : vector<128x128xbf16>, vector<128x128xbf16>, vector<128x128xf32> -> vector<128x128xf32>
    %108 = arith.addf %103, %107 : vector<128x128xf32>
    %c0_113 = arith.constant 0 : index
    %c1_114 = arith.constant 1 : index
    %c1_115 = arith.constant 1 : index
    %c0_116 = arith.constant 0 : index
    %109 = vector.load %arg9[%c0_113, %c1_114, %c1_115, %c0_116] : memref<2x10x10x128xbf16, #tpu.memory_space<vmem>>, vector<2x8x8x128xbf16>
    %110 = vector.shape_cast %109 : vector<2x8x8x128xbf16> to vector<128x128xbf16>
    %c512_117 = arith.constant 512 : index
    %c0_118 = arith.constant 0 : index
    %111 = vector.load %arg4[%c512_117, %c0_118] : memref<1152x128xbf16, #tpu.memory_space<vmem>>, vector<128x128xbf16>
    %cst_119 = arith.constant dense<0.000000e+00> : vector<128x128xf32>
    %112 = tpu.matmul %110, %111, %cst_119 {dimension_numbers = #tpu.dot_dimension_numbers<[1], [0], [0], [1], [0, 0, 1, 1], [], []>} : vector<128x128xbf16>, vector<128x128xbf16>, vector<128x128xf32> -> vector<128x128xf32>
    %113 = arith.addf %108, %112 : vector<128x128xf32>
    %c0_120 = arith.constant 0 : index
    %c1_121 = arith.constant 1 : index
    %c2_122 = arith.constant 2 : index
    %c0_123 = arith.constant 0 : index
    %114 = vector.load %arg9[%c0_120, %c1_121, %c2_122, %c0_123] : memref<2x10x10x128xbf16, #tpu.memory_space<vmem>>, vector<2x8x8x128xbf16>
    %115 = vector.shape_cast %114 : vector<2x8x8x128xbf16> to vector<128x128xbf16>
    %c640_124 = arith.constant 640 : index
    %c0_125 = arith.constant 0 : index
    %116 = vector.load %arg4[%c640_124, %c0_125] : memref<1152x128xbf16, #tpu.memory_space<vmem>>, vector<128x128xbf16>
    %cst_126 = arith.constant dense<0.000000e+00> : vector<128x128xf32>
    %117 = tpu.matmul %115, %116, %cst_126 {dimension_numbers = #tpu.dot_dimension_numbers<[1], [0], [0], [1], [0, 0, 1, 1], [], []>} : vector<128x128xbf16>, vector<128x128xbf16>, vector<128x128xf32> -> vector<128x128xf32>
    %118 = arith.addf %113, %117 : vector<128x128xf32>
    %c0_127 = arith.constant 0 : index
    %c2_128 = arith.constant 2 : index
    %c0_129 = arith.constant 0 : index
    %c0_130 = arith.constant 0 : index
    %119 = vector.load %arg9[%c0_127, %c2_128, %c0_129, %c0_130] : memref<2x10x10x128xbf16, #tpu.memory_space<vmem>>, vector<2x8x8x128xbf16>
    %120 = vector.shape_cast %119 : vector<2x8x8x128xbf16> to vector<128x128xbf16>
    %c768_131 = arith.constant 768 : index
    %c0_132 = arith.constant 0 : index
    %121 = vector.load %arg4[%c768_131, %c0_132] : memref<1152x128xbf16, #tpu.memory_space<vmem>>, vector<128x128xbf16>
    %cst_133 = arith.constant dense<0.000000e+00> : vector<128x128xf32>
    %122 = tpu.matmul %120, %121, %cst_133 {dimension_numbers = #tpu.dot_dimension_numbers<[1], [0], [0], [1], [0, 0, 1, 1], [], []>} : vector<128x128xbf16>, vector<128x128xbf16>, vector<128x128xf32> -> vector<128x128xf32>
    %123 = arith.addf %118, %122 : vector<128x128xf32>
    %c0_134 = arith.constant 0 : index
    %c2_135 = arith.constant 2 : index
    %c1_136 = arith.constant 1 : index
    %c0_137 = arith.constant 0 : index
    %124 = vector.load %arg9[%c0_134, %c2_135, %c1_136, %c0_137] : memref<2x10x10x128xbf16, #tpu.memory_space<vmem>>, vector<2x8x8x128xbf16>
    %125 = vector.shape_cast %124 : vector<2x8x8x128xbf16> to vector<128x128xbf16>
    %c896_138 = arith.constant 896 : index
    %c0_139 = arith.constant 0 : index
    %126 = vector.load %arg4[%c896_138, %c0_139] : memref<1152x128xbf16, #tpu.memory_space<vmem>>, vector<128x128xbf16>
    %cst_140 = arith.constant dense<0.000000e+00> : vector<128x128xf32>
    %127 = tpu.matmul %125, %126, %cst_140 {dimension_numbers = #tpu.dot_dimension_numbers<[1], [0], [0], [1], [0, 0, 1, 1], [], []>} : vector<128x128xbf16>, vector<128x128xbf16>, vector<128x128xf32> -> vector<128x128xf32>
    %128 = arith.addf %123, %127 : vector<128x128xf32>
    %c0_141 = arith.constant 0 : index
    %c2_142 = arith.constant 2 : index
    %c2_143 = arith.constant 2 : index
    %c0_144 = arith.constant 0 : index
    %129 = vector.load %arg9[%c0_141, %c2_142, %c2_143, %c0_144] : memref<2x10x10x128xbf16, #tpu.memory_space<vmem>>, vector<2x8x8x128xbf16>
    %130 = vector.shape_cast %129 : vector<2x8x8x128xbf16> to vector<128x128xbf16>
    %c1024_145 = arith.constant 1024 : index
    %c0_146 = arith.constant 0 : index
    %131 = vector.load %arg4[%c1024_145, %c0_146] : memref<1152x128xbf16, #tpu.memory_space<vmem>>, vector<128x128xbf16>
    %cst_147 = arith.constant dense<0.000000e+00> : vector<128x128xf32>
    %132 = tpu.matmul %130, %131, %cst_147 {dimension_numbers = #tpu.dot_dimension_numbers<[1], [0], [0], [1], [0, 0, 1, 1], [], []>} : vector<128x128xbf16>, vector<128x128xbf16>, vector<128x128xf32> -> vector<128x128xf32>
    %133 = arith.addf %128, %132 : vector<128x128xf32>
    %cst_148 = arith.constant dense<0.000000e+00> : vector<128xf32>
    %134 = vector.multi_reduction <add>, %133, %cst_148 [0] : vector<128x128xf32> to vector<128xf32>
    %135 = vector.shape_cast %134 : vector<128xf32> to vector<1x128xf32>
    %cst_149 = arith.constant 7.812500e-03 : f32
    %136 = vector.broadcast %cst_149 : f32 to vector<1x128xf32>
    %137 = arith.mulf %135, %136 : vector<1x128xf32>
    %138 = vector.broadcast %137 : vector<1x128xf32> to vector<128x128xf32>
    %139 = arith.subf %133, %138 : vector<128x128xf32>
    %140 = arith.mulf %139, %139 : vector<128x128xf32>
    %cst_150 = arith.constant dense<0.000000e+00> : vector<128xf32>
    %141 = vector.multi_reduction <add>, %140, %cst_150 [0] : vector<128x128xf32> to vector<128xf32>
    %142 = vector.shape_cast %141 : vector<128xf32> to vector<1x128xf32>
    %cst_151 = arith.constant 7.812500e-03 : f32
    %143 = vector.broadcast %cst_151 : f32 to vector<1x128xf32>
    %144 = arith.mulf %142, %143 : vector<1x128xf32>
    %cst_152 = arith.constant 9.99999974E-6 : f32
    %145 = vector.broadcast %cst_152 : f32 to vector<1x128xf32>
    %146 = arith.addf %144, %145 : vector<1x128xf32>
    %147 = math.rsqrt %146 : vector<1x128xf32>
    %c0_153 = arith.constant 0 : index
    %c0_154 = arith.constant 0 : index
    %148 = vector.load %arg5[%c0_153, %c0_154] : memref<1x128xf32, #tpu.memory_space<vmem>>, vector<1x128xf32>
    %149 = arith.mulf %147, %148 : vector<1x128xf32>
    %150 = vector.broadcast %149 : vector<1x128xf32> to vector<128x128xf32>
    %151 = arith.mulf %139, %150 : vector<128x128xf32>
    %c0_155 = arith.constant 0 : index
    %c0_156 = arith.constant 0 : index
    %152 = vector.load %arg6[%c0_155, %c0_156] : memref<1x128xf32, #tpu.memory_space<vmem>>, vector<1x128xf32>
    %153 = vector.broadcast %152 : vector<1x128xf32> to vector<128x128xf32>
    %154 = arith.addf %151, %153 : vector<128x128xf32>
    %cst_157 = arith.constant 0.000000e+00 : f32
    %155 = vector.broadcast %cst_157 : f32 to vector<128x128xf32>
    %156 = arith.maximumf %154, %155 : vector<128x128xf32>
    %c0_158 = arith.constant 0 : index
    %c0_159 = arith.constant 0 : index
    %157 = vector.load %arg7[%c0_158, %c0_159] : memref<128x128xf32, #tpu.memory_space<vmem>>, vector<128x128xf32>
    tpu.vector_store %arg7[%c0_158, %c0_159], %156 {strides = array<i32>} : memref<128x128xf32, #tpu.memory_space<vmem>>, vector<128x128xf32>,
    return
  }
}

</mosaic_0001>

<llo_original>
// kernel: tpu_custom_call.1
$region0: #{tpu_custom_call.1}
  #allocation0 [shape = 'u32[]', space=smem, size = 0x4, offset = 0x4, fixed_abs, tag = 'smem constant byte address 0x4 - core index']
  #allocation1 [shape = 'u32[72,128]{1,0:T(1,128)}', space=vmem, size = 0x9000, scoped, tag = 'internal scratch']
  #allocation2 [shape = 'bf16[2,10,10,128]{3,2,1,0:T(8,128)(2,1)}', space=vmem, size = 0x14000, scoped, tag = 'scratch operand']
  #allocation3 [shape = 'bf16[2,10,10,128]{3,2,1,0:T(8,128)(2,1)}', space=vmem, size = 0x14000, scoped, tag = 'scratch operand']
  %s0 = inlined_call_operand.hbm [shape: bf16[2,16,16,128], index: 0, kind: input, shape index: {}]
  %s1 = inlined_call_operand.hbm [shape: bf16[1152,128], index: 1, kind: input, shape index: {}]
  %s2 = inlined_call_operand.vmem [shape: f32[1,128], index: 2, kind: input, shape index: {}]
  %s3 = inlined_call_operand.vmem [shape: f32[1,128], index: 3, kind: input, shape index: {}]
  %s4 = inlined_call_operand.hbm [shape: bf16[1152,128], index: 4, kind: input, shape index: {}]
  %s5 = inlined_call_operand.vmem [shape: f32[1,128], index: 5, kind: input, shape index: {}]
  %s6 = inlined_call_operand.vmem [shape: f32[1,128], index: 6, kind: input, shape index: {}]
  %s7 = inlined_call_operand.hbm [shape: f32[128,128], index: 7, kind: output, shape index: {}]
  %s8 = sld [smem:[#allocation0]]
  $region50: #{tpu_custom_call.1} parent=0
    _
  %s10 = ssub.s32 1, %s8
  %s11 = scalar_select 0, %s10, %s8
  $region1: #{tpu_custom_call.1} parent=0
    #allocation4 [shape = 'u8[131072]{0}', space=vmem, size = 0x20000, scoped, tag = 'input window, operand 0, single buffered']
    #allocation5 [shape = 's32[1]{0}', space=sflag, size = 0x4, scoped, tag = 'scoped memory for tpu_custom_call.1']
    #allocation6 [shape = 's32[1]{0}', space=sflag, size = 0x4, scoped, tag = 'scoped memory for tpu_custom_call.1']
    #allocation7 [shape = 'u8[294912]{0}', space=vmem, size = 0x48000, scoped, tag = 'input window, operand 1, single buffered']
    #allocation8 [shape = 's32[1]{0}', space=sflag, size = 0x4, scoped, tag = 'scoped memory for tpu_custom_call.1']
    #allocation9 [shape = 'u8[294912]{0}', space=vmem, size = 0x48000, scoped, tag = 'input window, operand 4, single buffered']
    #allocation10 [shape = 'u8[65536]{0}', space=vmem, size = 0x10000, scoped, tag = 'output window, operand 0, single buffered']
    %12 = vsyncpa [#allocation5], 0
    %13 = vsyncpa [#allocation8], 0
    %14 = vsyncpa [#allocation6], 0
    // Predicated region
    $region2: #{tpu_custom_call.1} parent=1 // pred_check
      _
    $region3: #{tpu_custom_call.1} parent=1 // pred_check_branch
      %16 = sbr.rel (0) target = $region5
    $region4: #{tpu_custom_call.1} parent=1 // pred_region
      %18 = vsyncadd [#allocation5], 0
      %s19 = sshll.u32 %s0, 4
      %s20 = int_to_ptr.hbm [resolvable:$true] %s19
      %s21 = sshll.u32 [#allocation4], 4
      %s22 = int_to_ptr.vmem [resolvable:$true] %s21
      %27 = dma.hbm_to_vmem [thread:$0]  %s20, 4096, %s22, [#allocation5], 64, 64, 4
    $region5: #{tpu_custom_call.1} parent=1 // pred_fallthru
      _
    // Predicated region
    $region6: #{tpu_custom_call.1} parent=1 // pred_check
      _
    $region7: #{tpu_custom_call.1} parent=1 // pred_check_branch
      %29 = sbr.rel (0) target = $region9
    $region8: #{tpu_custom_call.1} parent=1 // pred_region
      %31 = vsyncadd [#allocation8], 0
      %s32 = sshll.u32 %s1, 4
      %s33 = int_to_ptr.hbm [resolvable:$true] %s32
      %s34 = sshll.u32 [#allocation7], 4
      %s35 = int_to_ptr.vmem [resolvable:$true] %s34
      %40 = dma.hbm_to_vmem [thread:$0]  %s33, 9216, %s35, [#allocation8], 64, 64, 4
    $region9: #{tpu_custom_call.1} parent=1 // pred_fallthru
      _
    // Predicated region
    $region10: #{tpu_custom_call.1} parent=1 // pred_check
      _
    $region11: #{tpu_custom_call.1} parent=1 // pred_check_branch
      %42 = sbr.rel (0) target = $region13
    $region12: #{tpu_custom_call.1} parent=1 // pred_region
      _
    $region13: #{tpu_custom_call.1} parent=1 // pred_fallthru
      _
    // Predicated region
    $region14: #{tpu_custom_call.1} parent=1 // pred_check
      _
    $region15: #{tpu_custom_call.1} parent=1 // pred_check_branch
      %44 = sbr.rel (0) target = $region17
    $region16: #{tpu_custom_call.1} parent=1 // pred_region
      _
    $region17: #{tpu_custom_call.1} parent=1 // pred_fallthru
      _
    // Predicated region
    $region18: #{tpu_custom_call.1} parent=1 // pred_check
      _
    $region19: #{tpu_custom_call.1} parent=1 // pred_check_branch
      %46 = sbr.rel (0) target = $region21
    $region20: #{tpu_custom_call.1} parent=1 // pred_region
      %48 = vsyncadd [#allocation8], 0
      %s49 = sshll.u32 %s4, 4
      %s50 = int_to_ptr.hbm [resolvable:$true] %s49
      %s51 = sshll.u32 [#allocation9], 4
      %s52 = int_to_ptr.vmem [resolvable:$true] %s51
      %57 = dma.hbm_to_vmem [thread:$0]  %s50, 9216, %s52, [#allocation8], 64, 64, 4
    $region21: #{tpu_custom_call.1} parent=1 // pred_fallthru
      _
    // Predicated region
    $region22: #{tpu_custom_call.1} parent=1 // pred_check
      _
    $region23: #{tpu_custom_call.1} parent=1 // pred_check_branch
      %59 = sbr.rel (0) target = $region25
    $region24: #{tpu_custom_call.1} parent=1 // pred_region
      _
    $region25: #{tpu_custom_call.1} parent=1 // pred_fallthru
      _
    // Predicated region
    $region26: #{tpu_custom_call.1} parent=1 // pred_check
      _
    $region27: #{tpu_custom_call.1} parent=1 // pred_check_branch
      %61 = sbr.rel (0) target = $region29
    $region28: #{tpu_custom_call.1} parent=1 // pred_region
      _
    $region29: #{tpu_custom_call.1} parent=1 // pred_fallthru
      _
    // Predicated region
    $region30: #{tpu_custom_call.1} parent=1 // pred_check
      _
    $region31: #{tpu_custom_call.1} parent=1 // pred_check_branch
      %63 = sbr.rel (0) target = $region33
    $region32: #{tpu_custom_call.1} parent=1 // pred_region
      %65 = dma.done [#allocation5], 4096
    $region33: #{tpu_custom_call.1} parent=1 // pred_fallthru
      _
    // Predicated region
    $region34: #{tpu_custom_call.1} parent=1 // pred_check
      _
    $region35: #{tpu_custom_call.1} parent=1 // pred_check_branch
      %67 = sbr.rel (0) target = $region37
    $region36: #{tpu_custom_call.1} parent=1 // pred_region
      %69 = dma.done [#allocation8], 9216
    $region37: #{tpu_custom_call.1} parent=1 // pred_fallthru
      _
    // Predicated region
    $region38: #{tpu_custom_call.1} parent=1 // pred_check
      _
    $region39: #{tpu_custom_call.1} parent=1 // pred_check_branch
      %71 = sbr.rel (0) target = $region41
    $region40: #{tpu_custom_call.1} parent=1 // pred_region
      %73 = dma.done [#allocation8], 9216
    $region41: #{tpu_custom_call.1} parent=1 // pred_fallthru
      _
    %v75 = vld [vmem:[#allocation4] sm:$0xf]
    %v76 = vld [vmem:[#allocation4 + $0x4] sm:$0xf]
    %v77 = vld [vmem:[#allocation4 + $0x8] sm:$0xf]
    %v78 = vld [vmem:[#allocation4 + $0xc] sm:$0xf]
    %v79 = vld [vmem:[#allocation4 + $0x10] sm:$0xf]
    %v80 = vld [vmem:[#allocation4 + $0x14] sm:$0xf]
    %v81 = vld [vmem:[#allocation4 + $0x18] sm:$0xf]
    %v82 = vld [vmem:[#allocation4 + $0x1c] sm:$0xf]
    %v83 = vld [vmem:[#allocation4 + $0x20] sm:$0xf]
    %v84 = vld [vmem:[#allocation4 + $0x24] sm:$0xf]
    %v85 = vld [vmem:[#allocation4 + $0x28] sm:$0xf]
    %v86 = vld [vmem:[#allocation4 + $0x2c] sm:$0xf]
    %v87 = vld [vmem:[#allocation4 + $0x30] sm:$0xf]
    %v88 = vld [vmem:[#allocation4 + $0x34] sm:$0xf]
    %v89 = vld [vmem:[#allocation4 + $0x38] sm:$0xf]
    %v90 = vld [vmem:[#allocation4 + $0x3c] sm:$0xf]
    %v91 = vld [vmem:[#allocation4 + $0x40] sm:$0xf]
    %v92 = vld [vmem:[#allocation4 + $0x44] sm:$0xf]
    %v93 = vld [vmem:[#allocation4 + $0x48] sm:$0xf]
    %v94 = vld [vmem:[#allocation4 + $0x4c] sm:$0xf]
    %v95 = vld [vmem:[#allocation4 + $0x50] sm:$0xf]
    %v96 = vld [vmem:[#allocation4 + $0x54] sm:$0xf]
    %v97 = vld [vmem:[#allocation4 + $0x58] sm:$0xf]
    %v98 = vld [vmem:[#allocation4 + $0x5c] sm:$0xf]
    %v99 = vld [vmem:[#allocation4 + $0x60] sm:$0xf]
    %v100 = vld [vmem:[#allocation4 + $0x64] sm:$0xf]
    %v101 = vld [vmem:[#allocation4 + $0x68] sm:$0xf]
    %v102 = vld [vmem:[#allocation4 + $0x6c] sm:$0xf]
    %v103 = vld [vmem:[#allocation4 + $0x70] sm:$0xf]
    %v104 = vld [vmem:[#allocation4 + $0x74] sm:$0xf]
    %v105 = vld [vmem:[#allocation4 + $0x78] sm:$0xf]
    %v106 = vld [vmem:[#allocation4 + $0x7c] sm:$0xf]
    %v107 = vld [vmem:[#allocation4 + $0x80] sm:$0xf]
    %v108 = vld [vmem:[#allocation4 + $0x84] sm:$0xf]
    %v109 = vld [vmem:[#allocation4 + $0x88] sm:$0xf]
    %v110 = vld [vmem:[#allocation4 + $0x8c] sm:$0xf]
    %v111 = vld [vmem:[#allocation4 + $0x90] sm:$0xf]
    %v112 = vld [vmem:[#allocation4 + $0x94] sm:$0xf]
    %v113 = vld [vmem:[#allocation4 + $0x98] sm:$0xf]
    %v114 = vld [vmem:[#allocation4 + $0x9c] sm:$0xf]
    %v115 = vld [vmem:[#allocation4 + $0xa0] sm:$0xf]
    %v116 = vld [vmem:[#allocation4 + $0xa4] sm:$0xf]
    %v117 = vld [vmem:[#allocation4 + $0xa8] sm:$0xf]
    %v118 = vld [vmem:[#allocation4 + $0xac] sm:$0xf]
    %v119 = vld [vmem:[#allocation4 + $0xb0] sm:$0xf]
    %v120 = vld [vmem:[#allocation4 + $0xb4] sm:$0xf]
    %v121 = vld [vmem:[#allocation4 + $0xb8] sm:$0xf]
    %v122 = vld [vmem:[#allocation4 + $0xbc] sm:$0xf]
    %v123 = vld [vmem:[#allocation4 + $0xc0] sm:$0xf]
    %v124 = vld [vmem:[#allocation4 + $0xc4] sm:$0xf]
    %v125 = vld [vmem:[#allocation4 + $0xc8] sm:$0xf]
    %v126 = vld [vmem:[#allocation4 + $0xcc] sm:$0xf]
    %v127 = vld [vmem:[#allocation4 + $0xd0] sm:$0xf]
    %v128 = vld [vmem:[#allocation4 + $0xd4] sm:$0xf]
    %v129 = vld [vmem:[#allocation4 + $0xd8] sm:$0xf]
    %v130 = vld [vmem:[#allocation4 + $0xdc] sm:$0xf]
    %v131 = vld [vmem:[#allocation4 + $0xe0] sm:$0xf]
    %v132 = vld [vmem:[#allocation4 + $0xe4] sm:$0xf]
    %v133 = vld [vmem:[#allocation4 + $0xe8] sm:$0xf]
    %v134 = vld [vmem:[#allocation4 + $0xec] sm:$0xf]
    %v135 = vld [vmem:[#allocation4 + $0xf0] sm:$0xf]
    %v136 = vld [vmem:[#allocation4 + $0xf4] sm:$0xf]
    %v137 = vld [vmem:[#allocation4 + $0xf8] sm:$0xf]
    %v138 = vld [vmem:[#allocation4 + $0xfc] sm:$0xf]
    %v139 = vunpack.c.l.bf16 %v75
    %v140 = vunpack.c.l.bf16 %v76
    %v141 = vunpack.c.l.bf16 %v79
    %v142 = vunpack.c.l.bf16 %v80
    %v143 = vunpack.c.l.bf16 %v83
    %v144 = vunpack.c.l.bf16 %v84
    %v145 = vunpack.c.l.bf16 %v87
    %v146 = vunpack.c.l.bf16 %v88
    %v147 = vunpack.c.l.bf16 %v91
    %v148 = vunpack.c.l.bf16 %v92
    %v149 = vunpack.c.l.bf16 %v95
    %v150 = vunpack.c.l.bf16 %v96
    %v151 = vunpack.c.l.bf16 %v99
    %v152 = vunpack.c.l.bf16 %v100
    %v153 = vunpack.c.l.bf16 %v103
    %v154 = vunpack.c.l.bf16 %v104
    %v155 = vunpack.c.l.bf16 %v107
    %v156 = vunpack.c.l.bf16 %v108
    %v157 = vunpack.c.l.bf16 %v111
    %v158 = vunpack.c.l.bf16 %v112
    %v159 = vunpack.c.l.bf16 %v115
    %v160 = vunpack.c.l.bf16 %v116
    %v161 = vunpack.c.l.bf16 %v119
    %v162 = vunpack.c.l.bf16 %v120
    %v163 = vunpack.c.l.bf16 %v123
    %v164 = vunpack.c.l.bf16 %v124
    %v165 = vunpack.c.l.bf16 %v127
    %v166 = vunpack.c.l.bf16 %v128
    %v167 = vunpack.c.l.bf16 %v131
    %v168 = vunpack.c.l.bf16 %v132
    %v169 = vunpack.c.l.bf16 %v135
    %v170 = vunpack.c.l.bf16 %v136
    %v171 = vunpack.c.l.bf16 %v77
    %v172 = vunpack.c.l.bf16 %v78
    %v173 = vunpack.c.l.bf16 %v81
    %v174 = vunpack.c.l.bf16 %v82
    %v175 = vunpack.c.l.bf16 %v85
    %v176 = vunpack.c.l.bf16 %v86
    %v177 = vunpack.c.l.bf16 %v89
    %v178 = vunpack.c.l.bf16 %v90
    %v179 = vunpack.c.l.bf16 %v93
    %v180 = vunpack.c.l.bf16 %v94
    %v181 = vunpack.c.l.bf16 %v97
    %v182 = vunpack.c.l.bf16 %v98
    %v183 = vunpack.c.l.bf16 %v101
    %v184 = vunpack.c.l.bf16 %v102
    %v185 = vunpack.c.l.bf16 %v105
    %v186 = vunpack.c.l.bf16 %v106
    %v187 = vunpack.c.l.bf16 %v109
    %v188 = vunpack.c.l.bf16 %v110
    %v189 = vunpack.c.l.bf16 %v113
    %v190 = vunpack.c.l.bf16 %v114
    %v191 = vunpack.c.l.bf16 %v117
    %v192 = vunpack.c.l.bf16 %v118
    %v193 = vunpack.c.l.bf16 %v121
    %v194 = vunpack.c.l.bf16 %v122
    %v195 = vunpack.c.l.bf16 %v125
    %v196 = vunpack.c.l.bf16 %v126
    %v197 = vunpack.c.l.bf16 %v129
    %v198 = vunpack.c.l.bf16 %v130
    %v199 = vunpack.c.l.bf16 %v133
    %v200 = vunpack.c.l.bf16 %v134
    %v201 = vunpack.c.l.bf16 %v137
    %v202 = vunpack.c.l.bf16 %v138
    %v203 = vmax.f32 %v139, %v171
    %v204 = vmax.f32 %v140, %v172
    %v205 = vmax.f32 %v141, %v173
    %v206 = vmax.f32 %v142, %v174
    %v207 = vmax.f32 %v143, %v175
    %v208 = vmax.f32 %v144, %v176
    %v209 = vmax.f32 %v145, %v177
    %v210 = vmax.f32 %v146, %v178
    %v211 = vmax.f32 %v147, %v179
    %v212 = vmax.f32 %v148, %v180
    %v213 = vmax.f32 %v149, %v181
    %v214 = vmax.f32 %v150, %v182
    %v215 = vmax.f32 %v151, %v183
    %v216 = vmax.f32 %v152, %v184
    %v217 = vmax.f32 %v153, %v185
    %v218 = vmax.f32 %v154, %v186
    %v219 = vmax.f32 %v155, %v187
    %v220 = vmax.f32 %v156, %v188
    %v221 = vmax.f32 %v157, %v189
    %v222 = vmax.f32 %v158, %v190
    %v223 = vmax.f32 %v159, %v191
    %v224 = vmax.f32 %v160, %v192
    %v225 = vmax.f32 %v161, %v193
    %v226 = vmax.f32 %v162, %v194
    %v227 = vmax.f32 %v163, %v195
    %v228 = vmax.f32 %v164, %v196
    %v229 = vmax.f32 %v165, %v197
    %v230 = vmax.f32 %v166, %v198
    %v231 = vmax.f32 %v167, %v199
    %v232 = vmax.f32 %v168, %v200
    %v233 = vmax.f32 %v169, %v201
    %v234 = vmax.f32 %v170, %v202
    %v235 = vpack.c.bf16 %v203, %v203
    %v236 = vpack.c.bf16 %v204, %v204
    %v237 = vpack.c.bf16 %v205, %v205
    %v238 = vpack.c.bf16 %v206, %v206
    %v239 = vpack.c.bf16 %v207, %v207
    %v240 = vpack.c.bf16 %v208, %v208
    %v241 = vpack.c.bf16 %v209, %v209
    %v242 = vpack.c.bf16 %v210, %v210
    %v243 = vpack.c.bf16 %v211, %v211
    %v244 = vpack.c.bf16 %v212, %v212
    %v245 = vpack.c.bf16 %v213, %v213
    %v246 = vpack.c.bf16 %v214, %v214
    %v247 = vpack.c.bf16 %v215, %v215
    %v248 = vpack.c.bf16 %v216, %v216
    %v249 = vpack.c.bf16 %v217, %v217
    %v250 = vpack.c.bf16 %v218, %v218
    %v251 = vpack.c.bf16 %v219, %v219
    %v252 = vpack.c.bf16 %v220, %v220
    %v253 = vpack.c.bf16 %v221, %v221
    %v254 = vpack.c.bf16 %v222, %v222
    %v255 = vpack.c.bf16 %v223, %v223
    %v256 = vpack.c.bf16 %v224, %v224
    %v257 = vpack.c.bf16 %v225, %v225
    %v258 = vpack.c.bf16 %v226, %v226
    %v259 = vpack.c.bf16 %v227, %v227
    %v260 = vpack.c.bf16 %v228, %v228
    %v261 = vpack.c.bf16 %v229, %v229
    %v262 = vpack.c.bf16 %v230, %v230
    %v263 = vpack.c.bf16 %v231, %v231
    %v264 = vpack.c.bf16 %v232, %v232
    %v265 = vpack.c.bf16 %v233, %v233
    %v266 = vpack.c.bf16 %v234, %v234
    %v299 = vunpack.c.l.b16 %v235
    %v300 = vunpack.c.l.b16 %v236
    %v301 = vunpack.c.l.b16 %v237
    %v302 = vunpack.c.l.b16 %v238
    %v303 = vunpack.c.l.b16 %v239
    %v304 = vunpack.c.l.b16 %v240
    %v305 = vunpack.c.l.b16 %v241
    %v306 = vunpack.c.l.b16 %v242
    %v307 = vunpack.c.l.b16 %v243
    %v308 = vunpack.c.l.b16 %v244
    %v309 = vunpack.c.l.b16 %v245
    %v310 = vunpack.c.l.b16 %v246
    %v311 = vunpack.c.l.b16 %v247
    %v312 = vunpack.c.l.b16 %v248
    %v313 = vunpack.c.l.b16 %v249
    %v314 = vunpack.c.l.b16 %v250
    %v315 = vunpack.c.l.b16 %v251
    %v316 = vunpack.c.l.b16 %v252
    %v317 = vunpack.c.l.b16 %v253
    %v318 = vunpack.c.l.b16 %v254
    %v319 = vunpack.c.l.b16 %v255
    %v320 = vunpack.c.l.b16 %v256
    %v321 = vunpack.c.l.b16 %v257
    %v322 = vunpack.c.l.b16 %v258
    %v323 = vunpack.c.l.b16 %v259
    %v324 = vunpack.c.l.b16 %v260
    %v325 = vunpack.c.l.b16 %v261
    %v326 = vunpack.c.l.b16 %v262
    %v327 = vunpack.c.l.b16 %v263
    %v328 = vunpack.c.l.b16 %v264
    %v329 = vunpack.c.l.b16 %v265
    %v330 = vunpack.c.l.b16 %v266
    %v331 = vpack.c.b16 %v300, %v299
    %v332 = vpack.c.b16 %v302, %v301
    %v333 = vpack.c.b16 %v304, %v303
    %v334 = vpack.c.b16 %v306, %v305
    %v335 = vpack.c.b16 %v308, %v307
    %v336 = vpack.c.b16 %v310, %v309
    %v337 = vpack.c.b16 %v312, %v311
    %v338 = vpack.c.b16 %v314, %v313
    %v339 = vpack.c.b16 %v316, %v315
    %v340 = vpack.c.b16 %v318, %v317
    %v341 = vpack.c.b16 %v320, %v319
    %v342 = vpack.c.b16 %v322, %v321
    %v343 = vpack.c.b16 %v324, %v323
    %v344 = vpack.c.b16 %v326, %v325
    %v345 = vpack.c.b16 %v328, %v327
    %v346 = vpack.c.b16 %v330, %v329
    %v347 = vunpack.i.l.s16 %v331
    %v348 = vunpack.i.h.s16 %v331
    %v349 = vpack.c.b16 %v348, %v347
    %v351 = vunpack.i.l.s16 %v332
    %v352 = vunpack.i.h.s16 %v332
    %v353 = vpack.c.b16 %v352, %v351
    %v355 = vunpack.i.l.s16 %v333
    %v356 = vunpack.i.h.s16 %v333
    %v357 = vpack.c.b16 %v356, %v355
    %v359 = vunpack.i.l.s16 %v334
    %v360 = vunpack.i.h.s16 %v334
    %v361 = vpack.c.b16 %v360, %v359
    %v363 = vunpack.i.l.s16 %v335
    %v364 = vunpack.i.h.s16 %v335
    %v365 = vpack.c.b16 %v364, %v363
    %v367 = vunpack.i.l.s16 %v336
    %v368 = vunpack.i.h.s16 %v336
    %v369 = vpack.c.b16 %v368, %v367
    %v371 = vunpack.i.l.s16 %v337
    %v372 = vunpack.i.h.s16 %v337
    %v373 = vpack.c.b16 %v372, %v371
    %v375 = vunpack.i.l.s16 %v338
    %v376 = vunpack.i.h.s16 %v338
    %v377 = vpack.c.b16 %v376, %v375
    %v379 = vunpack.i.l.s16 %v339
    %v380 = vunpack.i.h.s16 %v339
    %v381 = vpack.c.b16 %v380, %v379
    %v383 = vunpack.i.l.s16 %v340
    %v384 = vunpack.i.h.s16 %v340
    %v385 = vpack.c.b16 %v384, %v383
    %v387 = vunpack.i.l.s16 %v341
    %v388 = vunpack.i.h.s16 %v341
    %v389 = vpack.c.b16 %v388, %v387
    %v391 = vunpack.i.l.s16 %v342
    %v392 = vunpack.i.h.s16 %v342
    %v393 = vpack.c.b16 %v392, %v391
    %v395 = vunpack.i.l.s16 %v343
    %v396 = vunpack.i.h.s16 %v343
    %v397 = vpack.c.b16 %v396, %v395
    %v399 = vunpack.i.l.s16 %v344
    %v400 = vunpack.i.h.s16 %v344
    %v401 = vpack.c.b16 %v400, %v399
    %v403 = vunpack.i.l.s16 %v345
    %v404 = vunpack.i.h.s16 %v345
    %v405 = vpack.c.b16 %v404, %v403
    %v407 = vunpack.i.l.s16 %v346
    %v408 = vunpack.i.h.s16 %v346
    %v409 = vpack.c.b16 %v408, %v407
    %v411 = vunpack.c.l.bf16 %v349
    %v412 = vunpack.c.l.bf16 %v353
    %v413 = vunpack.c.l.bf16 %v357
    %v414 = vunpack.c.l.bf16 %v361
    %v415 = vunpack.c.l.bf16 %v365
    %v416 = vunpack.c.l.bf16 %v369
    %v417 = vunpack.c.l.bf16 %v373
    %v418 = vunpack.c.l.bf16 %v377
    %v419 = vunpack.c.l.bf16 %v381
    %v420 = vunpack.c.l.bf16 %v385
    %v421 = vunpack.c.l.bf16 %v389
    %v422 = vunpack.c.l.bf16 %v393
    %v423 = vunpack.c.l.bf16 %v397
    %v424 = vunpack.c.l.bf16 %v401
    %v425 = vunpack.c.l.bf16 %v405
    %v426 = vunpack.c.l.bf16 %v409
    %v427 = vrot.slane %v349, 4
    %v428 = vrot.slane %v353, 4
    %v429 = vrot.slane %v357, 4
    %v430 = vrot.slane %v361, 4
    %v431 = vrot.slane %v365, 4
    %v432 = vrot.slane %v369, 4
    %v433 = vrot.slane %v373, 4
    %v434 = vrot.slane %v377, 4
    %v435 = vrot.slane %v381, 4
    %v436 = vrot.slane %v385, 4
    %v437 = vrot.slane %v389, 4
    %v438 = vrot.slane %v393, 4
    %v439 = vrot.slane %v397, 4
    %v440 = vrot.slane %v401, 4
    %v441 = vrot.slane %v405, 4
    %v442 = vrot.slane %v409, 4
    %v459 = vunpack.c.l.bf16 %v427
    %v460 = vunpack.c.l.bf16 %v428
    %v461 = vunpack.c.l.bf16 %v429
    %v462 = vunpack.c.l.bf16 %v430
    %v463 = vunpack.c.l.bf16 %v431
    %v464 = vunpack.c.l.bf16 %v432
    %v465 = vunpack.c.l.bf16 %v433
    %v466 = vunpack.c.l.bf16 %v434
    %v467 = vunpack.c.l.bf16 %v435
    %v468 = vunpack.c.l.bf16 %v436
    %v469 = vunpack.c.l.bf16 %v437
    %v470 = vunpack.c.l.bf16 %v438
    %v471 = vunpack.c.l.bf16 %v439
    %v472 = vunpack.c.l.bf16 %v440
    %v473 = vunpack.c.l.bf16 %v441
    %v474 = vunpack.c.l.bf16 %v442
    %v475 = vmax.f32 %v411, %v459
    %v476 = vmax.f32 %v412, %v460
    %v477 = vmax.f32 %v413, %v461
    %v478 = vmax.f32 %v414, %v462
    %v479 = vmax.f32 %v415, %v463
    %v480 = vmax.f32 %v416, %v464
    %v481 = vmax.f32 %v417, %v465
    %v482 = vmax.f32 %v418, %v466
    %v483 = vmax.f32 %v419, %v467
    %v484 = vmax.f32 %v420, %v468
    %v485 = vmax.f32 %v421, %v469
    %v486 = vmax.f32 %v422, %v470
    %v487 = vmax.f32 %v423, %v471
    %v488 = vmax.f32 %v424, %v472
    %v489 = vmax.f32 %v425, %v473
    %v490 = vmax.f32 %v426, %v474
    %v491 = vpack.c.bf16 %v475, %v475
    %v492 = vpack.c.bf16 %v476, %v476
    %v493 = vpack.c.bf16 %v477, %v477
    %v494 = vpack.c.bf16 %v478, %v478
    %v495 = vpack.c.bf16 %v479, %v479
    %v496 = vpack.c.bf16 %v480, %v480
    %v497 = vpack.c.bf16 %v481, %v481
    %v498 = vpack.c.bf16 %v482, %v482
    %v499 = vpack.c.bf16 %v483, %v483
    %v500 = vpack.c.bf16 %v484, %v484
    %v501 = vpack.c.bf16 %v485, %v485
    %v502 = vpack.c.bf16 %v486, %v486
    %v503 = vpack.c.bf16 %v487, %v487
    %v504 = vpack.c.bf16 %v488, %v488
    %v505 = vpack.c.bf16 %v489, %v489
    %v506 = vpack.c.bf16 %v490, %v490
    %507 = vst [vmem:[#allocation2] sm:$0xf] 0
    %508 = vst [vmem:[#allocation2 + $0x4] sm:$0x1] 0
    %509 = vst [vmem:[#allocation2 + $0x8] sm:$0xf] 0
    %510 = vst [vmem:[#allocation2 + $0xc] sm:$0x1] 0
    %511 = vst [vmem:[#allocation2 + $0x10] sm:$0xf] 0
    %512 = vst [vmem:[#allocation2 + $0x14] sm:$0x1] 0
    %513 = vst [vmem:[#allocation2 + $0x18] sm:$0xf] 0
    %514 = vst [vmem:[#allocation2 + $0x1c] sm:$0x1] 0
    %515 = vst [vmem:[#allocation2 + $0x20] sm:$0xf] 0
    %516 = vst [vmem:[#allocation2 + $0x24] sm:$0x1] 0
    %517 = vst [vmem:[#allocation2 + $0x28] sm:$0xf] 0
    %518 = vst [vmem:[#allocation2 + $0x2c] sm:$0x1] 0
    %519 = vst [vmem:[#allocation2 + $0x30] sm:$0xf] 0
    %520 = vst [vmem:[#allocation2 + $0x34] sm:$0x1] 0
    %521 = vst [vmem:[#allocation2 + $0x38] sm:$0xf] 0
    %522 = vst [vmem:[#allocation2 + $0x3c] sm:$0x1] 0
    %523 = vst [vmem:[#allocation2 + $0x40] sm:$0xf] 0
    %524 = vst [vmem:[#allocation2 + $0x44] sm:$0x1] 0
    %525 = vst [vmem:[#allocation2 + $0x48] sm:$0xf] 0
    %526 = vst [vmem:[#allocation2 + $0x4c] sm:$0x1] 0
    %527 = vst [vmem:[#allocation2 + $0x50] sm:$0xf] 0
    %528 = vst [vmem:[#allocation2 + $0x54] sm:$0x1] 0
    %529 = vst [vmem:[#allocation2 + $0x58] sm:$0xf] 0
    %530 = vst [vmem:[#allocation2 + $0x5c] sm:$0x1] 0
    %531 = vst [vmem:[#allocation2 + $0x60] sm:$0xf] 0
    %532 = vst [vmem:[#allocation2 + $0x64] sm:$0x1] 0
    %533 = vst [vmem:[#allocation2 + $0x68] sm:$0xf] 0
    %534 = vst [vmem:[#allocation2 + $0x6c] sm:$0x1] 0
    %535 = vst [vmem:[#allocation2 + $0x70] sm:$0xf] 0
    %536 = vst [vmem:[#allocation2 + $0x74] sm:$0x1] 0
    %537 = vst [vmem:[#allocation2 + $0x78] sm:$0xf] 0
    %538 = vst [vmem:[#allocation2 + $0x7c] sm:$0x1] 0
    %539 = vst [vmem:[#allocation2 + $0x80] sm:$0xf] 0
    %540 = vst [vmem:[#allocation2 + $0x84] sm:$0x1] 0
    %541 = vst [vmem:[#allocation2 + $0x88] sm:$0xf] 0
    %542 = vst [vmem:[#allocation2 + $0x8c] sm:$0x1] 0
    %543 = vst [vmem:[#allocation2 + $0x90] sm:$0xf] 0
    %544 = vst [vmem:[#allocation2 + $0x94] sm:$0x1] 0
    %545 = vst [vmem:[#allocation2 + $0x98] sm:$0xf] 0
    %546 = vst [vmem:[#allocation2 + $0x9c] sm:$0x1] 0
    %v548 = vshrl.u32 %v491, 16
    %v550 = vrot.slane %v548, 7
    %v551 = vshll.u32 %v491, 16
    %v553 = vor.u32 %v550, %v551
    %v554 = vrot.slane %v550, 4
    %v556 = vshrl.u32 %v492, 16
    %v558 = vrot.slane %v556, 7
    %v559 = vshll.u32 %v492, 16
    %v561 = vor.u32 %v558, %v559
    %v562 = vrot.slane %v558, 4
    %v564 = vshrl.u32 %v493, 16
    %v566 = vrot.slane %v564, 7
    %v567 = vshll.u32 %v493, 16
    %v569 = vor.u32 %v566, %v567
    %v570 = vrot.slane %v566, 4
    %v572 = vshrl.u32 %v494, 16
    %v574 = vrot.slane %v572, 7
    %v575 = vshll.u32 %v494, 16
    %v577 = vor.u32 %v574, %v575
    %v578 = vrot.slane %v574, 4
    %v580 = vshrl.u32 %v495, 16
    %v582 = vrot.slane %v580, 7
    %v583 = vshll.u32 %v495, 16
    %v585 = vor.u32 %v582, %v583
    %v586 = vrot.slane %v582, 4
    %v588 = vshrl.u32 %v496, 16
    %v590 = vrot.slane %v588, 7
    %v591 = vshll.u32 %v496, 16
    %v593 = vor.u32 %v590, %v591
    %v594 = vrot.slane %v590, 4
    %v596 = vshrl.u32 %v497, 16
    %v598 = vrot.slane %v596, 7
    %v599 = vshll.u32 %v497, 16
    %v601 = vor.u32 %v598, %v599
    %v602 = vrot.slane %v598, 4
    %v604 = vshrl.u32 %v498, 16
    %v606 = vrot.slane %v604, 7
    %v607 = vshll.u32 %v498, 16
    %v609 = vor.u32 %v606, %v607
    %v610 = vrot.slane %v606, 4
    %v612 = vshrl.u32 %v499, 16
    %v614 = vrot.slane %v612, 7
    %v615 = vshll.u32 %v499, 16
    %v617 = vor.u32 %v614, %v615
    %v618 = vrot.slane %v614, 4
    %v620 = vshrl.u32 %v500, 16
    %v622 = vrot.slane %v620, 7
    %v623 = vshll.u32 %v500, 16
    %v625 = vor.u32 %v622, %v623
    %v626 = vrot.slane %v622, 4
    %v628 = vshrl.u32 %v501, 16
    %v630 = vrot.slane %v628, 7
    %v631 = vshll.u32 %v501, 16
    %v633 = vor.u32 %v630, %v631
    %v634 = vrot.slane %v630, 4
    %v636 = vshrl.u32 %v502, 16
    %v638 = vrot.slane %v636, 7
    %v639 = vshll.u32 %v502, 16
    %v641 = vor.u32 %v638, %v639
    %v642 = vrot.slane %v638, 4
    %v644 = vshrl.u32 %v503, 16
    %v646 = vrot.slane %v644, 7
    %v647 = vshll.u32 %v503, 16
    %v649 = vor.u32 %v646, %v647
    %v650 = vrot.slane %v646, 4
    %v652 = vshrl.u32 %v504, 16
    %v654 = vrot.slane %v652, 7
    %v655 = vshll.u32 %v504, 16
    %v657 = vor.u32 %v654, %v655
    %v658 = vrot.slane %v654, 4
    %v660 = vshrl.u32 %v505, 16
    %v662 = vrot.slane %v660, 7
    %v663 = vshll.u32 %v505, 16
    %v665 = vor.u32 %v662, %v663
    %v666 = vrot.slane %v662, 4
    %v668 = vshrl.u32 %v506, 16
    %v670 = vrot.slane %v668, 7
    %v671 = vshll.u32 %v506, 16
    %v673 = vor.u32 %v670, %v671
    %v674 = vrot.slane %v670, 4
    %s707 = scalar_lea.vmem [#allocation2], 8
    %vm708 = vcmask 1043456
    %vm709 = vsmask.f32 7938
    %vm710 = vmand %vm708, %vm709
    %v711 = vld [vmem:[%s707] sm:$0xf]
    %v712 = vsel %vm710, %v553, %v711
    %713 = vst [vmem:[%s707] sm:$0xf] %v712
    %vm714 = vcmask 1040384
    %vm715 = vsmask.f32 256
    %vm716 = vmand %vm714, %vm715
    %v717 = vld [vmem:[%s707 + $0x4] sm:$0x1]
    %v718 = vsel %vm716, %v554, %v717
    %719 = vst [vmem:[%s707 + $0x4] sm:$0x1] %v718
    %v720 = vld [vmem:[%s707 + $0x8] sm:$0xf]
    %v721 = vsel %vm710, %v561, %v720
    %722 = vst [vmem:[%s707 + $0x8] sm:$0xf] %v721
    %v723 = vld [vmem:[%s707 + $0xc] sm:$0x1]
    %v724 = vsel %vm716, %v562, %v723
    %725 = vst [vmem:[%s707 + $0xc] sm:$0x1] %v724
    %v726 = vld [vmem:[%s707 + $0x10] sm:$0xf]
    %v727 = vsel %vm710, %v569, %v726
    %728 = vst [vmem:[%s707 + $0x10] sm:$0xf] %v727
    %v729 = vld [vmem:[%s707 + $0x14] sm:$0x1]
    %v730 = vsel %vm716, %v570, %v729
    %731 = vst [vmem:[%s707 + $0x14] sm:$0x1] %v730
    %v732 = vld [vmem:[%s707 + $0x18] sm:$0xf]
    %v733 = vsel %vm710, %v577, %v732
    %734 = vst [vmem:[%s707 + $0x18] sm:$0xf] %v733
    %v735 = vld [vmem:[%s707 + $0x1c] sm:$0x1]
    %v736 = vsel %vm716, %v578, %v735
    %737 = vst [vmem:[%s707 + $0x1c] sm:$0x1] %v736
    %v738 = vld [vmem:[%s707 + $0x20] sm:$0xf]
    %v739 = vsel %vm710, %v585, %v738
    %740 = vst [vmem:[%s707 + $0x20] sm:$0xf] %v739
    %v741 = vld [vmem:[%s707 + $0x24] sm:$0x1]
    %v742 = vsel %vm716, %v586, %v741
    %743 = vst [vmem:[%s707 + $0x24] sm:$0x1] %v742
    %v744 = vld [vmem:[%s707 + $0x28] sm:$0xf]
    %v745 = vsel %vm710, %v593, %v744
    %746 = vst [vmem:[%s707 + $0x28] sm:$0xf] %v745
    %v747 = vld [vmem:[%s707 + $0x2c] sm:$0x1]
    %v748 = vsel %vm716, %v594, %v747
    %749 = vst [vmem:[%s707 + $0x2c] sm:$0x1] %v748
    %v750 = vld [vmem:[%s707 + $0x30] sm:$0xf]
    %v751 = vsel %vm710, %v601, %v750
    %752 = vst [vmem:[%s707 + $0x30] sm:$0xf] %v751
    %v753 = vld [vmem:[%s707 + $0x34] sm:$0x1]
    %v754 = vsel %vm716, %v602, %v753
    %755 = vst [vmem:[%s707 + $0x34] sm:$0x1] %v754
    %v756 = vld [vmem:[%s707 + $0x38] sm:$0xf]
    %v757 = vsel %vm710, %v609, %v756
    %758 = vst [vmem:[%s707 + $0x38] sm:$0xf] %v757
    %v759 = vld [vmem:[%s707 + $0x3c] sm:$0x1]
    %v760 = vsel %vm716, %v610, %v759
    %761 = vst [vmem:[%s707 + $0x3c] sm:$0x1] %v760
    %v762 = vld [vmem:[%s707 + $0x50] sm:$0xf]
    %v763 = vsel %vm710, %v617, %v762
    %764 = vst [vmem:[%s707 + $0x50] sm:$0xf] %v763
    %v765 = vld [vmem:[%s707 + $0x54] sm:$0x1]
    %v766 = vsel %vm716, %v618, %v765
    %767 = vst [vmem:[%s707 + $0x54] sm:$0x1] %v766
    %v768 = vld [vmem:[%s707 + $0x58] sm:$0xf]
    %v769 = vsel %vm710, %v625, %v768
    %770 = vst [vmem:[%s707 + $0x58] sm:$0xf] %v769
    %v771 = vld [vmem:[%s707 + $0x5c] sm:$0x1]
    %v772 = vsel %vm716, %v626, %v771
    %773 = vst [vmem:[%s707 + $0x5c] sm:$0x1] %v772
    %v774 = vld [vmem:[%s707 + $0x60] sm:$0xf]
    %v775 = vsel %vm710, %v633, %v774
    %776 = vst [vmem:[%s707 + $0x60] sm:$0xf] %v775
    %v777 = vld [vmem:[%s707 + $0x64] sm:$0x1]
    %v778 = vsel %vm716, %v634, %v777
    %779 = vst [vmem:[%s707 + $0x64] sm:$0x1] %v778
    %v780 = vld [vmem:[%s707 + $0x68] sm:$0xf]
    %v781 = vsel %vm710, %v641, %v780
    %782 = vst [vmem:[%s707 + $0x68] sm:$0xf] %v781
    %v783 = vld [vmem:[%s707 + $0x6c] sm:$0x1]
    %v784 = vsel %vm716, %v642, %v783
    %785 = vst [vmem:[%s707 + $0x6c] sm:$0x1] %v784
    %v786 = vld [vmem:[%s707 + $0x70] sm:$0xf]
    %v787 = vsel %vm710, %v649, %v786
    %788 = vst [vmem:[%s707 + $0x70] sm:$0xf] %v787
    %v789 = vld [vmem:[%s707 + $0x74] sm:$0x1]
    %v790 = vsel %vm716, %v650, %v789
    %791 = vst [vmem:[%s707 + $0x74] sm:$0x1] %v790
    %v792 = vld [vmem:[%s707 + $0x78] sm:$0xf]
    %v793 = vsel %vm710, %v657, %v792
    %794 = vst [vmem:[%s707 + $0x78] sm:$0xf] %v793
    %v795 = vld [vmem:[%s707 + $0x7c] sm:$0x1]
    %v796 = vsel %vm716, %v658, %v795
    %797 = vst [vmem:[%s707 + $0x7c] sm:$0x1] %v796
    %v798 = vld [vmem:[%s707 + $0x80] sm:$0xf]
    %v799 = vsel %vm710, %v665, %v798
    %800 = vst [vmem:[%s707 + $0x80] sm:$0xf] %v799
    %v801 = vld [vmem:[%s707 + $0x84] sm:$0x1]
    %v802 = vsel %vm716, %v666, %v801
    %803 = vst [vmem:[%s707 + $0x84] sm:$0x1] %v802
    %v804 = vld [vmem:[%s707 + $0x88] sm:$0xf]
    %v805 = vsel %vm710, %v673, %v804
    %806 = vst [vmem:[%s707 + $0x88] sm:$0xf] %v805
    %v807 = vld [vmem:[%s707 + $0x8c] sm:$0x1]
    %v808 = vsel %vm716, %v674, %v807
    %809 = vst [vmem:[%s707 + $0x8c] sm:$0x1] %v808
    %v810 = vld [vmem:[#allocation2] sm:$0xf]
    %v811 = vld [vmem:[#allocation2 + $0x8] sm:$0xf]
    %v812 = vld [vmem:[#allocation2 + $0x10] sm:$0xf]
    %v813 = vld [vmem:[#allocation2 + $0x18] sm:$0xf]
    %v814 = vld [vmem:[#allocation2 + $0x20] sm:$0xf]
    %v815 = vld [vmem:[#allocation2 + $0x28] sm:$0xf]
    %v816 = vld [vmem:[#allocation2 + $0x30] sm:$0xf]
    %v817 = vld [vmem:[#allocation2 + $0x38] sm:$0xf]
    %v818 = vld [vmem:[#allocation2 + $0x50] sm:$0xf]
    %v819 = vld [vmem:[#allocation2 + $0x58] sm:$0xf]
    %v820 = vld [vmem:[#allocation2 + $0x60] sm:$0xf]
    %v821 = vld [vmem:[#allocation2 + $0x68] sm:$0xf]
    %v822 = vld [vmem:[#allocation2 + $0x70] sm:$0xf]
    %v823 = vld [vmem:[#allocation2 + $0x78] sm:$0xf]
    %v824 = vld [vmem:[#allocation2 + $0x80] sm:$0xf]
    %v825 = vld [vmem:[#allocation2 + $0x88] sm:$0xf]
    %v826 = vld [vmem:[#allocation7] sm:$0xf]
    %v827 = vld [vmem:[#allocation7 + $0x4] sm:$0xf]
    %v828 = vld [vmem:[#allocation7 + $0x8] sm:$0xf]
    %v829 = vld [vmem:[#allocation7 + $0xc] sm:$0xf]
    %v830 = vld [vmem:[#allocation7 + $0x10] sm:$0xf]
    %v831 = vld [vmem:[#allocation7 + $0x14] sm:$0xf]
    %v832 = vld [vmem:[#allocation7 + $0x18] sm:$0xf]
    %v833 = vld [vmem:[#allocation7 + $0x1c] sm:$0xf]
    %v834 = vld [vmem:[#allocation7 + $0x20] sm:$0xf]
    %v835 = vld [vmem:[#allocation7 + $0x24] sm:$0xf]
    %v836 = vld [vmem:[#allocation7 + $0x28] sm:$0xf]
    %v837 = vld [vmem:[#allocation7 + $0x2c] sm:$0xf]
    %v838 = vld [vmem:[#allocation7 + $0x30] sm:$0xf]
    %v839 = vld [vmem:[#allocation7 + $0x34] sm:$0xf]
    %v840 = vld [vmem:[#allocation7 + $0x38] sm:$0xf]
    %v841 = vld [vmem:[#allocation7 + $0x3c] sm:$0xf]
    %v842 = vld [vmem:[#allocation2 + $0x4] sm:$0x1]
    %v843 = vld [vmem:[#allocation2 + $0xc] sm:$0x1]
    %v844 = vld [vmem:[#allocation2 + $0x14] sm:$0x1]
    %v845 = vld [vmem:[#allocation2 + $0x1c] sm:$0x1]
    %v846 = vld [vmem:[#allocation2 + $0x24] sm:$0x1]
    %v847 = vld [vmem:[#allocation2 + $0x2c] sm:$0x1]
    %v848 = vld [vmem:[#allocation2 + $0x34] sm:$0x1]
    %v849 = vld [vmem:[#allocation2 + $0x3c] sm:$0x1]
    %v850 = vld [vmem:[#allocation2 + $0x54] sm:$0x1]
    %v851 = vld [vmem:[#allocation2 + $0x5c] sm:$0x1]
    %v852 = vld [vmem:[#allocation2 + $0x64] sm:$0x1]
    %v853 = vld [vmem:[#allocation2 + $0x6c] sm:$0x1]
    %v854 = vld [vmem:[#allocation2 + $0x74] sm:$0x1]
    %v855 = vld [vmem:[#allocation2 + $0x7c] sm:$0x1]
    %v856 = vld [vmem:[#allocation2 + $0x84] sm:$0x1]
    %v857 = vld [vmem:[#allocation2 + $0x8c] sm:$0x1]
    %vm858 = vsmask.f32 3328
    %vm859 = vsmask.f32 7440
    %vm860 = vmor %vm858, %vm859
    %v862 = vshrl.u32 %v810, 16
    %v864 = vrot.slane %v862, 4
    %v865 = vshll.u32 %v810, 16
    %v867 = vrot.slane %v865, 5
    %v868 = vor.u32 %v864, %v867
    %v869 = vrot.slane %v868, 4
    %v871 = vshll.u32 %v842, 16
    %v873 = vrot.slane %v871, 5
    %v874 = vsel %vm860, %v869, %v873
    %v876 = vshrl.u32 %v811, 16
    %v878 = vrot.slane %v876, 4
    %v879 = vshll.u32 %v811, 16
    %v881 = vrot.slane %v879, 5
    %v882 = vor.u32 %v878, %v881
    %v883 = vrot.slane %v882, 4
    %v885 = vshll.u32 %v843, 16
    %v887 = vrot.slane %v885, 5
    %v888 = vsel %vm860, %v883, %v887
    %v890 = vshrl.u32 %v812, 16
    %v892 = vrot.slane %v890, 4
    %v893 = vshll.u32 %v812, 16
    %v895 = vrot.slane %v893, 5
    %v896 = vor.u32 %v892, %v895
    %v897 = vrot.slane %v896, 4
    %v899 = vshll.u32 %v844, 16
    %v901 = vrot.slane %v899, 5
    %v902 = vsel %vm860, %v897, %v901
    %v904 = vshrl.u32 %v813, 16
    %v906 = vrot.slane %v904, 4
    %v907 = vshll.u32 %v813, 16
    %v909 = vrot.slane %v907, 5
    %v910 = vor.u32 %v906, %v909
    %v911 = vrot.slane %v910, 4
    %v913 = vshll.u32 %v845, 16
    %v915 = vrot.slane %v913, 5
    %v916 = vsel %vm860, %v911, %v915
    %v918 = vshrl.u32 %v814, 16
    %v920 = vrot.slane %v918, 4
    %v921 = vshll.u32 %v814, 16
    %v923 = vrot.slane %v921, 5
    %v924 = vor.u32 %v920, %v923
    %v925 = vrot.slane %v924, 4
    %v927 = vshll.u32 %v846, 16
    %v929 = vrot.slane %v927, 5
    %v930 = vsel %vm860, %v925, %v929
    %v932 = vshrl.u32 %v815, 16
    %v934 = vrot.slane %v932, 4
    %v935 = vshll.u32 %v815, 16
    %v937 = vrot.slane %v935, 5
    %v938 = vor.u32 %v934, %v937
    %v939 = vrot.slane %v938, 4
    %v941 = vshll.u32 %v847, 16
    %v943 = vrot.slane %v941, 5
    %v944 = vsel %vm860, %v939, %v943
    %v946 = vshrl.u32 %v816, 16
    %v948 = vrot.slane %v946, 4
    %v949 = vshll.u32 %v816, 16
    %v951 = vrot.slane %v949, 5
    %v952 = vor.u32 %v948, %v951
    %v953 = vrot.slane %v952, 4
    %v955 = vshll.u32 %v848, 16
    %v957 = vrot.slane %v955, 5
    %v958 = vsel %vm860, %v953, %v957
    %v960 = vshrl.u32 %v817, 16
    %v962 = vrot.slane %v960, 4
    %v963 = vshll.u32 %v817, 16
    %v965 = vrot.slane %v963, 5
    %v966 = vor.u32 %v962, %v965
    %v967 = vrot.slane %v966, 4
    %v969 = vshll.u32 %v849, 16
    %v971 = vrot.slane %v969, 5
    %v972 = vsel %vm860, %v967, %v971
    %v974 = vshrl.u32 %v818, 16
    %v976 = vrot.slane %v974, 4
    %v977 = vshll.u32 %v818, 16
    %v979 = vrot.slane %v977, 5
    %v980 = vor.u32 %v976, %v979
    %v981 = vrot.slane %v980, 4
    %v983 = vshll.u32 %v850, 16
    %v985 = vrot.slane %v983, 5
    %v986 = vsel %vm860, %v981, %v985
    %v988 = vshrl.u32 %v819, 16
    %v990 = vrot.slane %v988, 4
    %v991 = vshll.u32 %v819, 16
    %v993 = vrot.slane %v991, 5
    %v994 = vor.u32 %v990, %v993
    %v995 = vrot.slane %v994, 4
    %v997 = vshll.u32 %v851, 16
    %v999 = vrot.slane %v997, 5
    %v1000 = vsel %vm860, %v995, %v999
    %v1002 = vshrl.u32 %v820, 16
    %v1004 = vrot.slane %v1002, 4
    %v1005 = vshll.u32 %v820, 16
    %v1007 = vrot.slane %v1005, 5
    %v1008 = vor.u32 %v1004, %v1007
    %v1009 = vrot.slane %v1008, 4
    %v1011 = vshll.u32 %v852, 16
    %v1013 = vrot.slane %v1011, 5
    %v1014 = vsel %vm860, %v1009, %v1013
    %v1016 = vshrl.u32 %v821, 16
    %v1018 = vrot.slane %v1016, 4
    %v1019 = vshll.u32 %v821, 16
    %v1021 = vrot.slane %v1019, 5
    %v1022 = vor.u32 %v1018, %v1021
    %v1023 = vrot.slane %v1022, 4
    %v1025 = vshll.u32 %v853, 16
    %v1027 = vrot.slane %v1025, 5
    %v1028 = vsel %vm860, %v1023, %v1027
    %v1030 = vshrl.u32 %v822, 16
    %v1032 = vrot.slane %v1030, 4
    %v1033 = vshll.u32 %v822, 16
    %v1035 = vrot.slane %v1033, 5
    %v1036 = vor.u32 %v1032, %v1035
    %v1037 = vrot.slane %v1036, 4
    %v1039 = vshll.u32 %v854, 16
    %v1041 = vrot.slane %v1039, 5
    %v1042 = vsel %vm860, %v1037, %v1041
    %v1044 = vshrl.u32 %v823, 16
    %v1046 = vrot.slane %v1044, 4
    %v1047 = vshll.u32 %v823, 16
    %v1049 = vrot.slane %v1047, 5
    %v1050 = vor.u32 %v1046, %v1049
    %v1051 = vrot.slane %v1050, 4
    %v1053 = vshll.u32 %v855, 16
    %v1055 = vrot.slane %v1053, 5
    %v1056 = vsel %vm860, %v1051, %v1055
    %v1058 = vshrl.u32 %v824, 16
    %v1060 = vrot.slane %v1058, 4
    %v1061 = vshll.u32 %v824, 16
    %v1063 = vrot.slane %v1061, 5
    %v1064 = vor.u32 %v1060, %v1063
    %v1065 = vrot.slane %v1064, 4
    %v1067 = vshll.u32 %v856, 16
    %v1069 = vrot.slane %v1067, 5
    %v1070 = vsel %vm860, %v1065, %v1069
    %v1072 = vshrl.u32 %v825, 16
    %v1074 = vrot.slane %v1072, 4
    %v1075 = vshll.u32 %v825, 16
    %v1077 = vrot.slane %v1075, 5
    %v1078 = vor.u32 %v1074, %v1077
    %v1079 = vrot.slane %v1078, 4
    %v1081 = vshll.u32 %v857, 16
    %v1083 = vrot.slane %v1081, 5
    %v1084 = vsel %vm860, %v1079, %v1083
    %v1085 = vld [vmem:[#allocation7 + $0x40] sm:$0xf]
    %v1086 = vld [vmem:[#allocation7 + $0x44] sm:$0xf]
    %v1087 = vld [vmem:[#allocation7 + $0x48] sm:$0xf]
    %v1088 = vld [vmem:[#allocation7 + $0x4c] sm:$0xf]
    %v1089 = vld [vmem:[#allocation7 + $0x50] sm:$0xf]
    %v1090 = vld [vmem:[#allocation7 + $0x54] sm:$0xf]
    %v1091 = vld [vmem:[#allocation7 + $0x58] sm:$0xf]
    %v1092 = vld [vmem:[#allocation7 + $0x5c] sm:$0xf]
    %v1093 = vld [vmem:[#allocation7 + $0x60] sm:$0xf]
    %v1094 = vld [vmem:[#allocation7 + $0x64] sm:$0xf]
    %v1095 = vld [vmem:[#allocation7 + $0x68] sm:$0xf]
    %v1096 = vld [vmem:[#allocation7 + $0x6c] sm:$0xf]
    %v1097 = vld [vmem:[#allocation7 + $0x70] sm:$0xf]
    %v1098 = vld [vmem:[#allocation7 + $0x74] sm:$0xf]
    %v1099 = vld [vmem:[#allocation7 + $0x78] sm:$0xf]
    %v1100 = vld [vmem:[#allocation7 + $0x7c] sm:$0xf]
    %v1101 = vunpack.c.l.b16 %v874
    %v1102 = vunpack.c.l.b16 %v888
    %v1103 = vunpack.c.l.b16 %v902
    %v1104 = vunpack.c.l.b16 %v916
    %v1105 = vunpack.c.l.b16 %v930
    %v1106 = vunpack.c.l.b16 %v944
    %v1107 = vunpack.c.l.b16 %v958
    %v1108 = vunpack.c.l.b16 %v972
    %v1109 = vunpack.c.l.b16 %v986
    %v1110 = vunpack.c.l.b16 %v1000
    %v1111 = vunpack.c.l.b16 %v1014
    %v1112 = vunpack.c.l.b16 %v1028
    %v1113 = vunpack.c.l.b16 %v1042
    %v1114 = vunpack.c.l.b16 %v1056
    %v1115 = vunpack.c.l.b16 %v1070
    %v1116 = vunpack.c.l.b16 %v1084
    %v1117 = vpack.c.b16 %v1102, %v1101
    %v1118 = vpack.c.b16 %v1104, %v1103
    %v1119 = vpack.c.b16 %v1106, %v1105
    %v1120 = vpack.c.b16 %v1108, %v1107
    %v1121 = vpack.c.b16 %v1110, %v1109
    %v1122 = vpack.c.b16 %v1112, %v1111
    %v1123 = vpack.c.b16 %v1114, %v1113
    %v1124 = vpack.c.b16 %v1116, %v1115
    %v1149 = vunpack.c.l.b16 %v1085
    %v1150 = vunpack.c.l.b16 %v1086
    %v1151 = vunpack.c.l.b16 %v1087
    %v1152 = vunpack.c.l.b16 %v1088
    %v1153 = vunpack.c.l.b16 %v1089
    %v1154 = vunpack.c.l.b16 %v1090
    %v1155 = vunpack.c.l.b16 %v1091
    %v1156 = vunpack.c.l.b16 %v1092
    %v1157 = vunpack.c.l.b16 %v1093
    %v1158 = vunpack.c.l.b16 %v1094
    %v1159 = vunpack.c.l.b16 %v1095
    %v1160 = vunpack.c.l.b16 %v1096
    %v1161 = vunpack.c.l.b16 %v1097
    %v1162 = vunpack.c.l.b16 %v1098
    %v1163 = vunpack.c.l.b16 %v1099
    %v1164 = vunpack.c.l.b16 %v1100
    %v1165 = vpack.c.b16 %v1150, %v1149
    %v1166 = vpack.c.b16 %v1152, %v1151
    %v1167 = vpack.c.b16 %v1154, %v1153
    %v1168 = vpack.c.b16 %v1156, %v1155
    %v1169 = vpack.c.b16 %v1158, %v1157
    %v1170 = vpack.c.b16 %v1160, %v1159
    %v1171 = vpack.c.b16 %v1162, %v1161
    %v1172 = vpack.c.b16 %v1164, %v1163
    %1181 = vmatpush.bf16.msra.mxu0 %v1172
    %1182 = vmatpush.bf16.msra.mxu0 %v1171
    %1183 = vmatpush.bf16.msra.mxu0 %v1170
    %1184 = vmatpush.bf16.msra.mxu0 %v1169
    %1185 = vmatpush.bf16.msra.mxu0 %v1168
    %1186 = vmatpush.bf16.msra.mxu0 %v1167
    %1187 = vmatpush.bf16.msra.mxu0 %v1166
    %1188 = vmatpush.bf16.msra.mxu0 %v1165
    %1189 = vmatmul.bf16.gmra.mxu0 %v1117
    %v1190 = vpop.f32.mrf.mxu0
    %v1191 = vadd.f32 0.0, %v1190
    %v1192 = vpop.f32.mrf.mxu0
    %v1193 = vadd.f32 0.0, %v1192
    %1194 = vmatmul.bf16.gmra.mxu0 %v1118
    %v1195 = vpop.f32.mrf.mxu0
    %v1196 = vadd.f32 0.0, %v1195
    %v1197 = vpop.f32.mrf.mxu0
    %v1198 = vadd.f32 0.0, %v1197
    %1199 = vmatmul.bf16.gmra.mxu0 %v1119
    %v1200 = vpop.f32.mrf.mxu0
    %v1201 = vadd.f32 0.0, %v1200
    %v1202 = vpop.f32.mrf.mxu0
    %v1203 = vadd.f32 0.0, %v1202
    %1204 = vmatmul.bf16.gmra.mxu0 %v1120
    %v1205 = vpop.f32.mrf.mxu0
    %v1206 = vadd.f32 0.0, %v1205
    %v1207 = vpop.f32.mrf.mxu0
    %v1208 = vadd.f32 0.0, %v1207
    %1209 = vmatmul.bf16.gmra.mxu0 %v1121
    %v1210 = vpop.f32.mrf.mxu0
    %v1211 = vadd.f32 0.0, %v1210
    %v1212 = vpop.f32.mrf.mxu0
    %v1213 = vadd.f32 0.0, %v1212
    %1214 = vmatmul.bf16.gmra.mxu0 %v1122
    %v1215 = vpop.f32.mrf.mxu0
    %v1216 = vadd.f32 0.0, %v1215
    %v1217 = vpop.f32.mrf.mxu0
    %v1218 = vadd.f32 0.0, %v1217
    %1219 = vmatmul.bf16.gmra.mxu0 %v1123
    %v1220 = vpop.f32.mrf.mxu0
    %v1221 = vadd.f32 0.0, %v1220
    %v1222 = vpop.f32.mrf.mxu0
    %v1223 = vadd.f32 0.0, %v1222
    %1224 = vmatmul.bf16.gmra.mxu0 %v1124
    %v1225 = vpop.f32.mrf.mxu0
    %v1226 = vadd.f32 0.0, %v1225
    %v1227 = vpop.f32.mrf.mxu0
    %v1228 = vadd.f32 0.0, %v1227
    %1229 = vdwg.mxu0
    %v1246 = vunpack.c.l.b16 %v810
    %v1247 = vunpack.c.l.b16 %v811
    %v1248 = vunpack.c.l.b16 %v812
    %v1249 = vunpack.c.l.b16 %v813
    %v1250 = vunpack.c.l.b16 %v814
    %v1251 = vunpack.c.l.b16 %v815
    %v1252 = vunpack.c.l.b16 %v816
    %v1253 = vunpack.c.l.b16 %v817
    %v1254 = vunpack.c.l.b16 %v818
    %v1255 = vunpack.c.l.b16 %v819
    %v1256 = vunpack.c.l.b16 %v820
    %v1257 = vunpack.c.l.b16 %v821
    %v1258 = vunpack.c.l.b16 %v822
    %v1259 = vunpack.c.l.b16 %v823
    %v1260 = vunpack.c.l.b16 %v824
    %v1261 = vunpack.c.l.b16 %v825
    %v1262 = vpack.c.b16 %v1247, %v1246
    %v1263 = vpack.c.b16 %v1249, %v1248
    %v1264 = vpack.c.b16 %v1251, %v1250
    %v1265 = vpack.c.b16 %v1253, %v1252
    %v1266 = vpack.c.b16 %v1255, %v1254
    %v1267 = vpack.c.b16 %v1257, %v1256
    %v1268 = vpack.c.b16 %v1259, %v1258
    %v1269 = vpack.c.b16 %v1261, %v1260
    %v1294 = vunpack.c.l.b16 %v826
    %v1295 = vunpack.c.l.b16 %v827
    %v1296 = vunpack.c.l.b16 %v828
    %v1297 = vunpack.c.l.b16 %v829
    %v1298 = vunpack.c.l.b16 %v830
    %v1299 = vunpack.c.l.b16 %v831
    %v1300 = vunpack.c.l.b16 %v832
    %v1301 = vunpack.c.l.b16 %v833
    %v1302 = vunpack.c.l.b16 %v834
    %v1303 = vunpack.c.l.b16 %v835
    %v1304 = vunpack.c.l.b16 %v836
    %v1305 = vunpack.c.l.b16 %v837
    %v1306 = vunpack.c.l.b16 %v838
    %v1307 = vunpack.c.l.b16 %v839
    %v1308 = vunpack.c.l.b16 %v840
    %v1309 = vunpack.c.l.b16 %v841
    %v1310 = vpack.c.b16 %v1295, %v1294
    %v1311 = vpack.c.b16 %v1297, %v1296
    %v1312 = vpack.c.b16 %v1299, %v1298
    %v1313 = vpack.c.b16 %v1301, %v1300
    %v1314 = vpack.c.b16 %v1303, %v1302
    %v1315 = vpack.c.b16 %v1305, %v1304
    %v1316 = vpack.c.b16 %v1307, %v1306
    %v1317 = vpack.c.b16 %v1309, %v1308
    %1326 = vmatpush.bf16.msra.mxu0 %v1317
    %1327 = vmatpush.bf16.msra.mxu0 %v1316
    %1328 = vmatpush.bf16.msra.mxu0 %v1315
    %1329 = vmatpush.bf16.msra.mxu0 %v1314
    %1330 = vmatpush.bf16.msra.mxu0 %v1313
    %1331 = vmatpush.bf16.msra.mxu0 %v1312
    %1332 = vmatpush.bf16.msra.mxu0 %v1311
    %1333 = vmatpush.bf16.msra.mxu0 %v1310
    %1334 = vmatmul.bf16.gmra.mxu0 %v1262
    %v1335 = vpop.f32.mrf.mxu0
    %v1336 = vadd.f32 %v1191, %v1335
    %v1337 = vpop.f32.mrf.mxu0
    %v1338 = vadd.f32 %v1193, %v1337
    %1339 = vmatmul.bf16.gmra.mxu0 %v1263
    %v1340 = vpop.f32.mrf.mxu0
    %v1341 = vadd.f32 %v1196, %v1340
    %v1342 = vpop.f32.mrf.mxu0
    %v1343 = vadd.f32 %v1198, %v1342
    %1344 = vmatmul.bf16.gmra.mxu0 %v1264
    %v1345 = vpop.f32.mrf.mxu0
    %v1346 = vadd.f32 %v1201, %v1345
    %v1347 = vpop.f32.mrf.mxu0
    %v1348 = vadd.f32 %v1203, %v1347
    %1349 = vmatmul.bf16.gmra.mxu0 %v1265
    %v1350 = vpop.f32.mrf.mxu0
    %v1351 = vadd.f32 %v1206, %v1350
    %v1352 = vpop.f32.mrf.mxu0
    %v1353 = vadd.f32 %v1208, %v1352
    %1354 = vmatmul.bf16.gmra.mxu0 %v1266
    %v1355 = vpop.f32.mrf.mxu0
    %v1356 = vadd.f32 %v1211, %v1355
    %v1357 = vpop.f32.mrf.mxu0
    %v1358 = vadd.f32 %v1213, %v1357
    %1359 = vmatmul.bf16.gmra.mxu0 %v1267
    %v1360 = vpop.f32.mrf.mxu0
    %v1361 = vadd.f32 %v1216, %v1360
    %v1362 = vpop.f32.mrf.mxu0
    %v1363 = vadd.f32 %v1218, %v1362
    %1364 = vmatmul.bf16.gmra.mxu0 %v1268
    %v1365 = vpop.f32.mrf.mxu0
    %v1366 = vadd.f32 %v1221, %v1365
    %v1367 = vpop.f32.mrf.mxu0
    %v1368 = vadd.f32 %v1223, %v1367
    %1369 = vmatmul.bf16.gmra.mxu0 %v1269
    %v1370 = vpop.f32.mrf.mxu0
    %v1371 = vadd.f32 %v1226, %v1370
    %v1372 = vpop.f32.mrf.mxu0
    %v1373 = vadd.f32 %v1228, %v1372
    %1374 = vdwg.mxu0
    %v1375 = vld [vmem:[#allocation2] sm:$0xe]
    %v1376 = vld [vmem:[#allocation2 + $0x8] sm:$0xe]
    %v1377 = vld [vmem:[#allocation2 + $0x10] sm:$0xe]
    %v1378 = vld [vmem:[#allocation2 + $0x18] sm:$0xe]
    %v1379 = vld [vmem:[#allocation2 + $0x20] sm:$0xe]
    %v1380 = vld [vmem:[#allocation2 + $0x28] sm:$0xe]
    %v1381 = vld [vmem:[#allocation2 + $0x30] sm:$0xe]
    %v1382 = vld [vmem:[#allocation2 + $0x38] sm:$0xe]
    %v1383 = vld [vmem:[#allocation2 + $0x50] sm:$0xe]
    %v1384 = vld [vmem:[#allocation2 + $0x58] sm:$0xe]
    %v1385 = vld [vmem:[#allocation2 + $0x60] sm:$0xe]
    %v1386 = vld [vmem:[#allocation2 + $0x68] sm:$0xe]
    %v1387 = vld [vmem:[#allocation2 + $0x70] sm:$0xe]
    %v1388 = vld [vmem:[#allocation2 + $0x78] sm:$0xe]
    %v1389 = vld [vmem:[#allocation2 + $0x80] sm:$0xe]
    %v1390 = vld [vmem:[#allocation2 + $0x88] sm:$0xe]
    %vm1423 = vcmask 1042432
    %vm1424 = vcmask 1046532
    %vm1425 = vmor %vm1423, %vm1424
    %v1426 = vrot.slane %v1375, 5
    %v1427 = vrot.slane %v1426, 4
    %v1428 = vrot.slane %v842, 5
    %v1429 = vsel %vm1425, %v1427, %v1428
    %v1430 = vrot.slane %v1376, 5
    %v1431 = vrot.slane %v1430, 4
    %v1432 = vrot.slane %v843, 5
    %v1433 = vsel %vm1425, %v1431, %v1432
    %v1434 = vrot.slane %v1377, 5
    %v1435 = vrot.slane %v1434, 4
    %v1436 = vrot.slane %v844, 5
    %v1437 = vsel %vm1425, %v1435, %v1436
    %v1438 = vrot.slane %v1378, 5
    %v1439 = vrot.slane %v1438, 4
    %v1440 = vrot.slane %v845, 5
    %v1441 = vsel %vm1425, %v1439, %v1440
    %v1442 = vrot.slane %v1379, 5
    %v1443 = vrot.slane %v1442, 4
    %v1444 = vrot.slane %v846, 5
    %v1445 = vsel %vm1425, %v1443, %v1444
    %v1446 = vrot.slane %v1380, 5
    %v1447 = vrot.slane %v1446, 4
    %v1448 = vrot.slane %v847, 5
    %v1449 = vsel %vm1425, %v1447, %v1448
    %v1450 = vrot.slane %v1381, 5
    %v1451 = vrot.slane %v1450, 4
    %v1452 = vrot.slane %v848, 5
    %v1453 = vsel %vm1425, %v1451, %v1452
    %v1454 = vrot.slane %v1382, 5
    %v1455 = vrot.slane %v1454, 4
    %v1456 = vrot.slane %v849, 5
    %v1457 = vsel %vm1425, %v1455, %v1456
    %v1458 = vrot.slane %v1383, 5
    %v1459 = vrot.slane %v1458, 4
    %v1460 = vrot.slane %v850, 5
    %v1461 = vsel %vm1425, %v1459, %v1460
    %v1462 = vrot.slane %v1384, 5
    %v1463 = vrot.slane %v1462, 4
    %v1464 = vrot.slane %v851, 5
    %v1465 = vsel %vm1425, %v1463, %v1464
    %v1466 = vrot.slane %v1385, 5
    %v1467 = vrot.slane %v1466, 4
    %v1468 = vrot.slane %v852, 5
    %v1469 = vsel %vm1425, %v1467, %v1468
    %v1470 = vrot.slane %v1386, 5
    %v1471 = vrot.slane %v1470, 4
    %v1472 = vrot.slane %v853, 5
    %v1473 = vsel %vm1425, %v1471, %v1472
    %v1474 = vrot.slane %v1387, 5
    %v1475 = vrot.slane %v1474, 4
    %v1476 = vrot.slane %v854, 5
    %v1477 = vsel %vm1425, %v1475, %v1476
    %v1478 = vrot.slane %v1388, 5
    %v1479 = vrot.slane %v1478, 4
    %v1480 = vrot.slane %v855, 5
    %v1481 = vsel %vm1425, %v1479, %v1480
    %v1482 = vrot.slane %v1389, 5
    %v1483 = vrot.slane %v1482, 4
    %v1484 = vrot.slane %v856, 5
    %v1485 = vsel %vm1425, %v1483, %v1484
    %v1486 = vrot.slane %v1390, 5
    %v1487 = vrot.slane %v1486, 4
    %v1488 = vrot.slane %v857, 5
    %v1489 = vsel %vm1425, %v1487, %v1488
    %v1490 = vld [vmem:[#allocation7 + $0x80] sm:$0xf]
    %v1491 = vld [vmem:[#allocation7 + $0x84] sm:$0xf]
    %v1492 = vld [vmem:[#allocation7 + $0x88] sm:$0xf]
    %v1493 = vld [vmem:[#allocation7 + $0x8c] sm:$0xf]
    %v1494 = vld [vmem:[#allocation7 + $0x90] sm:$0xf]
    %v1495 = vld [vmem:[#allocation7 + $0x94] sm:$0xf]
    %v1496 = vld [vmem:[#allocation7 + $0x98] sm:$0xf]
    %v1497 = vld [vmem:[#allocation7 + $0x9c] sm:$0xf]
    %v1498 = vld [vmem:[#allocation7 + $0xa0] sm:$0xf]
    %v1499 = vld [vmem:[#allocation7 + $0xa4] sm:$0xf]
    %v1500 = vld [vmem:[#allocation7 + $0xa8] sm:$0xf]
    %v1501 = vld [vmem:[#allocation7 + $0xac] sm:$0xf]
    %v1502 = vld [vmem:[#allocation7 + $0xb0] sm:$0xf]
    %v1503 = vld [vmem:[#allocation7 + $0xb4] sm:$0xf]
    %v1504 = vld [vmem:[#allocation7 + $0xb8] sm:$0xf]
    %v1505 = vld [vmem:[#allocation7 + $0xbc] sm:$0xf]
    %v1506 = vunpack.c.l.b16 %v1429
    %v1507 = vunpack.c.l.b16 %v1433
    %v1508 = vunpack.c.l.b16 %v1437
    %v1509 = vunpack.c.l.b16 %v1441
    %v1510 = vunpack.c.l.b16 %v1445
    %v1511 = vunpack.c.l.b16 %v1449
    %v1512 = vunpack.c.l.b16 %v1453
    %v1513 = vunpack.c.l.b16 %v1457
    %v1514 = vunpack.c.l.b16 %v1461
    %v1515 = vunpack.c.l.b16 %v1465
    %v1516 = vunpack.c.l.b16 %v1469
    %v1517 = vunpack.c.l.b16 %v1473
    %v1518 = vunpack.c.l.b16 %v1477
    %v1519 = vunpack.c.l.b16 %v1481
    %v1520 = vunpack.c.l.b16 %v1485
    %v1521 = vunpack.c.l.b16 %v1489
    %v1522 = vpack.c.b16 %v1507, %v1506
    %v1523 = vpack.c.b16 %v1509, %v1508
    %v1524 = vpack.c.b16 %v1511, %v1510
    %v1525 = vpack.c.b16 %v1513, %v1512
    %v1526 = vpack.c.b16 %v1515, %v1514
    %v1527 = vpack.c.b16 %v1517, %v1516
    %v1528 = vpack.c.b16 %v1519, %v1518
    %v1529 = vpack.c.b16 %v1521, %v1520
    %v1554 = vunpack.c.l.b16 %v1490
    %v1555 = vunpack.c.l.b16 %v1491
    %v1556 = vunpack.c.l.b16 %v1492
    %v1557 = vunpack.c.l.b16 %v1493
    %v1558 = vunpack.c.l.b16 %v1494
    %v1559 = vunpack.c.l.b16 %v1495
    %v1560 = vunpack.c.l.b16 %v1496
    %v1561 = vunpack.c.l.b16 %v1497
    %v1562 = vunpack.c.l.b16 %v1498
    %v1563 = vunpack.c.l.b16 %v1499
    %v1564 = vunpack.c.l.b16 %v1500
    %v1565 = vunpack.c.l.b16 %v1501
    %v1566 = vunpack.c.l.b16 %v1502
    %v1567 = vunpack.c.l.b16 %v1503
    %v1568 = vunpack.c.l.b16 %v1504
    %v1569 = vunpack.c.l.b16 %v1505
    %v1570 = vpack.c.b16 %v1555, %v1554
    %v1571 = vpack.c.b16 %v1557, %v1556
    %v1572 = vpack.c.b16 %v1559, %v1558
    %v1573 = vpack.c.b16 %v1561, %v1560
    %v1574 = vpack.c.b16 %v1563, %v1562
    %v1575 = vpack.c.b16 %v1565, %v1564
    %v1576 = vpack.c.b16 %v1567, %v1566
    %v1577 = vpack.c.b16 %v1569, %v1568
    %1586 = vmatpush.bf16.msra.mxu0 %v1577
    %1587 = vmatpush.bf16.msra.mxu0 %v1576
    %1588 = vmatpush.bf16.msra.mxu0 %v1575
    %1589 = vmatpush.bf16.msra.mxu0 %v1574
    %1590 = vmatpush.bf16.msra.mxu0 %v1573
    %1591 = vmatpush.bf16.msra.mxu0 %v1572
    %1592 = vmatpush.bf16.msra.mxu0 %v1571
    %1593 = vmatpush.bf16.msra.mxu0 %v1570
    %1594 = vmatmul.bf16.gmra.mxu0 %v1522
    %v1595 = vpop.f32.mrf.mxu0
    %v1596 = vadd.f32 0.0, %v1595
    %v1597 = vpop.f32.mrf.mxu0
    %v1598 = vadd.f32 0.0, %v1597
    %1599 = vmatmul.bf16.gmra.mxu0 %v1523
    %v1600 = vpop.f32.mrf.mxu0
    %v1601 = vadd.f32 0.0, %v1600
    %v1602 = vpop.f32.mrf.mxu0
    %v1603 = vadd.f32 0.0, %v1602
    %1604 = vmatmul.bf16.gmra.mxu0 %v1524
    %v1605 = vpop.f32.mrf.mxu0
    %v1606 = vadd.f32 0.0, %v1605
    %v1607 = vpop.f32.mrf.mxu0
    %v1608 = vadd.f32 0.0, %v1607
    %1609 = vmatmul.bf16.gmra.mxu0 %v1525
    %v1610 = vpop.f32.mrf.mxu0
    %v1611 = vadd.f32 0.0, %v1610
    %v1612 = vpop.f32.mrf.mxu0
    %v1613 = vadd.f32 0.0, %v1612
    %1614 = vmatmul.bf16.gmra.mxu0 %v1526
    %v1615 = vpop.f32.mrf.mxu0
    %v1616 = vadd.f32 0.0, %v1615
    %v1617 = vpop.f32.mrf.mxu0
    %v1618 = vadd.f32 0.0, %v1617
    %1619 = vmatmul.bf16.gmra.mxu0 %v1527
    %v1620 = vpop.f32.mrf.mxu0
    %v1621 = vadd.f32 0.0, %v1620
    %v1622 = vpop.f32.mrf.mxu0
    %v1623 = vadd.f32 0.0, %v1622
    %1624 = vmatmul.bf16.gmra.mxu0 %v1528
    %v1625 = vpop.f32.mrf.mxu0
    %v1626 = vadd.f32 0.0, %v1625
    %v1627 = vpop.f32.mrf.mxu0
    %v1628 = vadd.f32 0.0, %v1627
    %1629 = vmatmul.bf16.gmra.mxu0 %v1529
    %v1630 = vpop.f32.mrf.mxu0
    %v1631 = vadd.f32 0.0, %v1630
    %v1632 = vpop.f32.mrf.mxu0
    %v1633 = vadd.f32 0.0, %v1632
    %1634 = vdwg.mxu0
    %v1635 = vadd.f32 %v1336, %v1596
    %v1636 = vadd.f32 %v1338, %v1598
    %v1637 = vadd.f32 %v1341, %v1601
    %v1638 = vadd.f32 %v1343, %v1603
    %v1639 = vadd.f32 %v1346, %v1606
    %v1640 = vadd.f32 %v1348, %v1608
    %v1641 = vadd.f32 %v1351, %v1611
    %v1642 = vadd.f32 %v1353, %v1613
    %v1643 = vadd.f32 %v1356, %v1616
    %v1644 = vadd.f32 %v1358, %v1618
    %v1645 = vadd.f32 %v1361, %v1621
    %v1646 = vadd.f32 %v1363, %v1623
    %v1647 = vadd.f32 %v1366, %v1626
    %v1648 = vadd.f32 %v1368, %v1628
    %v1649 = vadd.f32 %v1371, %v1631
    %v1650 = vadd.f32 %v1373, %v1633
    %v1651 = vld [vmem:[%s707] sm:$0xf]
    %v1652 = vld [vmem:[%s707 + $0x8] sm:$0xf]
    %v1653 = vld [vmem:[%s707 + $0x10] sm:$0xf]
    %v1654 = vld [vmem:[%s707 + $0x18] sm:$0xf]
    %v1655 = vld [vmem:[%s707 + $0x20] sm:$0xf]
    %v1656 = vld [vmem:[%s707 + $0x28] sm:$0xf]
    %v1657 = vld [vmem:[%s707 + $0x30] sm:$0xf]
    %v1658 = vld [vmem:[%s707 + $0x38] sm:$0xf]
    %v1659 = vld [vmem:[%s707 + $0x50] sm:$0xf]
    %v1660 = vld [vmem:[%s707 + $0x58] sm:$0xf]
    %v1661 = vld [vmem:[%s707 + $0x60] sm:$0xf]
    %v1662 = vld [vmem:[%s707 + $0x68] sm:$0xf]
    %v1663 = vld [vmem:[%s707 + $0x70] sm:$0xf]
    %v1664 = vld [vmem:[%s707 + $0x78] sm:$0xf]
    %v1665 = vld [vmem:[%s707 + $0x80] sm:$0xf]
    %v1666 = vld [vmem:[%s707 + $0x88] sm:$0xf]
    %v1667 = vld [vmem:[#allocation7 + $0xc0] sm:$0xf]
    %v1668 = vld [vmem:[#allocation7 + $0xc4] sm:$0xf]
    %v1669 = vld [vmem:[#allocation7 + $0xc8] sm:$0xf]
    %v1670 = vld [vmem:[#allocation7 + $0xcc] sm:$0xf]
    %v1671 = vld [vmem:[#allocation7 + $0xd0] sm:$0xf]
    %v1672 = vld [vmem:[#allocation7 + $0xd4] sm:$0xf]
    %v1673 = vld [vmem:[#allocation7 + $0xd8] sm:$0xf]
    %v1674 = vld [vmem:[#allocation7 + $0xdc] sm:$0xf]
    %v1675 = vld [vmem:[#allocation7 + $0xe0] sm:$0xf]
    %v1676 = vld [vmem:[#allocation7 + $0xe4] sm:$0xf]
    %v1677 = vld [vmem:[#allocation7 + $0xe8] sm:$0xf]
    %v1678 = vld [vmem:[#allocation7 + $0xec] sm:$0xf]
    %v1679 = vld [vmem:[#allocation7 + $0xf0] sm:$0xf]
    %v1680 = vld [vmem:[#allocation7 + $0xf4] sm:$0xf]
    %v1681 = vld [vmem:[#allocation7 + $0xf8] sm:$0xf]
    %v1682 = vld [vmem:[#allocation7 + $0xfc] sm:$0xf]
    %v1699 = vunpack.c.l.b16 %v1651
    %v1700 = vunpack.c.l.b16 %v1652
    %v1701 = vunpack.c.l.b16 %v1653
    %v1702 = vunpack.c.l.b16 %v1654
    %v1703 = vunpack.c.l.b16 %v1655
    %v1704 = vunpack.c.l.b16 %v1656
    %v1705 = vunpack.c.l.b16 %v1657
    %v1706 = vunpack.c.l.b16 %v1658
    %v1707 = vunpack.c.l.b16 %v1659
    %v1708 = vunpack.c.l.b16 %v1660
    %v1709 = vunpack.c.l.b16 %v1661
    %v1710 = vunpack.c.l.b16 %v1662
    %v1711 = vunpack.c.l.b16 %v1663
    %v1712 = vunpack.c.l.b16 %v1664
    %v1713 = vunpack.c.l.b16 %v1665
    %v1714 = vunpack.c.l.b16 %v1666
    %v1715 = vpack.c.b16 %v1700, %v1699
    %v1716 = vpack.c.b16 %v1702, %v1701
    %v1717 = vpack.c.b16 %v1704, %v1703
    %v1718 = vpack.c.b16 %v1706, %v1705
    %v1719 = vpack.c.b16 %v1708, %v1707
    %v1720 = vpack.c.b16 %v1710, %v1709
    %v1721 = vpack.c.b16 %v1712, %v1711
    %v1722 = vpack.c.b16 %v1714, %v1713
    %v1747 = vunpack.c.l.b16 %v1667
    %v1748 = vunpack.c.l.b16 %v1668
    %v1749 = vunpack.c.l.b16 %v1669
    %v1750 = vunpack.c.l.b16 %v1670
    %v1751 = vunpack.c.l.b16 %v1671
    %v1752 = vunpack.c.l.b16 %v1672
    %v1753 = vunpack.c.l.b16 %v1673
    %v1754 = vunpack.c.l.b16 %v1674
    %v1755 = vunpack.c.l.b16 %v1675
    %v1756 = vunpack.c.l.b16 %v1676
    %v1757 = vunpack.c.l.b16 %v1677
    %v1758 = vunpack.c.l.b16 %v1678
    %v1759 = vunpack.c.l.b16 %v1679
    %v1760 = vunpack.c.l.b16 %v1680
    %v1761 = vunpack.c.l.b16 %v1681
    %v1762 = vunpack.c.l.b16 %v1682
    %v1763 = vpack.c.b16 %v1748, %v1747
    %v1764 = vpack.c.b16 %v1750, %v1749
    %v1765 = vpack.c.b16 %v1752, %v1751
    %v1766 = vpack.c.b16 %v1754, %v1753
    %v1767 = vpack.c.b16 %v1756, %v1755
    %v1768 = vpack.c.b16 %v1758, %v1757
    %v1769 = vpack.c.b16 %v1760, %v1759
    %v1770 = vpack.c.b16 %v1762, %v1761
    %1779 = vmatpush.bf16.msra.mxu0 %v1770
    %1780 = vmatpush.bf16.msra.mxu0 %v1769
    %1781 = vmatpush.bf16.msra.mxu0 %v1768
    %1782 = vmatpush.bf16.msra.mxu0 %v1767
    %1783 = vmatpush.bf16.msra.mxu0 %v1766
    %1784 = vmatpush.bf16.msra.mxu0 %v1765
    %1785 = vmatpush.bf16.msra.mxu0 %v1764
    %1786 = vmatpush.bf16.msra.mxu0 %v1763
    %1787 = vmatmul.bf16.gmra.mxu0 %v1715
    %v1788 = vpop.f32.mrf.mxu0
    %v1789 = vadd.f32 0.0, %v1788
    %v1790 = vpop.f32.mrf.mxu0
    %v1791 = vadd.f32 0.0, %v1790
    %1792 = vmatmul.bf16.gmra.mxu0 %v1716
    %v1793 = vpop.f32.mrf.mxu0
    %v1794 = vadd.f32 0.0, %v1793
    %v1795 = vpop.f32.mrf.mxu0
    %v1796 = vadd.f32 0.0, %v1795
    %1797 = vmatmul.bf16.gmra.mxu0 %v1717
    %v1798 = vpop.f32.mrf.mxu0
    %v1799 = vadd.f32 0.0, %v1798
    %v1800 = vpop.f32.mrf.mxu0
    %v1801 = vadd.f32 0.0, %v1800
    %1802 = vmatmul.bf16.gmra.mxu0 %v1718
    %v1803 = vpop.f32.mrf.mxu0
    %v1804 = vadd.f32 0.0, %v1803
    %v1805 = vpop.f32.mrf.mxu0
    %v1806 = vadd.f32 0.0, %v1805
    %1807 = vmatmul.bf16.gmra.mxu0 %v1719
    %v1808 = vpop.f32.mrf.mxu0
    %v1809 = vadd.f32 0.0, %v1808
    %v1810 = vpop.f32.mrf.mxu0
    %v1811 = vadd.f32 0.0, %v1810
    %1812 = vmatmul.bf16.gmra.mxu0 %v1720
    %v1813 = vpop.f32.mrf.mxu0
    %v1814 = vadd.f32 0.0, %v1813
    %v1815 = vpop.f32.mrf.mxu0
    %v1816 = vadd.f32 0.0, %v1815
    %1817 = vmatmul.bf16.gmra.mxu0 %v1721
    %v1818 = vpop.f32.mrf.mxu0
    %v1819 = vadd.f32 0.0, %v1818
    %v1820 = vpop.f32.mrf.mxu0
    %v1821 = vadd.f32 0.0, %v1820
    %1822 = vmatmul.bf16.gmra.mxu0 %v1722
    %v1823 = vpop.f32.mrf.mxu0
    %v1824 = vadd.f32 0.0, %v1823
    %v1825 = vpop.f32.mrf.mxu0
    %v1826 = vadd.f32 0.0, %v1825
    %1827 = vdwg.mxu0
    %v1828 = vadd.f32 %v1635, %v1789
    %v1829 = vadd.f32 %v1636, %v1791
    %v1830 = vadd.f32 %v1637, %v1794
    %v1831 = vadd.f32 %v1638, %v1796
    %v1832 = vadd.f32 %v1639, %v1799
    %v1833 = vadd.f32 %v1640, %v1801
    %v1834 = vadd.f32 %v1641, %v1804
    %v1835 = vadd.f32 %v1642, %v1806
    %v1836 = vadd.f32 %v1643, %v1809
    %v1837 = vadd.f32 %v1644, %v1811
    %v1838 = vadd.f32 %v1645, %v1814
    %v1839 = vadd.f32 %v1646, %v1816
    %v1840 = vadd.f32 %v1647, %v1819
    %v1841 = vadd.f32 %v1648, %v1821
    %v1842 = vadd.f32 %v1649, %v1824
    %v1843 = vadd.f32 %v1650, %v1826
    %v1844 = vld [vmem:[%s707] sm:$0xf]
    %v1845 = vld [vmem:[%s707 + $0x4] sm:$0x1]
    %v1846 = vld [vmem:[%s707 + $0x8] sm:$0xf]
    %v1847 = vld [vmem:[%s707 + $0xc] sm:$0x1]
    %v1848 = vld [vmem:[%s707 + $0x10] sm:$0xf]
    %v1849 = vld [vmem:[%s707 + $0x14] sm:$0x1]
    %v1850 = vld [vmem:[%s707 + $0x18] sm:$0xf]
    %v1851 = vld [vmem:[%s707 + $0x1c] sm:$0x1]
    %v1852 = vld [vmem:[%s707 + $0x20] sm:$0xf]
    %v1853 = vld [vmem:[%s707 + $0x24] sm:$0x1]
    %v1854 = vld [vmem:[%s707 + $0x28] sm:$0xf]
    %v1855 = vld [vmem:[%s707 + $0x2c] sm:$0x1]
    %v1856 = vld [vmem:[%s707 + $0x30] sm:$0xf]
    %v1857 = vld [vmem:[%s707 + $0x34] sm:$0x1]
    %v1858 = vld [vmem:[%s707 + $0x38] sm:$0xf]
    %v1859 = vld [vmem:[%s707 + $0x3c] sm:$0x1]
    %v1860 = vld [vmem:[%s707 + $0x50] sm:$0xf]
    %v1861 = vld [vmem:[%s707 + $0x54] sm:$0x1]
    %v1862 = vld [vmem:[%s707 + $0x58] sm:$0xf]
    %v1863 = vld [vmem:[%s707 + $0x5c] sm:$0x1]
    %v1864 = vld [vmem:[%s707 + $0x60] sm:$0xf]
    %v1865 = vld [vmem:[%s707 + $0x64] sm:$0x1]
    %v1866 = vld [vmem:[%s707 + $0x68] sm:$0xf]
    %v1867 = vld [vmem:[%s707 + $0x6c] sm:$0x1]
    %v1868 = vld [vmem:[%s707 + $0x70] sm:$0xf]
    %v1869 = vld [vmem:[%s707 + $0x74] sm:$0x1]
    %v1870 = vld [vmem:[%s707 + $0x78] sm:$0xf]
    %v1871 = vld [vmem:[%s707 + $0x7c] sm:$0x1]
    %v1872 = vld [vmem:[%s707 + $0x80] sm:$0xf]
    %v1873 = vld [vmem:[%s707 + $0x84] sm:$0x1]
    %v1874 = vld [vmem:[%s707 + $0x88] sm:$0xf]
    %v1875 = vld [vmem:[%s707 + $0x8c] sm:$0x1]
    %v1877 = vshrl.u32 %v1844, 16
    %v1879 = vrot.slane %v1877, 4
    %v1880 = vshll.u32 %v1844, 16
    %v1882 = vrot.slane %v1880, 5
    %v1883 = vor.u32 %v1879, %v1882
    %v1884 = vrot.slane %v1883, 4
    %v1886 = vshll.u32 %v1845, 16
    %v1888 = vrot.slane %v1886, 5
    %v1889 = vsel %vm860, %v1884, %v1888
    %v1891 = vshrl.u32 %v1846, 16
    %v1893 = vrot.slane %v1891, 4
    %v1894 = vshll.u32 %v1846, 16
    %v1896 = vrot.slane %v1894, 5
    %v1897 = vor.u32 %v1893, %v1896
    %v1898 = vrot.slane %v1897, 4
    %v1900 = vshll.u32 %v1847, 16
    %v1902 = vrot.slane %v1900, 5
    %v1903 = vsel %vm860, %v1898, %v1902
    %v1905 = vshrl.u32 %v1848, 16
    %v1907 = vrot.slane %v1905, 4
    %v1908 = vshll.u32 %v1848, 16
    %v1910 = vrot.slane %v1908, 5
    %v1911 = vor.u32 %v1907, %v1910
    %v1912 = vrot.slane %v1911, 4
    %v1914 = vshll.u32 %v1849, 16
    %v1916 = vrot.slane %v1914, 5
    %v1917 = vsel %vm860, %v1912, %v1916
    %v1919 = vshrl.u32 %v1850, 16
    %v1921 = vrot.slane %v1919, 4
    %v1922 = vshll.u32 %v1850, 16
    %v1924 = vrot.slane %v1922, 5
    %v1925 = vor.u32 %v1921, %v1924
    %v1926 = vrot.slane %v1925, 4
    %v1928 = vshll.u32 %v1851, 16
    %v1930 = vrot.slane %v1928, 5
    %v1931 = vsel %vm860, %v1926, %v1930
    %v1933 = vshrl.u32 %v1852, 16
    %v1935 = vrot.slane %v1933, 4
    %v1936 = vshll.u32 %v1852, 16
    %v1938 = vrot.slane %v1936, 5
    %v1939 = vor.u32 %v1935, %v1938
    %v1940 = vrot.slane %v1939, 4
    %v1942 = vshll.u32 %v1853, 16
    %v1944 = vrot.slane %v1942, 5
    %v1945 = vsel %vm860, %v1940, %v1944
    %v1947 = vshrl.u32 %v1854, 16
    %v1949 = vrot.slane %v1947, 4
    %v1950 = vshll.u32 %v1854, 16
    %v1952 = vrot.slane %v1950, 5
    %v1953 = vor.u32 %v1949, %v1952
    %v1954 = vrot.slane %v1953, 4
    %v1956 = vshll.u32 %v1855, 16
    %v1958 = vrot.slane %v1956, 5
    %v1959 = vsel %vm860, %v1954, %v1958
    %v1961 = vshrl.u32 %v1856, 16
    %v1963 = vrot.slane %v1961, 4
    %v1964 = vshll.u32 %v1856, 16
    %v1966 = vrot.slane %v1964, 5
    %v1967 = vor.u32 %v1963, %v1966
    %v1968 = vrot.slane %v1967, 4
    %v1970 = vshll.u32 %v1857, 16
    %v1972 = vrot.slane %v1970, 5
    %v1973 = vsel %vm860, %v1968, %v1972
    %v1975 = vshrl.u32 %v1858, 16
    %v1977 = vrot.slane %v1975, 4
    %v1978 = vshll.u32 %v1858, 16
    %v1980 = vrot.slane %v1978, 5
    %v1981 = vor.u32 %v1977, %v1980
    %v1982 = vrot.slane %v1981, 4
    %v1984 = vshll.u32 %v1859, 16
    %v1986 = vrot.slane %v1984, 5
    %v1987 = vsel %vm860, %v1982, %v1986
    %v1989 = vshrl.u32 %v1860, 16
    %v1991 = vrot.slane %v1989, 4
    %v1992 = vshll.u32 %v1860, 16
    %v1994 = vrot.slane %v1992, 5
    %v1995 = vor.u32 %v1991, %v1994
    %v1996 = vrot.slane %v1995, 4
    %v1998 = vshll.u32 %v1861, 16
    %v2000 = vrot.slane %v1998, 5
    %v2001 = vsel %vm860, %v1996, %v2000
    %v2003 = vshrl.u32 %v1862, 16
    %v2005 = vrot.slane %v2003, 4
    %v2006 = vshll.u32 %v1862, 16
    %v2008 = vrot.slane %v2006, 5
    %v2009 = vor.u32 %v2005, %v2008
    %v2010 = vrot.slane %v2009, 4
    %v2012 = vshll.u32 %v1863, 16
    %v2014 = vrot.slane %v2012, 5
    %v2015 = vsel %vm860, %v2010, %v2014
    %v2017 = vshrl.u32 %v1864, 16
    %v2019 = vrot.slane %v2017, 4
    %v2020 = vshll.u32 %v1864, 16
    %v2022 = vrot.slane %v2020, 5
    %v2023 = vor.u32 %v2019, %v2022
    %v2024 = vrot.slane %v2023, 4
    %v2026 = vshll.u32 %v1865, 16
    %v2028 = vrot.slane %v2026, 5
    %v2029 = vsel %vm860, %v2024, %v2028
    %v2031 = vshrl.u32 %v1866, 16
    %v2033 = vrot.slane %v2031, 4
    %v2034 = vshll.u32 %v1866, 16
    %v2036 = vrot.slane %v2034, 5
    %v2037 = vor.u32 %v2033, %v2036
    %v2038 = vrot.slane %v2037, 4
    %v2040 = vshll.u32 %v1867, 16
    %v2042 = vrot.slane %v2040, 5
    %v2043 = vsel %vm860, %v2038, %v2042
    %v2045 = vshrl.u32 %v1868, 16
    %v2047 = vrot.slane %v2045, 4
    %v2048 = vshll.u32 %v1868, 16
    %v2050 = vrot.slane %v2048, 5
    %v2051 = vor.u32 %v2047, %v2050
    %v2052 = vrot.slane %v2051, 4
    %v2054 = vshll.u32 %v1869, 16
    %v2056 = vrot.slane %v2054, 5
    %v2057 = vsel %vm860, %v2052, %v2056
    %v2059 = vshrl.u32 %v1870, 16
    %v2061 = vrot.slane %v2059, 4
    %v2062 = vshll.u32 %v1870, 16
    %v2064 = vrot.slane %v2062, 5
    %v2065 = vor.u32 %v2061, %v2064
    %v2066 = vrot.slane %v2065, 4
    %v2068 = vshll.u32 %v1871, 16
    %v2070 = vrot.slane %v2068, 5
    %v2071 = vsel %vm860, %v2066, %v2070
    %v2073 = vshrl.u32 %v1872, 16
    %v2075 = vrot.slane %v2073, 4
    %v2076 = vshll.u32 %v1872, 16
    %v2078 = vrot.slane %v2076, 5
    %v2079 = vor.u32 %v2075, %v2078
    %v2080 = vrot.slane %v2079, 4
    %v2082 = vshll.u32 %v1873, 16
    %v2084 = vrot.slane %v2082, 5
    %v2085 = vsel %vm860, %v2080, %v2084
    %v2087 = vshrl.u32 %v1874, 16
    %v2089 = vrot.slane %v2087, 4
    %v2090 = vshll.u32 %v1874, 16
    %v2092 = vrot.slane %v2090, 5
    %v2093 = vor.u32 %v2089, %v2092
    %v2094 = vrot.slane %v2093, 4
    %v2096 = vshll.u32 %v1875, 16
    %v2098 = vrot.slane %v2096, 5
    %v2099 = vsel %vm860, %v2094, %v2098
    %v2100 = vld [vmem:[#allocation7 + $0x100] sm:$0xf]
    %v2101 = vld [vmem:[#allocation7 + $0x104] sm:$0xf]
    %v2102 = vld [vmem:[#allocation7 + $0x108] sm:$0xf]
    %v2103 = vld [vmem:[#allocation7 + $0x10c] sm:$0xf]
    %v2104 = vld [vmem:[#allocation7 + $0x110] sm:$0xf]
    %v2105 = vld [vmem:[#allocation7 + $0x114] sm:$0xf]
    %v2106 = vld [vmem:[#allocation7 + $0x118] sm:$0xf]
    %v2107 = vld [vmem:[#allocation7 + $0x11c] sm:$0xf]
    %v2108 = vld [vmem:[#allocation7 + $0x120] sm:$0xf]
    %v2109 = vld [vmem:[#allocation7 + $0x124] sm:$0xf]
    %v2110 = vld [vmem:[#allocation7 + $0x128] sm:$0xf]
    %v2111 = vld [vmem:[#allocation7 + $0x12c] sm:$0xf]
    %v2112 = vld [vmem:[#allocation7 + $0x130] sm:$0xf]
    %v2113 = vld [vmem:[#allocation7 + $0x134] sm:$0xf]
    %v2114 = vld [vmem:[#allocation7 + $0x138] sm:$0xf]
    %v2115 = vld [vmem:[#allocation7 + $0x13c] sm:$0xf]
    %v2116 = vunpack.c.l.b16 %v1889
    %v2117 = vunpack.c.l.b16 %v1903
    %v2118 = vunpack.c.l.b16 %v1917
    %v2119 = vunpack.c.l.b16 %v1931
    %v2120 = vunpack.c.l.b16 %v1945
    %v2121 = vunpack.c.l.b16 %v1959
    %v2122 = vunpack.c.l.b16 %v1973
    %v2123 = vunpack.c.l.b16 %v1987
    %v2124 = vunpack.c.l.b16 %v2001
    %v2125 = vunpack.c.l.b16 %v2015
    %v2126 = vunpack.c.l.b16 %v2029
    %v2127 = vunpack.c.l.b16 %v2043
    %v2128 = vunpack.c.l.b16 %v2057
    %v2129 = vunpack.c.l.b16 %v2071
    %v2130 = vunpack.c.l.b16 %v2085
    %v2131 = vunpack.c.l.b16 %v2099
    %v2132 = vpack.c.b16 %v2117, %v2116
    %v2133 = vpack.c.b16 %v2119, %v2118
    %v2134 = vpack.c.b16 %v2121, %v2120
    %v2135 = vpack.c.b16 %v2123, %v2122
    %v2136 = vpack.c.b16 %v2125, %v2124
    %v2137 = vpack.c.b16 %v2127, %v2126
    %v2138 = vpack.c.b16 %v2129, %v2128
    %v2139 = vpack.c.b16 %v2131, %v2130
    %v2164 = vunpack.c.l.b16 %v2100
    %v2165 = vunpack.c.l.b16 %v2101
    %v2166 = vunpack.c.l.b16 %v2102
    %v2167 = vunpack.c.l.b16 %v2103
    %v2168 = vunpack.c.l.b16 %v2104
    %v2169 = vunpack.c.l.b16 %v2105
    %v2170 = vunpack.c.l.b16 %v2106
    %v2171 = vunpack.c.l.b16 %v2107
    %v2172 = vunpack.c.l.b16 %v2108
    %v2173 = vunpack.c.l.b16 %v2109
    %v2174 = vunpack.c.l.b16 %v2110
    %v2175 = vunpack.c.l.b16 %v2111
    %v2176 = vunpack.c.l.b16 %v2112
    %v2177 = vunpack.c.l.b16 %v2113
    %v2178 = vunpack.c.l.b16 %v2114
    %v2179 = vunpack.c.l.b16 %v2115
    %v2180 = vpack.c.b16 %v2165, %v2164
    %v2181 = vpack.c.b16 %v2167, %v2166
    %v2182 = vpack.c.b16 %v2169, %v2168
    %v2183 = vpack.c.b16 %v2171, %v2170
    %v2184 = vpack.c.b16 %v2173, %v2172
    %v2185 = vpack.c.b16 %v2175, %v2174
    %v2186 = vpack.c.b16 %v2177, %v2176
    %v2187 = vpack.c.b16 %v2179, %v2178
    %2196 = vmatpush.bf16.msra.mxu0 %v2187
    %2197 = vmatpush.bf16.msra.mxu0 %v2186
    %2198 = vmatpush.bf16.msra.mxu0 %v2185
    %2199 = vmatpush.bf16.msra.mxu0 %v2184
    %2200 = vmatpush.bf16.msra.mxu0 %v2183
    %2201 = vmatpush.bf16.msra.mxu0 %v2182
    %2202 = vmatpush.bf16.msra.mxu0 %v2181
    %2203 = vmatpush.bf16.msra.mxu0 %v2180
    %2204 = vmatmul.bf16.gmra.mxu0 %v2132
    %v2205 = vpop.f32.mrf.mxu0
    %v2206 = vadd.f32 0.0, %v2205
    %v2207 = vpop.f32.mrf.mxu0
    %v2208 = vadd.f32 0.0, %v2207
    %2209 = vmatmul.bf16.gmra.mxu0 %v2133
    %v2210 = vpop.f32.mrf.mxu0
    %v2211 = vadd.f32 0.0, %v2210
    %v2212 = vpop.f32.mrf.mxu0
    %v2213 = vadd.f32 0.0, %v2212
    %2214 = vmatmul.bf16.gmra.mxu0 %v2134
    %v2215 = vpop.f32.mrf.mxu0
    %v2216 = vadd.f32 0.0, %v2215
    %v2217 = vpop.f32.mrf.mxu0
    %v2218 = vadd.f32 0.0, %v2217
    %2219 = vmatmul.bf16.gmra.mxu0 %v2135
    %v2220 = vpop.f32.mrf.mxu0
    %v2221 = vadd.f32 0.0, %v2220
    %v2222 = vpop.f32.mrf.mxu0
    %v2223 = vadd.f32 0.0, %v2222
    %2224 = vmatmul.bf16.gmra.mxu0 %v2136
    %v2225 = vpop.f32.mrf.mxu0
    %v2226 = vadd.f32 0.0, %v2225
    %v2227 = vpop.f32.mrf.mxu0
    %v2228 = vadd.f32 0.0, %v2227
    %2229 = vmatmul.bf16.gmra.mxu0 %v2137
    %v2230 = vpop.f32.mrf.mxu0
    %v2231 = vadd.f32 0.0, %v2230
    %v2232 = vpop.f32.mrf.mxu0
    %v2233 = vadd.f32 0.0, %v2232
    %2234 = vmatmul.bf16.gmra.mxu0 %v2138
    %v2235 = vpop.f32.mrf.mxu0
    %v2236 = vadd.f32 0.0, %v2235
    %v2237 = vpop.f32.mrf.mxu0
    %v2238 = vadd.f32 0.0, %v2237
    %2239 = vmatmul.bf16.gmra.mxu0 %v2139
    %v2240 = vpop.f32.mrf.mxu0
    %v2241 = vadd.f32 0.0, %v2240
    %v2242 = vpop.f32.mrf.mxu0
    %v2243 = vadd.f32 0.0, %v2242
    %2244 = vdwg.mxu0
    %v2245 = vadd.f32 %v1828, %v2206
    %v2246 = vadd.f32 %v1829, %v2208
    %v2247 = vadd.f32 %v1830, %v2211
    %v2248 = vadd.f32 %v1831, %v2213
    %v2249 = vadd.f32 %v1832, %v2216
    %v2250 = vadd.f32 %v1833, %v2218
    %v2251 = vadd.f32 %v1834, %v2221
    %v2252 = vadd.f32 %v1835, %v2223
    %v2253 = vadd.f32 %v1836, %v2226
    %v2254 = vadd.f32 %v1837, %v2228
    %v2255 = vadd.f32 %v1838, %v2231
    %v2256 = vadd.f32 %v1839, %v2233
    %v2257 = vadd.f32 %v1840, %v2236
    %v2258 = vadd.f32 %v1841, %v2238
    %v2259 = vadd.f32 %v1842, %v2241
    %v2260 = vadd.f32 %v1843, %v2243
    %v2261 = vld [vmem:[%s707] sm:$0xe]
    %v2262 = vld [vmem:[%s707 + $0x8] sm:$0xe]
    %v2263 = vld [vmem:[%s707 + $0x10] sm:$0xe]
    %v2264 = vld [vmem:[%s707 + $0x18] sm:$0xe]
    %v2265 = vld [vmem:[%s707 + $0x20] sm:$0xe]
    %v2266 = vld [vmem:[%s707 + $0x28] sm:$0xe]
    %v2267 = vld [vmem:[%s707 + $0x30] sm:$0xe]
    %v2268 = vld [vmem:[%s707 + $0x38] sm:$0xe]
    %v2269 = vld [vmem:[%s707 + $0x50] sm:$0xe]
    %v2270 = vld [vmem:[%s707 + $0x58] sm:$0xe]
    %v2271 = vld [vmem:[%s707 + $0x60] sm:$0xe]
    %v2272 = vld [vmem:[%s707 + $0x68] sm:$0xe]
    %v2273 = vld [vmem:[%s707 + $0x70] sm:$0xe]
    %v2274 = vld [vmem:[%s707 + $0x78] sm:$0xe]
    %v2275 = vld [vmem:[%s707 + $0x80] sm:$0xe]
    %v2276 = vld [vmem:[%s707 + $0x88] sm:$0xe]
    %v2309 = vrot.slane %v2261, 5
    %v2310 = vrot.slane %v2309, 4
    %v2311 = vrot.slane %v1845, 5
    %v2312 = vsel %vm1425, %v2310, %v2311
    %v2313 = vrot.slane %v2262, 5
    %v2314 = vrot.slane %v2313, 4
    %v2315 = vrot.slane %v1847, 5
    %v2316 = vsel %vm1425, %v2314, %v2315
    %v2317 = vrot.slane %v2263, 5
    %v2318 = vrot.slane %v2317, 4
    %v2319 = vrot.slane %v1849, 5
    %v2320 = vsel %vm1425, %v2318, %v2319
    %v2321 = vrot.slane %v2264, 5
    %v2322 = vrot.slane %v2321, 4
    %v2323 = vrot.slane %v1851, 5
    %v2324 = vsel %vm1425, %v2322, %v2323
    %v2325 = vrot.slane %v2265, 5
    %v2326 = vrot.slane %v2325, 4
    %v2327 = vrot.slane %v1853, 5
    %v2328 = vsel %vm1425, %v2326, %v2327
    %v2329 = vrot.slane %v2266, 5
    %v2330 = vrot.slane %v2329, 4
    %v2331 = vrot.slane %v1855, 5
    %v2332 = vsel %vm1425, %v2330, %v2331
    %v2333 = vrot.slane %v2267, 5
    %v2334 = vrot.slane %v2333, 4
    %v2335 = vrot.slane %v1857, 5
    %v2336 = vsel %vm1425, %v2334, %v2335
    %v2337 = vrot.slane %v2268, 5
    %v2338 = vrot.slane %v2337, 4
    %v2339 = vrot.slane %v1859, 5
    %v2340 = vsel %vm1425, %v2338, %v2339
    %v2341 = vrot.slane %v2269, 5
    %v2342 = vrot.slane %v2341, 4
    %v2343 = vrot.slane %v1861, 5
    %v2344 = vsel %vm1425, %v2342, %v2343
    %v2345 = vrot.slane %v2270, 5
    %v2346 = vrot.slane %v2345, 4
    %v2347 = vrot.slane %v1863, 5
    %v2348 = vsel %vm1425, %v2346, %v2347
    %v2349 = vrot.slane %v2271, 5
    %v2350 = vrot.slane %v2349, 4
    %v2351 = vrot.slane %v1865, 5
    %v2352 = vsel %vm1425, %v2350, %v2351
    %v2353 = vrot.slane %v2272, 5
    %v2354 = vrot.slane %v2353, 4
    %v2355 = vrot.slane %v1867, 5
    %v2356 = vsel %vm1425, %v2354, %v2355
    %v2357 = vrot.slane %v2273, 5
    %v2358 = vrot.slane %v2357, 4
    %v2359 = vrot.slane %v1869, 5
    %v2360 = vsel %vm1425, %v2358, %v2359
    %v2361 = vrot.slane %v2274, 5
    %v2362 = vrot.slane %v2361, 4
    %v2363 = vrot.slane %v1871, 5
    %v2364 = vsel %vm1425, %v2362, %v2363
    %v2365 = vrot.slane %v2275, 5
    %v2366 = vrot.slane %v2365, 4
    %v2367 = vrot.slane %v1873, 5
    %v2368 = vsel %vm1425, %v2366, %v2367
    %v2369 = vrot.slane %v2276, 5
    %v2370 = vrot.slane %v2369, 4
    %v2371 = vrot.slane %v1875, 5
    %v2372 = vsel %vm1425, %v2370, %v2371
    %v2373 = vld [vmem:[#allocation7 + $0x140] sm:$0xf]
    %v2374 = vld [vmem:[#allocation7 + $0x144] sm:$0xf]
    %v2375 = vld [vmem:[#allocation7 + $0x148] sm:$0xf]
    %v2376 = vld [vmem:[#allocation7 + $0x14c] sm:$0xf]
    %v2377 = vld [vmem:[#allocation7 + $0x150] sm:$0xf]
    %v2378 = vld [vmem:[#allocation7 + $0x154] sm:$0xf]
    %v2379 = vld [vmem:[#allocation7 + $0x158] sm:$0xf]
    %v2380 = vld [vmem:[#allocation7 + $0x15c] sm:$0xf]
    %v2381 = vld [vmem:[#allocation7 + $0x160] sm:$0xf]
    %v2382 = vld [vmem:[#allocation7 + $0x164] sm:$0xf]
    %v2383 = vld [vmem:[#allocation7 + $0x168] sm:$0xf]
    %v2384 = vld [vmem:[#allocation7 + $0x16c] sm:$0xf]
    %v2385 = vld [vmem:[#allocation7 + $0x170] sm:$0xf]
    %v2386 = vld [vmem:[#allocation7 + $0x174] sm:$0xf]
    %v2387 = vld [vmem:[#allocation7 + $0x178] sm:$0xf]
    %v2388 = vld [vmem:[#allocation7 + $0x17c] sm:$0xf]
    %v2389 = vunpack.c.l.b16 %v2312
    %v2390 = vunpack.c.l.b16 %v2316
    %v2391 = vunpack.c.l.b16 %v2320
    %v2392 = vunpack.c.l.b16 %v2324
    %v2393 = vunpack.c.l.b16 %v2328
    %v2394 = vunpack.c.l.b16 %v2332
    %v2395 = vunpack.c.l.b16 %v2336
    %v2396 = vunpack.c.l.b16 %v2340
    %v2397 = vunpack.c.l.b16 %v2344
    %v2398 = vunpack.c.l.b16 %v2348
    %v2399 = vunpack.c.l.b16 %v2352
    %v2400 = vunpack.c.l.b16 %v2356
    %v2401 = vunpack.c.l.b16 %v2360
    %v2402 = vunpack.c.l.b16 %v2364
    %v2403 = vunpack.c.l.b16 %v2368
    %v2404 = vunpack.c.l.b16 %v2372
    %v2405 = vpack.c.b16 %v2390, %v2389
    %v2406 = vpack.c.b16 %v2392, %v2391
    %v2407 = vpack.c.b16 %v2394, %v2393
    %v2408 = vpack.c.b16 %v2396, %v2395
    %v2409 = vpack.c.b16 %v2398, %v2397
    %v2410 = vpack.c.b16 %v2400, %v2399
    %v2411 = vpack.c.b16 %v2402, %v2401
    %v2412 = vpack.c.b16 %v2404, %v2403
    %v2437 = vunpack.c.l.b16 %v2373
    %v2438 = vunpack.c.l.b16 %v2374
    %v2439 = vunpack.c.l.b16 %v2375
    %v2440 = vunpack.c.l.b16 %v2376
    %v2441 = vunpack.c.l.b16 %v2377
    %v2442 = vunpack.c.l.b16 %v2378
    %v2443 = vunpack.c.l.b16 %v2379
    %v2444 = vunpack.c.l.b16 %v2380
    %v2445 = vunpack.c.l.b16 %v2381
    %v2446 = vunpack.c.l.b16 %v2382
    %v2447 = vunpack.c.l.b16 %v2383
    %v2448 = vunpack.c.l.b16 %v2384
    %v2449 = vunpack.c.l.b16 %v2385
    %v2450 = vunpack.c.l.b16 %v2386
    %v2451 = vunpack.c.l.b16 %v2387
    %v2452 = vunpack.c.l.b16 %v2388
    %v2453 = vpack.c.b16 %v2438, %v2437
    %v2454 = vpack.c.b16 %v2440, %v2439
    %v2455 = vpack.c.b16 %v2442, %v2441
    %v2456 = vpack.c.b16 %v2444, %v2443
    %v2457 = vpack.c.b16 %v2446, %v2445
    %v2458 = vpack.c.b16 %v2448, %v2447
    %v2459 = vpack.c.b16 %v2450, %v2449
    %v2460 = vpack.c.b16 %v2452, %v2451
    %2469 = vmatpush.bf16.msra.mxu0 %v2460
    %2470 = vmatpush.bf16.msra.mxu0 %v2459
    %2471 = vmatpush.bf16.msra.mxu0 %v2458
    %2472 = vmatpush.bf16.msra.mxu0 %v2457
    %2473 = vmatpush.bf16.msra.mxu0 %v2456
    %2474 = vmatpush.bf16.msra.mxu0 %v2455
    %2475 = vmatpush.bf16.msra.mxu0 %v2454
    %2476 = vmatpush.bf16.msra.mxu0 %v2453
    %2477 = vmatmul.bf16.gmra.mxu0 %v2405
    %v2478 = vpop.f32.mrf.mxu0
    %v2479 = vadd.f32 0.0, %v2478
    %v2480 = vpop.f32.mrf.mxu0
    %v2481 = vadd.f32 0.0, %v2480
    %2482 = vmatmul.bf16.gmra.mxu0 %v2406
    %v2483 = vpop.f32.mrf.mxu0
    %v2484 = vadd.f32 0.0, %v2483
    %v2485 = vpop.f32.mrf.mxu0
    %v2486 = vadd.f32 0.0, %v2485
    %2487 = vmatmul.bf16.gmra.mxu0 %v2407
    %v2488 = vpop.f32.mrf.mxu0
    %v2489 = vadd.f32 0.0, %v2488
    %v2490 = vpop.f32.mrf.mxu0
    %v2491 = vadd.f32 0.0, %v2490
    %2492 = vmatmul.bf16.gmra.mxu0 %v2408
    %v2493 = vpop.f32.mrf.mxu0
    %v2494 = vadd.f32 0.0, %v2493
    %v2495 = vpop.f32.mrf.mxu0
    %v2496 = vadd.f32 0.0, %v2495
    %2497 = vmatmul.bf16.gmra.mxu0 %v2409
    %v2498 = vpop.f32.mrf.mxu0
    %v2499 = vadd.f32 0.0, %v2498
    %v2500 = vpop.f32.mrf.mxu0
    %v2501 = vadd.f32 0.0, %v2500
    %2502 = vmatmul.bf16.gmra.mxu0 %v2410
    %v2503 = vpop.f32.mrf.mxu0
    %v2504 = vadd.f32 0.0, %v2503
    %v2505 = vpop.f32.mrf.mxu0
    %v2506 = vadd.f32 0.0, %v2505
    %2507 = vmatmul.bf16.gmra.mxu0 %v2411
    %v2508 = vpop.f32.mrf.mxu0
    %v2509 = vadd.f32 0.0, %v2508
    %v2510 = vpop.f32.mrf.mxu0
    %v2511 = vadd.f32 0.0, %v2510
    %2512 = vmatmul.bf16.gmra.mxu0 %v2412
    %v2513 = vpop.f32.mrf.mxu0
    %v2514 = vadd.f32 0.0, %v2513
    %v2515 = vpop.f32.mrf.mxu0
    %v2516 = vadd.f32 0.0, %v2515
    %2517 = vdwg.mxu0
    %v2518 = vadd.f32 %v2245, %v2479
    %v2519 = vadd.f32 %v2246, %v2481
    %v2520 = vadd.f32 %v2247, %v2484
    %v2521 = vadd.f32 %v2248, %v2486
    %v2522 = vadd.f32 %v2249, %v2489
    %v2523 = vadd.f32 %v2250, %v2491
    %v2524 = vadd.f32 %v2251, %v2494
    %v2525 = vadd.f32 %v2252, %v2496
    %v2526 = vadd.f32 %v2253, %v2499
    %v2527 = vadd.f32 %v2254, %v2501
    %v2528 = vadd.f32 %v2255, %v2504
    %v2529 = vadd.f32 %v2256, %v2506
    %v2530 = vadd.f32 %v2257, %v2509
    %v2531 = vadd.f32 %v2258, %v2511
    %v2532 = vadd.f32 %v2259, %v2514
    %v2533 = vadd.f32 %v2260, %v2516
    %s2534 = scalar_lea.vmem [#allocation2], 16
    %v2535 = vld [vmem:[%s2534] sm:$0xf]
    %v2536 = vld [vmem:[%s2534 + $0x8] sm:$0xf]
    %v2537 = vld [vmem:[%s2534 + $0x10] sm:$0xf]
    %v2538 = vld [vmem:[%s2534 + $0x18] sm:$0xf]
    %v2539 = vld [vmem:[%s2534 + $0x20] sm:$0xf]
    %v2540 = vld [vmem:[%s2534 + $0x28] sm:$0xf]
    %v2541 = vld [vmem:[%s2534 + $0x30] sm:$0xf]
    %v2542 = vld [vmem:[%s2534 + $0x38] sm:$0xf]
    %v2543 = vld [vmem:[%s2534 + $0x50] sm:$0xf]
    %v2544 = vld [vmem:[%s2534 + $0x58] sm:$0xf]
    %v2545 = vld [vmem:[%s2534 + $0x60] sm:$0xf]
    %v2546 = vld [vmem:[%s2534 + $0x68] sm:$0xf]
    %v2547 = vld [vmem:[%s2534 + $0x70] sm:$0xf]
    %v2548 = vld [vmem:[%s2534 + $0x78] sm:$0xf]
    %v2549 = vld [vmem:[%s2534 + $0x80] sm:$0xf]
    %v2550 = vld [vmem:[%s2534 + $0x88] sm:$0xf]
    %v2551 = vld [vmem:[#allocation7 + $0x180] sm:$0xf]
    %v2552 = vld [vmem:[#allocation7 + $0x184] sm:$0xf]
    %v2553 = vld [vmem:[#allocation7 + $0x188] sm:$0xf]
    %v2554 = vld [vmem:[#allocation7 + $0x18c] sm:$0xf]
    %v2555 = vld [vmem:[#allocation7 + $0x190] sm:$0xf]
    %v2556 = vld [vmem:[#allocation7 + $0x194] sm:$0xf]
    %v2557 = vld [vmem:[#allocation7 + $0x198] sm:$0xf]
    %v2558 = vld [vmem:[#allocation7 + $0x19c] sm:$0xf]
    %v2559 = vld [vmem:[#allocation7 + $0x1a0] sm:$0xf]
    %v2560 = vld [vmem:[#allocation7 + $0x1a4] sm:$0xf]
    %v2561 = vld [vmem:[#allocation7 + $0x1a8] sm:$0xf]
    %v2562 = vld [vmem:[#allocation7 + $0x1ac] sm:$0xf]
    %v2563 = vld [vmem:[#allocation7 + $0x1b0] sm:$0xf]
    %v2564 = vld [vmem:[#allocation7 + $0x1b4] sm:$0xf]
    %v2565 = vld [vmem:[#allocation7 + $0x1b8] sm:$0xf]
    %v2566 = vld [vmem:[#allocation7 + $0x1bc] sm:$0xf]
    %v2583 = vunpack.c.l.b16 %v2535
    %v2584 = vunpack.c.l.b16 %v2536
    %v2585 = vunpack.c.l.b16 %v2537
    %v2586 = vunpack.c.l.b16 %v2538
    %v2587 = vunpack.c.l.b16 %v2539
    %v2588 = vunpack.c.l.b16 %v2540
    %v2589 = vunpack.c.l.b16 %v2541
    %v2590 = vunpack.c.l.b16 %v2542
    %v2591 = vunpack.c.l.b16 %v2543
    %v2592 = vunpack.c.l.b16 %v2544
    %v2593 = vunpack.c.l.b16 %v2545
    %v2594 = vunpack.c.l.b16 %v2546
    %v2595 = vunpack.c.l.b16 %v2547
    %v2596 = vunpack.c.l.b16 %v2548
    %v2597 = vunpack.c.l.b16 %v2549
    %v2598 = vunpack.c.l.b16 %v2550
    %v2599 = vpack.c.b16 %v2584, %v2583
    %v2600 = vpack.c.b16 %v2586, %v2585
    %v2601 = vpack.c.b16 %v2588, %v2587
    %v2602 = vpack.c.b16 %v2590, %v2589
    %v2603 = vpack.c.b16 %v2592, %v2591
    %v2604 = vpack.c.b16 %v2594, %v2593
    %v2605 = vpack.c.b16 %v2596, %v2595
    %v2606 = vpack.c.b16 %v2598, %v2597
    %v2631 = vunpack.c.l.b16 %v2551
    %v2632 = vunpack.c.l.b16 %v2552
    %v2633 = vunpack.c.l.b16 %v2553
    %v2634 = vunpack.c.l.b16 %v2554
    %v2635 = vunpack.c.l.b16 %v2555
    %v2636 = vunpack.c.l.b16 %v2556
    %v2637 = vunpack.c.l.b16 %v2557
    %v2638 = vunpack.c.l.b16 %v2558
    %v2639 = vunpack.c.l.b16 %v2559
    %v2640 = vunpack.c.l.b16 %v2560
    %v2641 = vunpack.c.l.b16 %v2561
    %v2642 = vunpack.c.l.b16 %v2562
    %v2643 = vunpack.c.l.b16 %v2563
    %v2644 = vunpack.c.l.b16 %v2564
    %v2645 = vunpack.c.l.b16 %v2565
    %v2646 = vunpack.c.l.b16 %v2566
    %v2647 = vpack.c.b16 %v2632, %v2631
    %v2648 = vpack.c.b16 %v2634, %v2633
    %v2649 = vpack.c.b16 %v2636, %v2635
    %v2650 = vpack.c.b16 %v2638, %v2637
    %v2651 = vpack.c.b16 %v2640, %v2639
    %v2652 = vpack.c.b16 %v2642, %v2641
    %v2653 = vpack.c.b16 %v2644, %v2643
    %v2654 = vpack.c.b16 %v2646, %v2645
    %2663 = vmatpush.bf16.msra.mxu0 %v2654
    %2664 = vmatpush.bf16.msra.mxu0 %v2653
    %2665 = vmatpush.bf16.msra.mxu0 %v2652
    %2666 = vmatpush.bf16.msra.mxu0 %v2651
    %2667 = vmatpush.bf16.msra.mxu0 %v2650
    %2668 = vmatpush.bf16.msra.mxu0 %v2649
    %2669 = vmatpush.bf16.msra.mxu0 %v2648
    %2670 = vmatpush.bf16.msra.mxu0 %v2647
    %2671 = vmatmul.bf16.gmra.mxu0 %v2599
    %v2672 = vpop.f32.mrf.mxu0
    %v2673 = vadd.f32 0.0, %v2672
    %v2674 = vpop.f32.mrf.mxu0
    %v2675 = vadd.f32 0.0, %v2674
    %2676 = vmatmul.bf16.gmra.mxu0 %v2600
    %v2677 = vpop.f32.mrf.mxu0
    %v2678 = vadd.f32 0.0, %v2677
    %v2679 = vpop.f32.mrf.mxu0
    %v2680 = vadd.f32 0.0, %v2679
    %2681 = vmatmul.bf16.gmra.mxu0 %v2601
    %v2682 = vpop.f32.mrf.mxu0
    %v2683 = vadd.f32 0.0, %v2682
    %v2684 = vpop.f32.mrf.mxu0
    %v2685 = vadd.f32 0.0, %v2684
    %2686 = vmatmul.bf16.gmra.mxu0 %v2602
    %v2687 = vpop.f32.mrf.mxu0
    %v2688 = vadd.f32 0.0, %v2687
    %v2689 = vpop.f32.mrf.mxu0
    %v2690 = vadd.f32 0.0, %v2689
    %2691 = vmatmul.bf16.gmra.mxu0 %v2603
    %v2692 = vpop.f32.mrf.mxu0
    %v2693 = vadd.f32 0.0, %v2692
    %v2694 = vpop.f32.mrf.mxu0
    %v2695 = vadd.f32 0.0, %v2694
    %2696 = vmatmul.bf16.gmra.mxu0 %v2604
    %v2697 = vpop.f32.mrf.mxu0
    %v2698 = vadd.f32 0.0, %v2697
    %v2699 = vpop.f32.mrf.mxu0
    %v2700 = vadd.f32 0.0, %v2699
    %2701 = vmatmul.bf16.gmra.mxu0 %v2605
    %v2702 = vpop.f32.mrf.mxu0
    %v2703 = vadd.f32 0.0, %v2702
    %v2704 = vpop.f32.mrf.mxu0
    %v2705 = vadd.f32 0.0, %v2704
    %2706 = vmatmul.bf16.gmra.mxu0 %v2606
    %v2707 = vpop.f32.mrf.mxu0
    %v2708 = vadd.f32 0.0, %v2707
    %v2709 = vpop.f32.mrf.mxu0
    %v2710 = vadd.f32 0.0, %v2709
    %2711 = vdwg.mxu0
    %v2712 = vadd.f32 %v2518, %v2673
    %v2713 = vadd.f32 %v2519, %v2675
    %v2714 = vadd.f32 %v2520, %v2678
    %v2715 = vadd.f32 %v2521, %v2680
    %v2716 = vadd.f32 %v2522, %v2683
    %v2717 = vadd.f32 %v2523, %v2685
    %v2718 = vadd.f32 %v2524, %v2688
    %v2719 = vadd.f32 %v2525, %v2690
    %v2720 = vadd.f32 %v2526, %v2693
    %v2721 = vadd.f32 %v2527, %v2695
    %v2722 = vadd.f32 %v2528, %v2698
    %v2723 = vadd.f32 %v2529, %v2700
    %v2724 = vadd.f32 %v2530, %v2703
    %v2725 = vadd.f32 %v2531, %v2705
    %v2726 = vadd.f32 %v2532, %v2708
    %v2727 = vadd.f32 %v2533, %v2710
    %v2728 = vld [vmem:[%s2534] sm:$0xf]
    %v2729 = vld [vmem:[%s2534 + $0x4] sm:$0x1]
    %v2730 = vld [vmem:[%s2534 + $0x8] sm:$0xf]
    %v2731 = vld [vmem:[%s2534 + $0xc] sm:$0x1]
    %v2732 = vld [vmem:[%s2534 + $0x10] sm:$0xf]
    %v2733 = vld [vmem:[%s2534 + $0x14] sm:$0x1]
    %v2734 = vld [vmem:[%s2534 + $0x18] sm:$0xf]
    %v2735 = vld [vmem:[%s2534 + $0x1c] sm:$0x1]
    %v2736 = vld [vmem:[%s2534 + $0x20] sm:$0xf]
    %v2737 = vld [vmem:[%s2534 + $0x24] sm:$0x1]
    %v2738 = vld [vmem:[%s2534 + $0x28] sm:$0xf]
    %v2739 = vld [vmem:[%s2534 + $0x2c] sm:$0x1]
    %v2740 = vld [vmem:[%s2534 + $0x30] sm:$0xf]
    %v2741 = vld [vmem:[%s2534 + $0x34] sm:$0x1]
    %v2742 = vld [vmem:[%s2534 + $0x38] sm:$0xf]
    %v2743 = vld [vmem:[%s2534 + $0x3c] sm:$0x1]
    %v2744 = vld [vmem:[%s2534 + $0x50] sm:$0xf]
    %v2745 = vld [vmem:[%s2534 + $0x54] sm:$0x1]
    %v2746 = vld [vmem:[%s2534 + $0x58] sm:$0xf]
    %v2747 = vld [vmem:[%s2534 + $0x5c] sm:$0x1]
    %v2748 = vld [vmem:[%s2534 + $0x60] sm:$0xf]
    %v2749 = vld [vmem:[%s2534 + $0x64] sm:$0x1]
    %v2750 = vld [vmem:[%s2534 + $0x68] sm:$0xf]
    %v2751 = vld [vmem:[%s2534 + $0x6c] sm:$0x1]
    %v2752 = vld [vmem:[%s2534 + $0x70] sm:$0xf]
    %v2753 = vld [vmem:[%s2534 + $0x74] sm:$0x1]
    %v2754 = vld [vmem:[%s2534 + $0x78] sm:$0xf]
    %v2755 = vld [vmem:[%s2534 + $0x7c] sm:$0x1]
    %v2756 = vld [vmem:[%s2534 + $0x80] sm:$0xf]
    %v2757 = vld [vmem:[%s2534 + $0x84] sm:$0x1]
    %v2758 = vld [vmem:[%s2534 + $0x88] sm:$0xf]
    %v2759 = vld [vmem:[%s2534 + $0x8c] sm:$0x1]
    %v2761 = vshrl.u32 %v2728, 16
    %v2763 = vrot.slane %v2761, 4
    %v2764 = vshll.u32 %v2728, 16
    %v2766 = vrot.slane %v2764, 5
    %v2767 = vor.u32 %v2763, %v2766
    %v2768 = vrot.slane %v2767, 4
    %v2770 = vshll.u32 %v2729, 16
    %v2772 = vrot.slane %v2770, 5
    %v2773 = vsel %vm860, %v2768, %v2772
    %v2775 = vshrl.u32 %v2730, 16
    %v2777 = vrot.slane %v2775, 4
    %v2778 = vshll.u32 %v2730, 16
    %v2780 = vrot.slane %v2778, 5
    %v2781 = vor.u32 %v2777, %v2780
    %v2782 = vrot.slane %v2781, 4
    %v2784 = vshll.u32 %v2731, 16
    %v2786 = vrot.slane %v2784, 5
    %v2787 = vsel %vm860, %v2782, %v2786
    %v2789 = vshrl.u32 %v2732, 16
    %v2791 = vrot.slane %v2789, 4
    %v2792 = vshll.u32 %v2732, 16
    %v2794 = vrot.slane %v2792, 5
    %v2795 = vor.u32 %v2791, %v2794
    %v2796 = vrot.slane %v2795, 4
    %v2798 = vshll.u32 %v2733, 16
    %v2800 = vrot.slane %v2798, 5
    %v2801 = vsel %vm860, %v2796, %v2800
    %v2803 = vshrl.u32 %v2734, 16
    %v2805 = vrot.slane %v2803, 4
    %v2806 = vshll.u32 %v2734, 16
    %v2808 = vrot.slane %v2806, 5
    %v2809 = vor.u32 %v2805, %v2808
    %v2810 = vrot.slane %v2809, 4
    %v2812 = vshll.u32 %v2735, 16
    %v2814 = vrot.slane %v2812, 5
    %v2815 = vsel %vm860, %v2810, %v2814
    %v2817 = vshrl.u32 %v2736, 16
    %v2819 = vrot.slane %v2817, 4
    %v2820 = vshll.u32 %v2736, 16
    %v2822 = vrot.slane %v2820, 5
    %v2823 = vor.u32 %v2819, %v2822
    %v2824 = vrot.slane %v2823, 4
    %v2826 = vshll.u32 %v2737, 16
    %v2828 = vrot.slane %v2826, 5
    %v2829 = vsel %vm860, %v2824, %v2828
    %v2831 = vshrl.u32 %v2738, 16
    %v2833 = vrot.slane %v2831, 4
    %v2834 = vshll.u32 %v2738, 16
    %v2836 = vrot.slane %v2834, 5
    %v2837 = vor.u32 %v2833, %v2836
    %v2838 = vrot.slane %v2837, 4
    %v2840 = vshll.u32 %v2739, 16
    %v2842 = vrot.slane %v2840, 5
    %v2843 = vsel %vm860, %v2838, %v2842
    %v2845 = vshrl.u32 %v2740, 16
    %v2847 = vrot.slane %v2845, 4
    %v2848 = vshll.u32 %v2740, 16
    %v2850 = vrot.slane %v2848, 5
    %v2851 = vor.u32 %v2847, %v2850
    %v2852 = vrot.slane %v2851, 4
    %v2854 = vshll.u32 %v2741, 16
    %v2856 = vrot.slane %v2854, 5
    %v2857 = vsel %vm860, %v2852, %v2856
    %v2859 = vshrl.u32 %v2742, 16
    %v2861 = vrot.slane %v2859, 4
    %v2862 = vshll.u32 %v2742, 16
    %v2864 = vrot.slane %v2862, 5
    %v2865 = vor.u32 %v2861, %v2864
    %v2866 = vrot.slane %v2865, 4
    %v2868 = vshll.u32 %v2743, 16
    %v2870 = vrot.slane %v2868, 5
    %v2871 = vsel %vm860, %v2866, %v2870
    %v2873 = vshrl.u32 %v2744, 16
    %v2875 = vrot.slane %v2873, 4
    %v2876 = vshll.u32 %v2744, 16
    %v2878 = vrot.slane %v2876, 5
    %v2879 = vor.u32 %v2875, %v2878
    %v2880 = vrot.slane %v2879, 4
    %v2882 = vshll.u32 %v2745, 16
    %v2884 = vrot.slane %v2882, 5
    %v2885 = vsel %vm860, %v2880, %v2884
    %v2887 = vshrl.u32 %v2746, 16
    %v2889 = vrot.slane %v2887, 4
    %v2890 = vshll.u32 %v2746, 16
    %v2892 = vrot.slane %v2890, 5
    %v2893 = vor.u32 %v2889, %v2892
    %v2894 = vrot.slane %v2893, 4
    %v2896 = vshll.u32 %v2747, 16
    %v2898 = vrot.slane %v2896, 5
    %v2899 = vsel %vm860, %v2894, %v2898
    %v2901 = vshrl.u32 %v2748, 16
    %v2903 = vrot.slane %v2901, 4
    %v2904 = vshll.u32 %v2748, 16
    %v2906 = vrot.slane %v2904, 5
    %v2907 = vor.u32 %v2903, %v2906
    %v2908 = vrot.slane %v2907, 4
    %v2910 = vshll.u32 %v2749, 16
    %v2912 = vrot.slane %v2910, 5
    %v2913 = vsel %vm860, %v2908, %v2912
    %v2915 = vshrl.u32 %v2750, 16
    %v2917 = vrot.slane %v2915, 4
    %v2918 = vshll.u32 %v2750, 16
    %v2920 = vrot.slane %v2918, 5
    %v2921 = vor.u32 %v2917, %v2920
    %v2922 = vrot.slane %v2921, 4
    %v2924 = vshll.u32 %v2751, 16
    %v2926 = vrot.slane %v2924, 5
    %v2927 = vsel %vm860, %v2922, %v2926
    %v2929 = vshrl.u32 %v2752, 16
    %v2931 = vrot.slane %v2929, 4
    %v2932 = vshll.u32 %v2752, 16
    %v2934 = vrot.slane %v2932, 5
    %v2935 = vor.u32 %v2931, %v2934
    %v2936 = vrot.slane %v2935, 4
    %v2938 = vshll.u32 %v2753, 16
    %v2940 = vrot.slane %v2938, 5
    %v2941 = vsel %vm860, %v2936, %v2940
    %v2943 = vshrl.u32 %v2754, 16
    %v2945 = vrot.slane %v2943, 4
    %v2946 = vshll.u32 %v2754, 16
    %v2948 = vrot.slane %v2946, 5
    %v2949 = vor.u32 %v2945, %v2948
    %v2950 = vrot.slane %v2949, 4
    %v2952 = vshll.u32 %v2755, 16
    %v2954 = vrot.slane %v2952, 5
    %v2955 = vsel %vm860, %v2950, %v2954
    %v2957 = vshrl.u32 %v2756, 16
    %v2959 = vrot.slane %v2957, 4
    %v2960 = vshll.u32 %v2756, 16
    %v2962 = vrot.slane %v2960, 5
    %v2963 = vor.u32 %v2959, %v2962
    %v2964 = vrot.slane %v2963, 4
    %v2966 = vshll.u32 %v2757, 16
    %v2968 = vrot.slane %v2966, 5
    %v2969 = vsel %vm860, %v2964, %v2968
    %v2971 = vshrl.u32 %v2758, 16
    %v2973 = vrot.slane %v2971, 4
    %v2974 = vshll.u32 %v2758, 16
    %v2976 = vrot.slane %v2974, 5
    %v2977 = vor.u32 %v2973, %v2976
    %v2978 = vrot.slane %v2977, 4
    %v2980 = vshll.u32 %v2759, 16
    %v2982 = vrot.slane %v2980, 5
    %v2983 = vsel %vm860, %v2978, %v2982
    %v2984 = vld [vmem:[#allocation7 + $0x1c0] sm:$0xf]
    %v2985 = vld [vmem:[#allocation7 + $0x1c4] sm:$0xf]
    %v2986 = vld [vmem:[#allocation7 + $0x1c8] sm:$0xf]
    %v2987 = vld [vmem:[#allocation7 + $0x1cc] sm:$0xf]
    %v2988 = vld [vmem:[#allocation7 + $0x1d0] sm:$0xf]
    %v2989 = vld [vmem:[#allocation7 + $0x1d4] sm:$0xf]
    %v2990 = vld [vmem:[#allocation7 + $0x1d8] sm:$0xf]
    %v2991 = vld [vmem:[#allocation7 + $0x1dc] sm:$0xf]
    %v2992 = vld [vmem:[#allocation7 + $0x1e0] sm:$0xf]
    %v2993 = vld [vmem:[#allocation7 + $0x1e4] sm:$0xf]
    %v2994 = vld [vmem:[#allocation7 + $0x1e8] sm:$0xf]
    %v2995 = vld [vmem:[#allocation7 + $0x1ec] sm:$0xf]
    %v2996 = vld [vmem:[#allocation7 + $0x1f0] sm:$0xf]
    %v2997 = vld [vmem:[#allocation7 + $0x1f4] sm:$0xf]
    %v2998 = vld [vmem:[#allocation7 + $0x1f8] sm:$0xf]
    %v2999 = vld [vmem:[#allocation7 + $0x1fc] sm:$0xf]
    %v3000 = vunpack.c.l.b16 %v2773
    %v3001 = vunpack.c.l.b16 %v2787
    %v3002 = vunpack.c.l.b16 %v2801
    %v3003 = vunpack.c.l.b16 %v2815
    %v3004 = vunpack.c.l.b16 %v2829
    %v3005 = vunpack.c.l.b16 %v2843
    %v3006 = vunpack.c.l.b16 %v2857
    %v3007 = vunpack.c.l.b16 %v2871
    %v3008 = vunpack.c.l.b16 %v2885
    %v3009 = vunpack.c.l.b16 %v2899
    %v3010 = vunpack.c.l.b16 %v2913
    %v3011 = vunpack.c.l.b16 %v2927
    %v3012 = vunpack.c.l.b16 %v2941
    %v3013 = vunpack.c.l.b16 %v2955
    %v3014 = vunpack.c.l.b16 %v2969
    %v3015 = vunpack.c.l.b16 %v2983
    %v3016 = vpack.c.b16 %v3001, %v3000
    %v3017 = vpack.c.b16 %v3003, %v3002
    %v3018 = vpack.c.b16 %v3005, %v3004
    %v3019 = vpack.c.b16 %v3007, %v3006
    %v3020 = vpack.c.b16 %v3009, %v3008
    %v3021 = vpack.c.b16 %v3011, %v3010
    %v3022 = vpack.c.b16 %v3013, %v3012
    %v3023 = vpack.c.b16 %v3015, %v3014
    %v3048 = vunpack.c.l.b16 %v2984
    %v3049 = vunpack.c.l.b16 %v2985
    %v3050 = vunpack.c.l.b16 %v2986
    %v3051 = vunpack.c.l.b16 %v2987
    %v3052 = vunpack.c.l.b16 %v2988
    %v3053 = vunpack.c.l.b16 %v2989
    %v3054 = vunpack.c.l.b16 %v2990
    %v3055 = vunpack.c.l.b16 %v2991
    %v3056 = vunpack.c.l.b16 %v2992
    %v3057 = vunpack.c.l.b16 %v2993
    %v3058 = vunpack.c.l.b16 %v2994
    %v3059 = vunpack.c.l.b16 %v2995
    %v3060 = vunpack.c.l.b16 %v2996
    %v3061 = vunpack.c.l.b16 %v2997
    %v3062 = vunpack.c.l.b16 %v2998
    %v3063 = vunpack.c.l.b16 %v2999
    %v3064 = vpack.c.b16 %v3049, %v3048
    %v3065 = vpack.c.b16 %v3051, %v3050
    %v3066 = vpack.c.b16 %v3053, %v3052
    %v3067 = vpack.c.b16 %v3055, %v3054
    %v3068 = vpack.c.b16 %v3057, %v3056
    %v3069 = vpack.c.b16 %v3059, %v3058
    %v3070 = vpack.c.b16 %v3061, %v3060
    %v3071 = vpack.c.b16 %v3063, %v3062
    %3080 = vmatpush.bf16.msra.mxu0 %v3071
    %3081 = vmatpush.bf16.msra.mxu0 %v3070
    %3082 = vmatpush.bf16.msra.mxu0 %v3069
    %3083 = vmatpush.bf16.msra.mxu0 %v3068
    %3084 = vmatpush.bf16.msra.mxu0 %v3067
    %3085 = vmatpush.bf16.msra.mxu0 %v3066
    %3086 = vmatpush.bf16.msra.mxu0 %v3065
    %3087 = vmatpush.bf16.msra.mxu0 %v3064
    %3088 = vmatmul.bf16.gmra.mxu0 %v3016
    %v3089 = vpop.f32.mrf.mxu0
    %v3090 = vadd.f32 0.0, %v3089
    %v3091 = vpop.f32.mrf.mxu0
    %v3092 = vadd.f32 0.0, %v3091
    %3093 = vmatmul.bf16.gmra.mxu0 %v3017
    %v3094 = vpop.f32.mrf.mxu0
    %v3095 = vadd.f32 0.0, %v3094
    %v3096 = vpop.f32.mrf.mxu0
    %v3097 = vadd.f32 0.0, %v3096
    %3098 = vmatmul.bf16.gmra.mxu0 %v3018
    %v3099 = vpop.f32.mrf.mxu0
    %v3100 = vadd.f32 0.0, %v3099
    %v3101 = vpop.f32.mrf.mxu0
    %v3102 = vadd.f32 0.0, %v3101
    %3103 = vmatmul.bf16.gmra.mxu0 %v3019
    %v3104 = vpop.f32.mrf.mxu0
    %v3105 = vadd.f32 0.0, %v3104
    %v3106 = vpop.f32.mrf.mxu0
    %v3107 = vadd.f32 0.0, %v3106
    %3108 = vmatmul.bf16.gmra.mxu0 %v3020
    %v3109 = vpop.f32.mrf.mxu0
    %v3110 = vadd.f32 0.0, %v3109
    %v3111 = vpop.f32.mrf.mxu0
    %v3112 = vadd.f32 0.0, %v3111
    %3113 = vmatmul.bf16.gmra.mxu0 %v3021
    %v3114 = vpop.f32.mrf.mxu0
    %v3115 = vadd.f32 0.0, %v3114
    %v3116 = vpop.f32.mrf.mxu0
    %v3117 = vadd.f32 0.0, %v3116
    %3118 = vmatmul.bf16.gmra.mxu0 %v3022
    %v3119 = vpop.f32.mrf.mxu0
    %v3120 = vadd.f32 0.0, %v3119
    %v3121 = vpop.f32.mrf.mxu0
    %v3122 = vadd.f32 0.0, %v3121
    %3123 = vmatmul.bf16.gmra.mxu0 %v3023
    %v3124 = vpop.f32.mrf.mxu0
    %v3125 = vadd.f32 0.0, %v3124
    %v3126 = vpop.f32.mrf.mxu0
    %v3127 = vadd.f32 0.0, %v3126
    %3128 = vdwg.mxu0
    %v3129 = vadd.f32 %v2712, %v3090
    %v3130 = vadd.f32 %v2713, %v3092
    %v3131 = vadd.f32 %v2714, %v3095
    %v3132 = vadd.f32 %v2715, %v3097
    %v3133 = vadd.f32 %v2716, %v3100
    %v3134 = vadd.f32 %v2717, %v3102
    %v3135 = vadd.f32 %v2718, %v3105
    %v3136 = vadd.f32 %v2719, %v3107
    %v3137 = vadd.f32 %v2720, %v3110
    %v3138 = vadd.f32 %v2721, %v3112
    %v3139 = vadd.f32 %v2722, %v3115
    %v3140 = vadd.f32 %v2723, %v3117
    %v3141 = vadd.f32 %v2724, %v3120
    %v3142 = vadd.f32 %v2725, %v3122
    %v3143 = vadd.f32 %v2726, %v3125
    %v3144 = vadd.f32 %v2727, %v3127
    %v3145 = vld [vmem:[%s2534] sm:$0xe]
    %v3146 = vld [vmem:[%s2534 + $0x8] sm:$0xe]
    %v3147 = vld [vmem:[%s2534 + $0x10] sm:$0xe]
    %v3148 = vld [vmem:[%s2534 + $0x18] sm:$0xe]
    %v3149 = vld [vmem:[%s2534 + $0x20] sm:$0xe]
    %v3150 = vld [vmem:[%s2534 + $0x28] sm:$0xe]
    %v3151 = vld [vmem:[%s2534 + $0x30] sm:$0xe]
    %v3152 = vld [vmem:[%s2534 + $0x38] sm:$0xe]
    %v3153 = vld [vmem:[%s2534 + $0x50] sm:$0xe]
    %v3154 = vld [vmem:[%s2534 + $0x58] sm:$0xe]
    %v3155 = vld [vmem:[%s2534 + $0x60] sm:$0xe]
    %v3156 = vld [vmem:[%s2534 + $0x68] sm:$0xe]
    %v3157 = vld [vmem:[%s2534 + $0x70] sm:$0xe]
    %v3158 = vld [vmem:[%s2534 + $0x78] sm:$0xe]
    %v3159 = vld [vmem:[%s2534 + $0x80] sm:$0xe]
    %v3160 = vld [vmem:[%s2534 + $0x88] sm:$0xe]
    %v3193 = vrot.slane %v3145, 5
    %v3194 = vrot.slane %v3193, 4
    %v3195 = vrot.slane %v2729, 5
    %v3196 = vsel %vm1425, %v3194, %v3195
    %v3197 = vrot.slane %v3146, 5
    %v3198 = vrot.slane %v3197, 4
    %v3199 = vrot.slane %v2731, 5
    %v3200 = vsel %vm1425, %v3198, %v3199
    %v3201 = vrot.slane %v3147, 5
    %v3202 = vrot.slane %v3201, 4
    %v3203 = vrot.slane %v2733, 5
    %v3204 = vsel %vm1425, %v3202, %v3203
    %v3205 = vrot.slane %v3148, 5
    %v3206 = vrot.slane %v3205, 4
    %v3207 = vrot.slane %v2735, 5
    %v3208 = vsel %vm1425, %v3206, %v3207
    %v3209 = vrot.slane %v3149, 5
    %v3210 = vrot.slane %v3209, 4
    %v3211 = vrot.slane %v2737, 5
    %v3212 = vsel %vm1425, %v3210, %v3211
    %v3213 = vrot.slane %v3150, 5
    %v3214 = vrot.slane %v3213, 4
    %v3215 = vrot.slane %v2739, 5
    %v3216 = vsel %vm1425, %v3214, %v3215
    %v3217 = vrot.slane %v3151, 5
    %v3218 = vrot.slane %v3217, 4
    %v3219 = vrot.slane %v2741, 5
    %v3220 = vsel %vm1425, %v3218, %v3219
    %v3221 = vrot.slane %v3152, 5
    %v3222 = vrot.slane %v3221, 4
    %v3223 = vrot.slane %v2743, 5
    %v3224 = vsel %vm1425, %v3222, %v3223
    %v3225 = vrot.slane %v3153, 5
    %v3226 = vrot.slane %v3225, 4
    %v3227 = vrot.slane %v2745, 5
    %v3228 = vsel %vm1425, %v3226, %v3227
    %v3229 = vrot.slane %v3154, 5
    %v3230 = vrot.slane %v3229, 4
    %v3231 = vrot.slane %v2747, 5
    %v3232 = vsel %vm1425, %v3230, %v3231
    %v3233 = vrot.slane %v3155, 5
    %v3234 = vrot.slane %v3233, 4
    %v3235 = vrot.slane %v2749, 5
    %v3236 = vsel %vm1425, %v3234, %v3235
    %v3237 = vrot.slane %v3156, 5
    %v3238 = vrot.slane %v3237, 4
    %v3239 = vrot.slane %v2751, 5
    %v3240 = vsel %vm1425, %v3238, %v3239
    %v3241 = vrot.slane %v3157, 5
    %v3242 = vrot.slane %v3241, 4
    %v3243 = vrot.slane %v2753, 5
    %v3244 = vsel %vm1425, %v3242, %v3243
    %v3245 = vrot.slane %v3158, 5
    %v3246 = vrot.slane %v3245, 4
    %v3247 = vrot.slane %v2755, 5
    %v3248 = vsel %vm1425, %v3246, %v3247
    %v3249 = vrot.slane %v3159, 5
    %v3250 = vrot.slane %v3249, 4
    %v3251 = vrot.slane %v2757, 5
    %v3252 = vsel %vm1425, %v3250, %v3251
    %v3253 = vrot.slane %v3160, 5
    %v3254 = vrot.slane %v3253, 4
    %v3255 = vrot.slane %v2759, 5
    %v3256 = vsel %vm1425, %v3254, %v3255
    %v3257 = vld [vmem:[#allocation7 + $0x200] sm:$0xf]
    %v3258 = vld [vmem:[#allocation7 + $0x204] sm:$0xf]
    %v3259 = vld [vmem:[#allocation7 + $0x208] sm:$0xf]
    %v3260 = vld [vmem:[#allocation7 + $0x20c] sm:$0xf]
    %v3261 = vld [vmem:[#allocation7 + $0x210] sm:$0xf]
    %v3262 = vld [vmem:[#allocation7 + $0x214] sm:$0xf]
    %v3263 = vld [vmem:[#allocation7 + $0x218] sm:$0xf]
    %v3264 = vld [vmem:[#allocation7 + $0x21c] sm:$0xf]
    %v3265 = vld [vmem:[#allocation7 + $0x220] sm:$0xf]
    %v3266 = vld [vmem:[#allocation7 + $0x224] sm:$0xf]
    %v3267 = vld [vmem:[#allocation7 + $0x228] sm:$0xf]
    %v3268 = vld [vmem:[#allocation7 + $0x22c] sm:$0xf]
    %v3269 = vld [vmem:[#allocation7 + $0x230] sm:$0xf]
    %v3270 = vld [vmem:[#allocation7 + $0x234] sm:$0xf]
    %v3271 = vld [vmem:[#allocation7 + $0x238] sm:$0xf]
    %v3272 = vld [vmem:[#allocation7 + $0x23c] sm:$0xf]
    %v3273 = vunpack.c.l.b16 %v3196
    %v3274 = vunpack.c.l.b16 %v3200
    %v3275 = vunpack.c.l.b16 %v3204
    %v3276 = vunpack.c.l.b16 %v3208
    %v3277 = vunpack.c.l.b16 %v3212
    %v3278 = vunpack.c.l.b16 %v3216
    %v3279 = vunpack.c.l.b16 %v3220
    %v3280 = vunpack.c.l.b16 %v3224
    %v3281 = vunpack.c.l.b16 %v3228
    %v3282 = vunpack.c.l.b16 %v3232
    %v3283 = vunpack.c.l.b16 %v3236
    %v3284 = vunpack.c.l.b16 %v3240
    %v3285 = vunpack.c.l.b16 %v3244
    %v3286 = vunpack.c.l.b16 %v3248
    %v3287 = vunpack.c.l.b16 %v3252
    %v3288 = vunpack.c.l.b16 %v3256
    %v3289 = vpack.c.b16 %v3274, %v3273
    %v3290 = vpack.c.b16 %v3276, %v3275
    %v3291 = vpack.c.b16 %v3278, %v3277
    %v3292 = vpack.c.b16 %v3280, %v3279
    %v3293 = vpack.c.b16 %v3282, %v3281
    %v3294 = vpack.c.b16 %v3284, %v3283
    %v3295 = vpack.c.b16 %v3286, %v3285
    %v3296 = vpack.c.b16 %v3288, %v3287
    %v3321 = vunpack.c.l.b16 %v3257
    %v3322 = vunpack.c.l.b16 %v3258
    %v3323 = vunpack.c.l.b16 %v3259
    %v3324 = vunpack.c.l.b16 %v3260
    %v3325 = vunpack.c.l.b16 %v3261
    %v3326 = vunpack.c.l.b16 %v3262
    %v3327 = vunpack.c.l.b16 %v3263
    %v3328 = vunpack.c.l.b16 %v3264
    %v3329 = vunpack.c.l.b16 %v3265
    %v3330 = vunpack.c.l.b16 %v3266
    %v3331 = vunpack.c.l.b16 %v3267
    %v3332 = vunpack.c.l.b16 %v3268
    %v3333 = vunpack.c.l.b16 %v3269
    %v3334 = vunpack.c.l.b16 %v3270
    %v3335 = vunpack.c.l.b16 %v3271
    %v3336 = vunpack.c.l.b16 %v3272
    %v3337 = vpack.c.b16 %v3322, %v3321
    %v3338 = vpack.c.b16 %v3324, %v3323
    %v3339 = vpack.c.b16 %v3326, %v3325
    %v3340 = vpack.c.b16 %v3328, %v3327
    %v3341 = vpack.c.b16 %v3330, %v3329
    %v3342 = vpack.c.b16 %v3332, %v3331
    %v3343 = vpack.c.b16 %v3334, %v3333
    %v3344 = vpack.c.b16 %v3336, %v3335
    %3353 = vmatpush.bf16.msra.mxu0 %v3344
    %3354 = vmatpush.bf16.msra.mxu0 %v3343
    %3355 = vmatpush.bf16.msra.mxu0 %v3342
    %3356 = vmatpush.bf16.msra.mxu0 %v3341
    %3357 = vmatpush.bf16.msra.mxu0 %v3340
    %3358 = vmatpush.bf16.msra.mxu0 %v3339
    %3359 = vmatpush.bf16.msra.mxu0 %v3338
    %3360 = vmatpush.bf16.msra.mxu0 %v3337
    %3361 = vmatmul.bf16.gmra.mxu0 %v3289
    %v3362 = vpop.f32.mrf.mxu0
    %v3363 = vadd.f32 0.0, %v3362
    %v3364 = vpop.f32.mrf.mxu0
    %v3365 = vadd.f32 0.0, %v3364
    %3366 = vmatmul.bf16.gmra.mxu0 %v3290
    %v3367 = vpop.f32.mrf.mxu0
    %v3368 = vadd.f32 0.0, %v3367
    %v3369 = vpop.f32.mrf.mxu0
    %v3370 = vadd.f32 0.0, %v3369
    %3371 = vmatmul.bf16.gmra.mxu0 %v3291
    %v3372 = vpop.f32.mrf.mxu0
    %v3373 = vadd.f32 0.0, %v3372
    %v3374 = vpop.f32.mrf.mxu0
    %v3375 = vadd.f32 0.0, %v3374
    %3376 = vmatmul.bf16.gmra.mxu0 %v3292
    %v3377 = vpop.f32.mrf.mxu0
    %v3378 = vadd.f32 0.0, %v3377
    %v3379 = vpop.f32.mrf.mxu0
    %v3380 = vadd.f32 0.0, %v3379
    %3381 = vmatmul.bf16.gmra.mxu0 %v3293
    %v3382 = vpop.f32.mrf.mxu0
    %v3383 = vadd.f32 0.0, %v3382
    %v3384 = vpop.f32.mrf.mxu0
    %v3385 = vadd.f32 0.0, %v3384
    %3386 = vmatmul.bf16.gmra.mxu0 %v3294
    %v3387 = vpop.f32.mrf.mxu0
    %v3388 = vadd.f32 0.0, %v3387
    %v3389 = vpop.f32.mrf.mxu0
    %v3390 = vadd.f32 0.0, %v3389
    %3391 = vmatmul.bf16.gmra.mxu0 %v3295
    %v3392 = vpop.f32.mrf.mxu0
    %v3393 = vadd.f32 0.0, %v3392
    %v3394 = vpop.f32.mrf.mxu0
    %v3395 = vadd.f32 0.0, %v3394
    %3396 = vmatmul.bf16.gmra.mxu0 %v3296
    %v3397 = vpop.f32.mrf.mxu0
    %v3398 = vadd.f32 0.0, %v3397
    %v3399 = vpop.f32.mrf.mxu0
    %v3400 = vadd.f32 0.0, %v3399
    %3401 = vdwg.mxu0
    %v3402 = vadd.f32 %v3129, %v3363
    %v3403 = vadd.f32 %v3130, %v3365
    %v3404 = vadd.f32 %v3131, %v3368
    %v3405 = vadd.f32 %v3132, %v3370
    %v3406 = vadd.f32 %v3133, %v3373
    %v3407 = vadd.f32 %v3134, %v3375
    %v3408 = vadd.f32 %v3135, %v3378
    %v3409 = vadd.f32 %v3136, %v3380
    %v3410 = vadd.f32 %v3137, %v3383
    %v3411 = vadd.f32 %v3138, %v3385
    %v3412 = vadd.f32 %v3139, %v3388
    %v3413 = vadd.f32 %v3140, %v3390
    %v3414 = vadd.f32 %v3141, %v3393
    %v3415 = vadd.f32 %v3142, %v3395
    %v3416 = vadd.f32 %v3143, %v3398
    %v3417 = vadd.f32 %v3144, %v3400
    %v3418 = vadd.f32 %v3402, %v3403
    %v3419 = vadd.f32 %v3418, %v3404
    %v3420 = vadd.f32 %v3419, %v3405
    %v3421 = vadd.f32 %v3420, %v3406
    %v3422 = vadd.f32 %v3421, %v3407
    %v3423 = vadd.f32 %v3422, %v3408
    %v3424 = vadd.f32 %v3423, %v3409
    %v3425 = vadd.f32 %v3424, %v3410
    %v3426 = vadd.f32 %v3425, %v3411
    %v3427 = vadd.f32 %v3426, %v3412
    %v3428 = vadd.f32 %v3427, %v3413
    %v3429 = vadd.f32 %v3428, %v3414
    %v3430 = vadd.f32 %v3429, %v3415
    %v3431 = vadd.f32 %v3430, %v3416
    %v3432 = vadd.f32 %v3431, %v3417
    %v3433 = vrot.slane %v3432, 4
    %v3434 = vadd.f32 %v3432, %v3433
    %v3435 = vrot.slane %v3434, 2
    %v3436 = vadd.f32 %v3434, %v3435
    %v3437 = vrot.slane %v3436, 1
    %v3438 = vadd.f32 %v3436, %v3437
    %v3439 = vmul.f32 %v3438, 0.0078125
    %v3440 = vsub.f32 %v3402, %v3439
    %v3441 = vsub.f32 %v3403, %v3439
    %v3442 = vsub.f32 %v3404, %v3439
    %v3443 = vsub.f32 %v3405, %v3439
    %v3444 = vsub.f32 %v3406, %v3439
    %v3445 = vsub.f32 %v3407, %v3439
    %v3446 = vsub.f32 %v3408, %v3439
    %v3447 = vsub.f32 %v3409, %v3439
    %v3448 = vsub.f32 %v3410, %v3439
    %v3449 = vsub.f32 %v3411, %v3439
    %v3450 = vsub.f32 %v3412, %v3439
    %v3451 = vsub.f32 %v3413, %v3439
    %v3452 = vsub.f32 %v3414, %v3439
    %v3453 = vsub.f32 %v3415, %v3439
    %v3454 = vsub.f32 %v3416, %v3439
    %v3455 = vsub.f32 %v3417, %v3439
    %v3456 = vmul.f32 %v3440, %v3440
    %v3457 = vmul.f32 %v3441, %v3441
    %v3458 = vmul.f32 %v3442, %v3442
    %v3459 = vmul.f32 %v3443, %v3443
    %v3460 = vmul.f32 %v3444, %v3444
    %v3461 = vmul.f32 %v3445, %v3445
    %v3462 = vmul.f32 %v3446, %v3446
    %v3463 = vmul.f32 %v3447, %v3447
    %v3464 = vmul.f32 %v3448, %v3448
    %v3465 = vmul.f32 %v3449, %v3449
    %v3466 = vmul.f32 %v3450, %v3450
    %v3467 = vmul.f32 %v3451, %v3451
    %v3468 = vmul.f32 %v3452, %v3452
    %v3469 = vmul.f32 %v3453, %v3453
    %v3470 = vmul.f32 %v3454, %v3454
    %v3471 = vmul.f32 %v3455, %v3455
    %v3472 = vadd.f32 %v3456, %v3457
    %v3473 = vadd.f32 %v3472, %v3458
    %v3474 = vadd.f32 %v3473, %v3459
    %v3475 = vadd.f32 %v3474, %v3460
    %v3476 = vadd.f32 %v3475, %v3461
    %v3477 = vadd.f32 %v3476, %v3462
    %v3478 = vadd.f32 %v3477, %v3463
    %v3479 = vadd.f32 %v3478, %v3464
    %v3480 = vadd.f32 %v3479, %v3465
    %v3481 = vadd.f32 %v3480, %v3466
    %v3482 = vadd.f32 %v3481, %v3467
    %v3483 = vadd.f32 %v3482, %v3468
    %v3484 = vadd.f32 %v3483, %v3469
    %v3485 = vadd.f32 %v3484, %v3470
    %v3486 = vadd.f32 %v3485, %v3471
    %v3487 = vrot.slane %v3486, 4
    %v3488 = vadd.f32 %v3486, %v3487
    %v3489 = vrot.slane %v3488, 2
    %v3490 = vadd.f32 %v3488, %v3489
    %v3491 = vrot.slane %v3490, 1
    %v3492 = vadd.f32 %v3490, %v3491
    %v3493 = vmul.f32 %v3492, 0.0078125
    %v3494 = vadd.f32 %v3493, 1e-05
    %v3495 = vrsqrt.pop %v3494
    %v3496 = vmul.f32 %v3495, %v3494
    %v3497 = vmul.f32 %v3496, %v3495
    %v3498 = vmul.f32 0.5, %v3497
    %v3499 = vsub.f32 1.5, %v3498
    %v3500 = vmul.f32 %v3495, %v3499
    %vm3501 = vweird.f32 %v3494
    %vm3502 = vweird.f32 %v3495
    %vm3503 = vmor %vm3501, %vm3502
    %v3504 = vsel %vm3503, %v3495, %v3500
    %v3505 = vld [vmem:[%s2] sm:$0x1]
    %v3506 = vmul.f32 %v3504, %v3505
    %v3507 = vperm.slane %v3506, 0
    %v3508 = vmul.f32 %v3440, %v3507
    %v3509 = vmul.f32 %v3441, %v3507
    %v3510 = vmul.f32 %v3442, %v3507
    %v3511 = vmul.f32 %v3443, %v3507
    %v3512 = vmul.f32 %v3444, %v3507
    %v3513 = vmul.f32 %v3445, %v3507
    %v3514 = vmul.f32 %v3446, %v3507
    %v3515 = vmul.f32 %v3447, %v3507
    %v3516 = vmul.f32 %v3448, %v3507
    %v3517 = vmul.f32 %v3449, %v3507
    %v3518 = vmul.f32 %v3450, %v3507
    %v3519 = vmul.f32 %v3451, %v3507
    %v3520 = vmul.f32 %v3452, %v3507
    %v3521 = vmul.f32 %v3453, %v3507
    %v3522 = vmul.f32 %v3454, %v3507
    %v3523 = vmul.f32 %v3455, %v3507
    %v3524 = vld [vmem:[%s3] sm:$0x1]
    %v3526 = vperm.slane %v3524, 0
    %v3528 = vadd.f32 %v3508, %v3526
    %v3529 = vadd.f32 %v3509, %v3526
    %v3530 = vadd.f32 %v3510, %v3526
    %v3531 = vadd.f32 %v3511, %v3526
    %v3532 = vadd.f32 %v3512, %v3526
    %v3533 = vadd.f32 %v3513, %v3526
    %v3534 = vadd.f32 %v3514, %v3526
    %v3535 = vadd.f32 %v3515, %v3526
    %v3536 = vadd.f32 %v3516, %v3526
    %v3537 = vadd.f32 %v3517, %v3526
    %v3538 = vadd.f32 %v3518, %v3526
    %v3539 = vadd.f32 %v3519, %v3526
    %v3540 = vadd.f32 %v3520, %v3526
    %v3541 = vadd.f32 %v3521, %v3526
    %v3542 = vadd.f32 %v3522, %v3526
    %v3543 = vadd.f32 %v3523, %v3526
    %v3544 = vmax.f32 %v3528, 0.0
    %v3545 = vmax.f32 %v3529, 0.0
    %v3546 = vmax.f32 %v3530, 0.0
    %v3547 = vmax.f32 %v3531, 0.0
    %v3548 = vmax.f32 %v3532, 0.0
    %v3549 = vmax.f32 %v3533, 0.0
    %v3550 = vmax.f32 %v3534, 0.0
    %v3551 = vmax.f32 %v3535, 0.0
    %v3552 = vmax.f32 %v3536, 0.0
    %v3553 = vmax.f32 %v3537, 0.0
    %v3554 = vmax.f32 %v3538, 0.0
    %v3555 = vmax.f32 %v3539, 0.0
    %v3556 = vmax.f32 %v3540, 0.0
    %v3557 = vmax.f32 %v3541, 0.0
    %v3558 = vmax.f32 %v3542, 0.0
    %v3559 = vmax.f32 %v3543, 0.0
    %3560 = vst [vmem:[#allocation3] sm:$0xf] 0
    %3561 = vst [vmem:[#allocation3 + $0x4] sm:$0x1] 0
    %3562 = vst [vmem:[#allocation3 + $0x8] sm:$0xf] 0
    %3563 = vst [vmem:[#allocation3 + $0xc] sm:$0x1] 0
    %3564 = vst [vmem:[#allocation3 + $0x10] sm:$0xf] 0
    %3565 = vst [vmem:[#allocation3 + $0x14] sm:$0x1] 0
    %3566 = vst [vmem:[#allocation3 + $0x18] sm:$0xf] 0
    %3567 = vst [vmem:[#allocation3 + $0x1c] sm:$0x1] 0
    %3568 = vst [vmem:[#allocation3 + $0x20] sm:$0xf] 0
    %3569 = vst [vmem:[#allocation3 + $0x24] sm:$0x1] 0
    %3570 = vst [vmem:[#allocation3 + $0x28] sm:$0xf] 0
    %3571 = vst [vmem:[#allocation3 + $0x2c] sm:$0x1] 0
    %3572 = vst [vmem:[#allocation3 + $0x30] sm:$0xf] 0
    %3573 = vst [vmem:[#allocation3 + $0x34] sm:$0x1] 0
    %3574 = vst [vmem:[#allocation3 + $0x38] sm:$0xf] 0
    %3575 = vst [vmem:[#allocation3 + $0x3c] sm:$0x1] 0
    %3576 = vst [vmem:[#allocation3 + $0x40] sm:$0xf] 0
    %3577 = vst [vmem:[#allocation3 + $0x44] sm:$0x1] 0
    %3578 = vst [vmem:[#allocation3 + $0x48] sm:$0xf] 0
    %3579 = vst [vmem:[#allocation3 + $0x4c] sm:$0x1] 0
    %3580 = vst [vmem:[#allocation3 + $0x50] sm:$0xf] 0
    %3581 = vst [vmem:[#allocation3 + $0x54] sm:$0x1] 0
    %3582 = vst [vmem:[#allocation3 + $0x58] sm:$0xf] 0
    %3583 = vst [vmem:[#allocation3 + $0x5c] sm:$0x1] 0
    %3584 = vst [vmem:[#allocation3 + $0x60] sm:$0xf] 0
    %3585 = vst [vmem:[#allocation3 + $0x64] sm:$0x1] 0
    %3586 = vst [vmem:[#allocation3 + $0x68] sm:$0xf] 0
    %3587 = vst [vmem:[#allocation3 + $0x6c] sm:$0x1] 0
    %3588 = vst [vmem:[#allocation3 + $0x70] sm:$0xf] 0
    %3589 = vst [vmem:[#allocation3 + $0x74] sm:$0x1] 0
    %3590 = vst [vmem:[#allocation3 + $0x78] sm:$0xf] 0
    %3591 = vst [vmem:[#allocation3 + $0x7c] sm:$0x1] 0
    %3592 = vst [vmem:[#allocation3 + $0x80] sm:$0xf] 0
    %3593 = vst [vmem:[#allocation3 + $0x84] sm:$0x1] 0
    %3594 = vst [vmem:[#allocation3 + $0x88] sm:$0xf] 0
    %3595 = vst [vmem:[#allocation3 + $0x8c] sm:$0x1] 0
    %3596 = vst [vmem:[#allocation3 + $0x90] sm:$0xf] 0
    %3597 = vst [vmem:[#allocation3 + $0x94] sm:$0x1] 0
    %3598 = vst [vmem:[#allocation3 + $0x98] sm:$0xf] 0
    %3599 = vst [vmem:[#allocation3 + $0x9c] sm:$0x1] 0
    %v3600 = vpack.c.bf16 %v3544, %v3544
    %v3601 = vpack.c.bf16 %v3545, %v3545
    %v3602 = vpack.c.bf16 %v3546, %v3546
    %v3603 = vpack.c.bf16 %v3547, %v3547
    %v3604 = vpack.c.bf16 %v3548, %v3548
    %v3605 = vpack.c.bf16 %v3549, %v3549
    %v3606 = vpack.c.bf16 %v3550, %v3550
    %v3607 = vpack.c.bf16 %v3551, %v3551
    %v3608 = vpack.c.bf16 %v3552, %v3552
    %v3609 = vpack.c.bf16 %v3553, %v3553
    %v3610 = vpack.c.bf16 %v3554, %v3554
    %v3611 = vpack.c.bf16 %v3555, %v3555
    %v3612 = vpack.c.bf16 %v3556, %v3556
    %v3613 = vpack.c.bf16 %v3557, %v3557
    %v3614 = vpack.c.bf16 %v3558, %v3558
    %v3615 = vpack.c.bf16 %v3559, %v3559
    %v3617 = vshrl.u32 %v3600, 16
    %v3619 = vrot.slane %v3617, 7
    %v3620 = vshll.u32 %v3600, 16
    %v3622 = vor.u32 %v3619, %v3620
    %v3623 = vrot.slane %v3619, 4
    %v3625 = vshrl.u32 %v3601, 16
    %v3627 = vrot.slane %v3625, 7
    %v3628 = vshll.u32 %v3601, 16
    %v3630 = vor.u32 %v3627, %v3628
    %v3631 = vrot.slane %v3627, 4
    %v3633 = vshrl.u32 %v3602, 16
    %v3635 = vrot.slane %v3633, 7
    %v3636 = vshll.u32 %v3602, 16
    %v3638 = vor.u32 %v3635, %v3636
    %v3639 = vrot.slane %v3635, 4
    %v3641 = vshrl.u32 %v3603, 16
    %v3643 = vrot.slane %v3641, 7
    %v3644 = vshll.u32 %v3603, 16
    %v3646 = vor.u32 %v3643, %v3644
    %v3647 = vrot.slane %v3643, 4
    %v3649 = vshrl.u32 %v3604, 16
    %v3651 = vrot.slane %v3649, 7
    %v3652 = vshll.u32 %v3604, 16
    %v3654 = vor.u32 %v3651, %v3652
    %v3655 = vrot.slane %v3651, 4
    %v3657 = vshrl.u32 %v3605, 16
    %v3659 = vrot.slane %v3657, 7
    %v3660 = vshll.u32 %v3605, 16
    %v3662 = vor.u32 %v3659, %v3660
    %v3663 = vrot.slane %v3659, 4
    %v3665 = vshrl.u32 %v3606, 16
    %v3667 = vrot.slane %v3665, 7
    %v3668 = vshll.u32 %v3606, 16
    %v3670 = vor.u32 %v3667, %v3668
    %v3671 = vrot.slane %v3667, 4
    %v3673 = vshrl.u32 %v3607, 16
    %v3675 = vrot.slane %v3673, 7
    %v3676 = vshll.u32 %v3607, 16
    %v3678 = vor.u32 %v3675, %v3676
    %v3679 = vrot.slane %v3675, 4
    %v3681 = vshrl.u32 %v3608, 16
    %v3683 = vrot.slane %v3681, 7
    %v3684 = vshll.u32 %v3608, 16
    %v3686 = vor.u32 %v3683, %v3684
    %v3687 = vrot.slane %v3683, 4
    %v3689 = vshrl.u32 %v3609, 16
    %v3691 = vrot.slane %v3689, 7
    %v3692 = vshll.u32 %v3609, 16
    %v3694 = vor.u32 %v3691, %v3692
    %v3695 = vrot.slane %v3691, 4
    %v3697 = vshrl.u32 %v3610, 16
    %v3699 = vrot.slane %v3697, 7
    %v3700 = vshll.u32 %v3610, 16
    %v3702 = vor.u32 %v3699, %v3700
    %v3703 = vrot.slane %v3699, 4
    %v3705 = vshrl.u32 %v3611, 16
    %v3707 = vrot.slane %v3705, 7
    %v3708 = vshll.u32 %v3611, 16
    %v3710 = vor.u32 %v3707, %v3708
    %v3711 = vrot.slane %v3707, 4
    %v3713 = vshrl.u32 %v3612, 16
    %v3715 = vrot.slane %v3713, 7
    %v3716 = vshll.u32 %v3612, 16
    %v3718 = vor.u32 %v3715, %v3716
    %v3719 = vrot.slane %v3715, 4
    %v3721 = vshrl.u32 %v3613, 16
    %v3723 = vrot.slane %v3721, 7
    %v3724 = vshll.u32 %v3613, 16
    %v3726 = vor.u32 %v3723, %v3724
    %v3727 = vrot.slane %v3723, 4
    %v3729 = vshrl.u32 %v3614, 16
    %v3731 = vrot.slane %v3729, 7
    %v3732 = vshll.u32 %v3614, 16
    %v3734 = vor.u32 %v3731, %v3732
    %v3735 = vrot.slane %v3731, 4
    %v3737 = vshrl.u32 %v3615, 16
    %v3739 = vrot.slane %v3737, 7
    %v3740 = vshll.u32 %v3615, 16
    %v3742 = vor.u32 %v3739, %v3740
    %v3743 = vrot.slane %v3739, 4
    %s3776 = scalar_lea.vmem [#allocation3], 8
    %v3777 = vld [vmem:[%s3776] sm:$0xf]
    %v3778 = vsel %vm710, %v3622, %v3777
    %3779 = vst [vmem:[%s3776] sm:$0xf] %v3778
    %v3780 = vld [vmem:[%s3776 + $0x4] sm:$0x1]
    %v3781 = vsel %vm716, %v3623, %v3780
    %3782 = vst [vmem:[%s3776 + $0x4] sm:$0x1] %v3781
    %v3783 = vld [vmem:[%s3776 + $0x8] sm:$0xf]
    %v3784 = vsel %vm710, %v3630, %v3783
    %3785 = vst [vmem:[%s3776 + $0x8] sm:$0xf] %v3784
    %v3786 = vld [vmem:[%s3776 + $0xc] sm:$0x1]
    %v3787 = vsel %vm716, %v3631, %v3786
    %3788 = vst [vmem:[%s3776 + $0xc] sm:$0x1] %v3787
    %v3789 = vld [vmem:[%s3776 + $0x10] sm:$0xf]
    %v3790 = vsel %vm710, %v3638, %v3789
    %3791 = vst [vmem:[%s3776 + $0x10] sm:$0xf] %v3790
    %v3792 = vld [vmem:[%s3776 + $0x14] sm:$0x1]
    %v3793 = vsel %vm716, %v3639, %v3792
    %3794 = vst [vmem:[%s3776 + $0x14] sm:$0x1] %v3793
    %v3795 = vld [vmem:[%s3776 + $0x18] sm:$0xf]
    %v3796 = vsel %vm710, %v3646, %v3795
    %3797 = vst [vmem:[%s3776 + $0x18] sm:$0xf] %v3796
    %v3798 = vld [vmem:[%s3776 + $0x1c] sm:$0x1]
    %v3799 = vsel %vm716, %v3647, %v3798
    %3800 = vst [vmem:[%s3776 + $0x1c] sm:$0x1] %v3799
    %v3801 = vld [vmem:[%s3776 + $0x20] sm:$0xf]
    %v3802 = vsel %vm710, %v3654, %v3801
    %3803 = vst [vmem:[%s3776 + $0x20] sm:$0xf] %v3802
    %v3804 = vld [vmem:[%s3776 + $0x24] sm:$0x1]
    %v3805 = vsel %vm716, %v3655, %v3804
    %3806 = vst [vmem:[%s3776 + $0x24] sm:$0x1] %v3805
    %v3807 = vld [vmem:[%s3776 + $0x28] sm:$0xf]
    %v3808 = vsel %vm710, %v3662, %v3807
    %3809 = vst [vmem:[%s3776 + $0x28] sm:$0xf] %v3808
    %v3810 = vld [vmem:[%s3776 + $0x2c] sm:$0x1]
    %v3811 = vsel %vm716, %v3663, %v3810
    %3812 = vst [vmem:[%s3776 + $0x2c] sm:$0x1] %v3811
    %v3813 = vld [vmem:[%s3776 + $0x30] sm:$0xf]
    %v3814 = vsel %vm710, %v3670, %v3813
    %3815 = vst [vmem:[%s3776 + $0x30] sm:$0xf] %v3814
    %v3816 = vld [vmem:[%s3776 + $0x34] sm:$0x1]
    %v3817 = vsel %vm716, %v3671, %v3816
    %3818 = vst [vmem:[%s3776 + $0x34] sm:$0x1] %v3817
    %v3819 = vld [vmem:[%s3776 + $0x38] sm:$0xf]
    %v3820 = vsel %vm710, %v3678, %v3819
    %3821 = vst [vmem:[%s3776 + $0x38] sm:$0xf] %v3820
    %v3822 = vld [vmem:[%s3776 + $0x3c] sm:$0x1]
    %v3823 = vsel %vm716, %v3679, %v3822
    %3824 = vst [vmem:[%s3776 + $0x3c] sm:$0x1] %v3823
    %v3825 = vld [vmem:[%s3776 + $0x50] sm:$0xf]
    %v3826 = vsel %vm710, %v3686, %v3825
    %3827 = vst [vmem:[%s3776 + $0x50] sm:$0xf] %v3826
    %v3828 = vld [vmem:[%s3776 + $0x54] sm:$0x1]
    %v3829 = vsel %vm716, %v3687, %v3828
    %3830 = vst [vmem:[%s3776 + $0x54] sm:$0x1] %v3829
    %v3831 = vld [vmem:[%s3776 + $0x58] sm:$0xf]
    %v3832 = vsel %vm710, %v3694, %v3831
    %3833 = vst [vmem:[%s3776 + $0x58] sm:$0xf] %v3832
    %v3834 = vld [vmem:[%s3776 + $0x5c] sm:$0x1]
    %v3835 = vsel %vm716, %v3695, %v3834
    %3836 = vst [vmem:[%s3776 + $0x5c] sm:$0x1] %v3835
    %v3837 = vld [vmem:[%s3776 + $0x60] sm:$0xf]
    %v3838 = vsel %vm710, %v3702, %v3837
    %3839 = vst [vmem:[%s3776 + $0x60] sm:$0xf] %v3838
    %v3840 = vld [vmem:[%s3776 + $0x64] sm:$0x1]
    %v3841 = vsel %vm716, %v3703, %v3840
    %3842 = vst [vmem:[%s3776 + $0x64] sm:$0x1] %v3841
    %v3843 = vld [vmem:[%s3776 + $0x68] sm:$0xf]
    %v3844 = vsel %vm710, %v3710, %v3843
    %3845 = vst [vmem:[%s3776 + $0x68] sm:$0xf] %v3844
    %v3846 = vld [vmem:[%s3776 + $0x6c] sm:$0x1]
    %v3847 = vsel %vm716, %v3711, %v3846
    %3848 = vst [vmem:[%s3776 + $0x6c] sm:$0x1] %v3847
    %v3849 = vld [vmem:[%s3776 + $0x70] sm:$0xf]
    %v3850 = vsel %vm710, %v3718, %v3849
    %3851 = vst [vmem:[%s3776 + $0x70] sm:$0xf] %v3850
    %v3852 = vld [vmem:[%s3776 + $0x74] sm:$0x1]
    %v3853 = vsel %vm716, %v3719, %v3852
    %3854 = vst [vmem:[%s3776 + $0x74] sm:$0x1] %v3853
    %v3855 = vld [vmem:[%s3776 + $0x78] sm:$0xf]
    %v3856 = vsel %vm710, %v3726, %v3855
    %3857 = vst [vmem:[%s3776 + $0x78] sm:$0xf] %v3856
    %v3858 = vld [vmem:[%s3776 + $0x7c] sm:$0x1]
    %v3859 = vsel %vm716, %v3727, %v3858
    %3860 = vst [vmem:[%s3776 + $0x7c] sm:$0x1] %v3859
    %v3861 = vld [vmem:[%s3776 + $0x80] sm:$0xf]
    %v3862 = vsel %vm710, %v3734, %v3861
    %3863 = vst [vmem:[%s3776 + $0x80] sm:$0xf] %v3862
    %v3864 = vld [vmem:[%s3776 + $0x84] sm:$0x1]
    %v3865 = vsel %vm716, %v3735, %v3864
    %3866 = vst [vmem:[%s3776 + $0x84] sm:$0x1] %v3865
    %v3867 = vld [vmem:[%s3776 + $0x88] sm:$0xf]
    %v3868 = vsel %vm710, %v3742, %v3867
    %3869 = vst [vmem:[%s3776 + $0x88] sm:$0xf] %v3868
    %v3870 = vld [vmem:[%s3776 + $0x8c] sm:$0x1]
    %v3871 = vsel %vm716, %v3743, %v3870
    %3872 = vst [vmem:[%s3776 + $0x8c] sm:$0x1] %v3871
    %v3873 = vld [vmem:[#allocation3] sm:$0xf]
    %v3874 = vld [vmem:[#allocation3 + $0x8] sm:$0xf]
    %v3875 = vld [vmem:[#allocation3 + $0x10] sm:$0xf]
    %v3876 = vld [vmem:[#allocation3 + $0x18] sm:$0xf]
    %v3877 = vld [vmem:[#allocation3 + $0x20] sm:$0xf]
    %v3878 = vld [vmem:[#allocation3 + $0x28] sm:$0xf]
    %v3879 = vld [vmem:[#allocation3 + $0x30] sm:$0xf]
    %v3880 = vld [vmem:[#allocation3 + $0x38] sm:$0xf]
    %v3881 = vld [vmem:[#allocation3 + $0x50] sm:$0xf]
    %v3882 = vld [vmem:[#allocation3 + $0x58] sm:$0xf]
    %v3883 = vld [vmem:[#allocation3 + $0x60] sm:$0xf]
    %v3884 = vld [vmem:[#allocation3 + $0x68] sm:$0xf]
    %v3885 = vld [vmem:[#allocation3 + $0x70] sm:$0xf]
    %v3886 = vld [vmem:[#allocation3 + $0x78] sm:$0xf]
    %v3887 = vld [vmem:[#allocation3 + $0x80] sm:$0xf]
    %v3888 = vld [vmem:[#allocation3 + $0x88] sm:$0xf]
    %v3889 = vld [vmem:[#allocation9] sm:$0xf]
    %v3890 = vld [vmem:[#allocation9 + $0x4] sm:$0xf]
    %v3891 = vld [vmem:[#allocation9 + $0x8] sm:$0xf]
    %v3892 = vld [vmem:[#allocation9 + $0xc] sm:$0xf]
    %v3893 = vld [vmem:[#allocation9 + $0x10] sm:$0xf]
    %v3894 = vld [vmem:[#allocation9 + $0x14] sm:$0xf]
    %v3895 = vld [vmem:[#allocation9 + $0x18] sm:$0xf]
    %v3896 = vld [vmem:[#allocation9 + $0x1c] sm:$0xf]
    %v3897 = vld [vmem:[#allocation9 + $0x20] sm:$0xf]
    %v3898 = vld [vmem:[#allocation9 + $0x24] sm:$0xf]
    %v3899 = vld [vmem:[#allocation9 + $0x28] sm:$0xf]
    %v3900 = vld [vmem:[#allocation9 + $0x2c] sm:$0xf]
    %v3901 = vld [vmem:[#allocation9 + $0x30] sm:$0xf]
    %v3902 = vld [vmem:[#allocation9 + $0x34] sm:$0xf]
    %v3903 = vld [vmem:[#allocation9 + $0x38] sm:$0xf]
    %v3904 = vld [vmem:[#allocation9 + $0x3c] sm:$0xf]
    %v3905 = vld [vmem:[#allocation3 + $0x4] sm:$0x1]
    %v3906 = vld [vmem:[#allocation3 + $0xc] sm:$0x1]
    %v3907 = vld [vmem:[#allocation3 + $0x14] sm:$0x1]
    %v3908 = vld [vmem:[#allocation3 + $0x1c] sm:$0x1]
    %v3909 = vld [vmem:[#allocation3 + $0x24] sm:$0x1]
    %v3910 = vld [vmem:[#allocation3 + $0x2c] sm:$0x1]
    %v3911 = vld [vmem:[#allocation3 + $0x34] sm:$0x1]
    %v3912 = vld [vmem:[#allocation3 + $0x3c] sm:$0x1]
    %v3913 = vld [vmem:[#allocation3 + $0x54] sm:$0x1]
    %v3914 = vld [vmem:[#allocation3 + $0x5c] sm:$0x1]
    %v3915 = vld [vmem:[#allocation3 + $0x64] sm:$0x1]
    %v3916 = vld [vmem:[#allocation3 + $0x6c] sm:$0x1]
    %v3917 = vld [vmem:[#allocation3 + $0x74] sm:$0x1]
    %v3918 = vld [vmem:[#allocation3 + $0x7c] sm:$0x1]
    %v3919 = vld [vmem:[#allocation3 + $0x84] sm:$0x1]
    %v3920 = vld [vmem:[#allocation3 + $0x8c] sm:$0x1]
    %v3922 = vshrl.u32 %v3873, 16
    %v3924 = vrot.slane %v3922, 4
    %v3925 = vshll.u32 %v3873, 16
    %v3927 = vrot.slane %v3925, 5
    %v3928 = vor.u32 %v3924, %v3927
    %v3929 = vrot.slane %v3928, 4
    %v3931 = vshll.u32 %v3905, 16
    %v3933 = vrot.slane %v3931, 5
    %v3934 = vsel %vm860, %v3929, %v3933
    %v3936 = vshrl.u32 %v3874, 16
    %v3938 = vrot.slane %v3936, 4
    %v3939 = vshll.u32 %v3874, 16
    %v3941 = vrot.slane %v3939, 5
    %v3942 = vor.u32 %v3938, %v3941
    %v3943 = vrot.slane %v3942, 4
    %v3945 = vshll.u32 %v3906, 16
    %v3947 = vrot.slane %v3945, 5
    %v3948 = vsel %vm860, %v3943, %v3947
    %v3950 = vshrl.u32 %v3875, 16
    %v3952 = vrot.slane %v3950, 4
    %v3953 = vshll.u32 %v3875, 16
    %v3955 = vrot.slane %v3953, 5
    %v3956 = vor.u32 %v3952, %v3955
    %v3957 = vrot.slane %v3956, 4
    %v3959 = vshll.u32 %v3907, 16
    %v3961 = vrot.slane %v3959, 5
    %v3962 = vsel %vm860, %v3957, %v3961
    %v3964 = vshrl.u32 %v3876, 16
    %v3966 = vrot.slane %v3964, 4
    %v3967 = vshll.u32 %v3876, 16
    %v3969 = vrot.slane %v3967, 5
    %v3970 = vor.u32 %v3966, %v3969
    %v3971 = vrot.slane %v3970, 4
    %v3973 = vshll.u32 %v3908, 16
    %v3975 = vrot.slane %v3973, 5
    %v3976 = vsel %vm860, %v3971, %v3975
    %v3978 = vshrl.u32 %v3877, 16
    %v3980 = vrot.slane %v3978, 4
    %v3981 = vshll.u32 %v3877, 16
    %v3983 = vrot.slane %v3981, 5
    %v3984 = vor.u32 %v3980, %v3983
    %v3985 = vrot.slane %v3984, 4
    %v3987 = vshll.u32 %v3909, 16
    %v3989 = vrot.slane %v3987, 5
    %v3990 = vsel %vm860, %v3985, %v3989
    %v3992 = vshrl.u32 %v3878, 16
    %v3994 = vrot.slane %v3992, 4
    %v3995 = vshll.u32 %v3878, 16
    %v3997 = vrot.slane %v3995, 5
    %v3998 = vor.u32 %v3994, %v3997
    %v3999 = vrot.slane %v3998, 4
    %v4001 = vshll.u32 %v3910, 16
    %v4003 = vrot.slane %v4001, 5
    %v4004 = vsel %vm860, %v3999, %v4003
    %v4006 = vshrl.u32 %v3879, 16
    %v4008 = vrot.slane %v4006, 4
    %v4009 = vshll.u32 %v3879, 16
    %v4011 = vrot.slane %v4009, 5
    %v4012 = vor.u32 %v4008, %v4011
    %v4013 = vrot.slane %v4012, 4
    %v4015 = vshll.u32 %v3911, 16
    %v4017 = vrot.slane %v4015, 5
    %v4018 = vsel %vm860, %v4013, %v4017
    %v4020 = vshrl.u32 %v3880, 16
    %v4022 = vrot.slane %v4020, 4
    %v4023 = vshll.u32 %v3880, 16
    %v4025 = vrot.slane %v4023, 5
    %v4026 = vor.u32 %v4022, %v4025
    %v4027 = vrot.slane %v4026, 4
    %v4029 = vshll.u32 %v3912, 16
    %v4031 = vrot.slane %v4029, 5
    %v4032 = vsel %vm860, %v4027, %v4031
    %v4034 = vshrl.u32 %v3881, 16
    %v4036 = vrot.slane %v4034, 4
    %v4037 = vshll.u32 %v3881, 16
    %v4039 = vrot.slane %v4037, 5
    %v4040 = vor.u32 %v4036, %v4039
    %v4041 = vrot.slane %v4040, 4
    %v4043 = vshll.u32 %v3913, 16
    %v4045 = vrot.slane %v4043, 5
    %v4046 = vsel %vm860, %v4041, %v4045
    %v4048 = vshrl.u32 %v3882, 16
    %v4050 = vrot.slane %v4048, 4
    %v4051 = vshll.u32 %v3882, 16
    %v4053 = vrot.slane %v4051, 5
    %v4054 = vor.u32 %v4050, %v4053
    %v4055 = vrot.slane %v4054, 4
    %v4057 = vshll.u32 %v3914, 16
    %v4059 = vrot.slane %v4057, 5
    %v4060 = vsel %vm860, %v4055, %v4059
    %v4062 = vshrl.u32 %v3883, 16
    %v4064 = vrot.slane %v4062, 4
    %v4065 = vshll.u32 %v3883, 16
    %v4067 = vrot.slane %v4065, 5
    %v4068 = vor.u32 %v4064, %v4067
    %v4069 = vrot.slane %v4068, 4
    %v4071 = vshll.u32 %v3915, 16
    %v4073 = vrot.slane %v4071, 5
    %v4074 = vsel %vm860, %v4069, %v4073
    %v4076 = vshrl.u32 %v3884, 16
    %v4078 = vrot.slane %v4076, 4
    %v4079 = vshll.u32 %v3884, 16
    %v4081 = vrot.slane %v4079, 5
    %v4082 = vor.u32 %v4078, %v4081
    %v4083 = vrot.slane %v4082, 4
    %v4085 = vshll.u32 %v3916, 16
    %v4087 = vrot.slane %v4085, 5
    %v4088 = vsel %vm860, %v4083, %v4087
    %v4090 = vshrl.u32 %v3885, 16
    %v4092 = vrot.slane %v4090, 4
    %v4093 = vshll.u32 %v3885, 16
    %v4095 = vrot.slane %v4093, 5
    %v4096 = vor.u32 %v4092, %v4095
    %v4097 = vrot.slane %v4096, 4
    %v4099 = vshll.u32 %v3917, 16
    %v4101 = vrot.slane %v4099, 5
    %v4102 = vsel %vm860, %v4097, %v4101
    %v4104 = vshrl.u32 %v3886, 16
    %v4106 = vrot.slane %v4104, 4
    %v4107 = vshll.u32 %v3886, 16
    %v4109 = vrot.slane %v4107, 5
    %v4110 = vor.u32 %v4106, %v4109
    %v4111 = vrot.slane %v4110, 4
    %v4113 = vshll.u32 %v3918, 16
    %v4115 = vrot.slane %v4113, 5
    %v4116 = vsel %vm860, %v4111, %v4115
    %v4118 = vshrl.u32 %v3887, 16
    %v4120 = vrot.slane %v4118, 4
    %v4121 = vshll.u32 %v3887, 16
    %v4123 = vrot.slane %v4121, 5
    %v4124 = vor.u32 %v4120, %v4123
    %v4125 = vrot.slane %v4124, 4
    %v4127 = vshll.u32 %v3919, 16
    %v4129 = vrot.slane %v4127, 5
    %v4130 = vsel %vm860, %v4125, %v4129
    %v4132 = vshrl.u32 %v3888, 16
    %v4134 = vrot.slane %v4132, 4
    %v4135 = vshll.u32 %v3888, 16
    %v4137 = vrot.slane %v4135, 5
    %v4138 = vor.u32 %v4134, %v4137
    %v4139 = vrot.slane %v4138, 4
    %v4141 = vshll.u32 %v3920, 16
    %v4143 = vrot.slane %v4141, 5
    %v4144 = vsel %vm860, %v4139, %v4143
    %v4145 = vld [vmem:[#allocation9 + $0x40] sm:$0xf]
    %v4146 = vld [vmem:[#allocation9 + $0x44] sm:$0xf]
    %v4147 = vld [vmem:[#allocation9 + $0x48] sm:$0xf]
    %v4148 = vld [vmem:[#allocation9 + $0x4c] sm:$0xf]
    %v4149 = vld [vmem:[#allocation9 + $0x50] sm:$0xf]
    %v4150 = vld [vmem:[#allocation9 + $0x54] sm:$0xf]
    %v4151 = vld [vmem:[#allocation9 + $0x58] sm:$0xf]
    %v4152 = vld [vmem:[#allocation9 + $0x5c] sm:$0xf]
    %v4153 = vld [vmem:[#allocation9 + $0x60] sm:$0xf]
    %v4154 = vld [vmem:[#allocation9 + $0x64] sm:$0xf]
    %v4155 = vld [vmem:[#allocation9 + $0x68] sm:$0xf]
    %v4156 = vld [vmem:[#allocation9 + $0x6c] sm:$0xf]
    %v4157 = vld [vmem:[#allocation9 + $0x70] sm:$0xf]
    %v4158 = vld [vmem:[#allocation9 + $0x74] sm:$0xf]
    %v4159 = vld [vmem:[#allocation9 + $0x78] sm:$0xf]
    %v4160 = vld [vmem:[#allocation9 + $0x7c] sm:$0xf]
    %v4161 = vunpack.c.l.b16 %v3934
    %v4162 = vunpack.c.l.b16 %v3948
    %v4163 = vunpack.c.l.b16 %v3962
    %v4164 = vunpack.c.l.b16 %v3976
    %v4165 = vunpack.c.l.b16 %v3990
    %v4166 = vunpack.c.l.b16 %v4004
    %v4167 = vunpack.c.l.b16 %v4018
    %v4168 = vunpack.c.l.b16 %v4032
    %v4169 = vunpack.c.l.b16 %v4046
    %v4170 = vunpack.c.l.b16 %v4060
    %v4171 = vunpack.c.l.b16 %v4074
    %v4172 = vunpack.c.l.b16 %v4088
    %v4173 = vunpack.c.l.b16 %v4102
    %v4174 = vunpack.c.l.b16 %v4116
    %v4175 = vunpack.c.l.b16 %v4130
    %v4176 = vunpack.c.l.b16 %v4144
    %v4177 = vpack.c.b16 %v4162, %v4161
    %v4178 = vpack.c.b16 %v4164, %v4163
    %v4179 = vpack.c.b16 %v4166, %v4165
    %v4180 = vpack.c.b16 %v4168, %v4167
    %v4181 = vpack.c.b16 %v4170, %v4169
    %v4182 = vpack.c.b16 %v4172, %v4171
    %v4183 = vpack.c.b16 %v4174, %v4173
    %v4184 = vpack.c.b16 %v4176, %v4175
    %v4209 = vunpack.c.l.b16 %v4145
    %v4210 = vunpack.c.l.b16 %v4146
    %v4211 = vunpack.c.l.b16 %v4147
    %v4212 = vunpack.c.l.b16 %v4148
    %v4213 = vunpack.c.l.b16 %v4149
    %v4214 = vunpack.c.l.b16 %v4150
    %v4215 = vunpack.c.l.b16 %v4151
    %v4216 = vunpack.c.l.b16 %v4152
    %v4217 = vunpack.c.l.b16 %v4153
    %v4218 = vunpack.c.l.b16 %v4154
    %v4219 = vunpack.c.l.b16 %v4155
    %v4220 = vunpack.c.l.b16 %v4156
    %v4221 = vunpack.c.l.b16 %v4157
    %v4222 = vunpack.c.l.b16 %v4158
    %v4223 = vunpack.c.l.b16 %v4159
    %v4224 = vunpack.c.l.b16 %v4160
    %v4225 = vpack.c.b16 %v4210, %v4209
    %v4226 = vpack.c.b16 %v4212, %v4211
    %v4227 = vpack.c.b16 %v4214, %v4213
    %v4228 = vpack.c.b16 %v4216, %v4215
    %v4229 = vpack.c.b16 %v4218, %v4217
    %v4230 = vpack.c.b16 %v4220, %v4219
    %v4231 = vpack.c.b16 %v4222, %v4221
    %v4232 = vpack.c.b16 %v4224, %v4223
    %4241 = vmatpush.bf16.msra.mxu0 %v4232
    %4242 = vmatpush.bf16.msra.mxu0 %v4231
    %4243 = vmatpush.bf16.msra.mxu0 %v4230
    %4244 = vmatpush.bf16.msra.mxu0 %v4229
    %4245 = vmatpush.bf16.msra.mxu0 %v4228
    %4246 = vmatpush.bf16.msra.mxu0 %v4227
    %4247 = vmatpush.bf16.msra.mxu0 %v4226
    %4248 = vmatpush.bf16.msra.mxu0 %v4225
    %4249 = vmatmul.bf16.gmra.mxu0 %v4177
    %v4250 = vpop.f32.mrf.mxu0
    %v4251 = vadd.f32 0.0, %v4250
    %v4252 = vpop.f32.mrf.mxu0
    %v4253 = vadd.f32 0.0, %v4252
    %4254 = vmatmul.bf16.gmra.mxu0 %v4178
    %v4255 = vpop.f32.mrf.mxu0
    %v4256 = vadd.f32 0.0, %v4255
    %v4257 = vpop.f32.mrf.mxu0
    %v4258 = vadd.f32 0.0, %v4257
    %4259 = vmatmul.bf16.gmra.mxu0 %v4179
    %v4260 = vpop.f32.mrf.mxu0
    %v4261 = vadd.f32 0.0, %v4260
    %v4262 = vpop.f32.mrf.mxu0
    %v4263 = vadd.f32 0.0, %v4262
    %4264 = vmatmul.bf16.gmra.mxu0 %v4180
    %v4265 = vpop.f32.mrf.mxu0
    %v4266 = vadd.f32 0.0, %v4265
    %v4267 = vpop.f32.mrf.mxu0
    %v4268 = vadd.f32 0.0, %v4267
    %4269 = vmatmul.bf16.gmra.mxu0 %v4181
    %v4270 = vpop.f32.mrf.mxu0
    %v4271 = vadd.f32 0.0, %v4270
    %v4272 = vpop.f32.mrf.mxu0
    %v4273 = vadd.f32 0.0, %v4272
    %4274 = vmatmul.bf16.gmra.mxu0 %v4182
    %v4275 = vpop.f32.mrf.mxu0
    %v4276 = vadd.f32 0.0, %v4275
    %v4277 = vpop.f32.mrf.mxu0
    %v4278 = vadd.f32 0.0, %v4277
    %4279 = vmatmul.bf16.gmra.mxu0 %v4183
    %v4280 = vpop.f32.mrf.mxu0
    %v4281 = vadd.f32 0.0, %v4280
    %v4282 = vpop.f32.mrf.mxu0
    %v4283 = vadd.f32 0.0, %v4282
    %4284 = vmatmul.bf16.gmra.mxu0 %v4184
    %v4285 = vpop.f32.mrf.mxu0
    %v4286 = vadd.f32 0.0, %v4285
    %v4287 = vpop.f32.mrf.mxu0
    %v4288 = vadd.f32 0.0, %v4287
    %4289 = vdwg.mxu0
    %v4306 = vunpack.c.l.b16 %v3873
    %v4307 = vunpack.c.l.b16 %v3874
    %v4308 = vunpack.c.l.b16 %v3875
    %v4309 = vunpack.c.l.b16 %v3876
    %v4310 = vunpack.c.l.b16 %v3877
    %v4311 = vunpack.c.l.b16 %v3878
    %v4312 = vunpack.c.l.b16 %v3879
    %v4313 = vunpack.c.l.b16 %v3880
    %v4314 = vunpack.c.l.b16 %v3881
    %v4315 = vunpack.c.l.b16 %v3882
    %v4316 = vunpack.c.l.b16 %v3883
    %v4317 = vunpack.c.l.b16 %v3884
    %v4318 = vunpack.c.l.b16 %v3885
    %v4319 = vunpack.c.l.b16 %v3886
    %v4320 = vunpack.c.l.b16 %v3887
    %v4321 = vunpack.c.l.b16 %v3888
    %v4322 = vpack.c.b16 %v4307, %v4306
    %v4323 = vpack.c.b16 %v4309, %v4308
    %v4324 = vpack.c.b16 %v4311, %v4310
    %v4325 = vpack.c.b16 %v4313, %v4312
    %v4326 = vpack.c.b16 %v4315, %v4314
    %v4327 = vpack.c.b16 %v4317, %v4316
    %v4328 = vpack.c.b16 %v4319, %v4318
    %v4329 = vpack.c.b16 %v4321, %v4320
    %v4354 = vunpack.c.l.b16 %v3889
    %v4355 = vunpack.c.l.b16 %v3890
    %v4356 = vunpack.c.l.b16 %v3891
    %v4357 = vunpack.c.l.b16 %v3892
    %v4358 = vunpack.c.l.b16 %v3893
    %v4359 = vunpack.c.l.b16 %v3894
    %v4360 = vunpack.c.l.b16 %v3895
    %v4361 = vunpack.c.l.b16 %v3896
    %v4362 = vunpack.c.l.b16 %v3897
    %v4363 = vunpack.c.l.b16 %v3898
    %v4364 = vunpack.c.l.b16 %v3899
    %v4365 = vunpack.c.l.b16 %v3900
    %v4366 = vunpack.c.l.b16 %v3901
    %v4367 = vunpack.c.l.b16 %v3902
    %v4368 = vunpack.c.l.b16 %v3903
    %v4369 = vunpack.c.l.b16 %v3904
    %v4370 = vpack.c.b16 %v4355, %v4354
    %v4371 = vpack.c.b16 %v4357, %v4356
    %v4372 = vpack.c.b16 %v4359, %v4358
    %v4373 = vpack.c.b16 %v4361, %v4360
    %v4374 = vpack.c.b16 %v4363, %v4362
    %v4375 = vpack.c.b16 %v4365, %v4364
    %v4376 = vpack.c.b16 %v4367, %v4366
    %v4377 = vpack.c.b16 %v4369, %v4368
    %4386 = vmatpush.bf16.msra.mxu0 %v4377
    %4387 = vmatpush.bf16.msra.mxu0 %v4376
    %4388 = vmatpush.bf16.msra.mxu0 %v4375
    %4389 = vmatpush.bf16.msra.mxu0 %v4374
    %4390 = vmatpush.bf16.msra.mxu0 %v4373
    %4391 = vmatpush.bf16.msra.mxu0 %v4372
    %4392 = vmatpush.bf16.msra.mxu0 %v4371
    %4393 = vmatpush.bf16.msra.mxu0 %v4370
    %4394 = vmatmul.bf16.gmra.mxu0 %v4322
    %v4395 = vpop.f32.mrf.mxu0
    %v4396 = vadd.f32 %v4251, %v4395
    %v4397 = vpop.f32.mrf.mxu0
    %v4398 = vadd.f32 %v4253, %v4397
    %4399 = vmatmul.bf16.gmra.mxu0 %v4323
    %v4400 = vpop.f32.mrf.mxu0
    %v4401 = vadd.f32 %v4256, %v4400
    %v4402 = vpop.f32.mrf.mxu0
    %v4403 = vadd.f32 %v4258, %v4402
    %4404 = vmatmul.bf16.gmra.mxu0 %v4324
    %v4405 = vpop.f32.mrf.mxu0
    %v4406 = vadd.f32 %v4261, %v4405
    %v4407 = vpop.f32.mrf.mxu0
    %v4408 = vadd.f32 %v4263, %v4407
    %4409 = vmatmul.bf16.gmra.mxu0 %v4325
    %v4410 = vpop.f32.mrf.mxu0
    %v4411 = vadd.f32 %v4266, %v4410
    %v4412 = vpop.f32.mrf.mxu0
    %v4413 = vadd.f32 %v4268, %v4412
    %4414 = vmatmul.bf16.gmra.mxu0 %v4326
    %v4415 = vpop.f32.mrf.mxu0
    %v4416 = vadd.f32 %v4271, %v4415
    %v4417 = vpop.f32.mrf.mxu0
    %v4418 = vadd.f32 %v4273, %v4417
    %4419 = vmatmul.bf16.gmra.mxu0 %v4327
    %v4420 = vpop.f32.mrf.mxu0
    %v4421 = vadd.f32 %v4276, %v4420
    %v4422 = vpop.f32.mrf.mxu0
    %v4423 = vadd.f32 %v4278, %v4422
    %4424 = vmatmul.bf16.gmra.mxu0 %v4328
    %v4425 = vpop.f32.mrf.mxu0
    %v4426 = vadd.f32 %v4281, %v4425
    %v4427 = vpop.f32.mrf.mxu0
    %v4428 = vadd.f32 %v4283, %v4427
    %4429 = vmatmul.bf16.gmra.mxu0 %v4329
    %v4430 = vpop.f32.mrf.mxu0
    %v4431 = vadd.f32 %v4286, %v4430
    %v4432 = vpop.f32.mrf.mxu0
    %v4433 = vadd.f32 %v4288, %v4432
    %4434 = vdwg.mxu0
    %v4435 = vld [vmem:[#allocation3] sm:$0xe]
    %v4436 = vld [vmem:[#allocation3 + $0x8] sm:$0xe]
    %v4437 = vld [vmem:[#allocation3 + $0x10] sm:$0xe]
    %v4438 = vld [vmem:[#allocation3 + $0x18] sm:$0xe]
    %v4439 = vld [vmem:[#allocation3 + $0x20] sm:$0xe]
    %v4440 = vld [vmem:[#allocation3 + $0x28] sm:$0xe]
    %v4441 = vld [vmem:[#allocation3 + $0x30] sm:$0xe]
    %v4442 = vld [vmem:[#allocation3 + $0x38] sm:$0xe]
    %v4443 = vld [vmem:[#allocation3 + $0x50] sm:$0xe]
    %v4444 = vld [vmem:[#allocation3 + $0x58] sm:$0xe]
    %v4445 = vld [vmem:[#allocation3 + $0x60] sm:$0xe]
    %v4446 = vld [vmem:[#allocation3 + $0x68] sm:$0xe]
    %v4447 = vld [vmem:[#allocation3 + $0x70] sm:$0xe]
    %v4448 = vld [vmem:[#allocation3 + $0x78] sm:$0xe]
    %v4449 = vld [vmem:[#allocation3 + $0x80] sm:$0xe]
    %v4450 = vld [vmem:[#allocation3 + $0x88] sm:$0xe]
    %v4483 = vrot.slane %v4435, 5
    %v4484 = vrot.slane %v4483, 4
    %v4485 = vrot.slane %v3905, 5
    %v4486 = vsel %vm1425, %v4484, %v4485
    %v4487 = vrot.slane %v4436, 5
    %v4488 = vrot.slane %v4487, 4
    %v4489 = vrot.slane %v3906, 5
    %v4490 = vsel %vm1425, %v4488, %v4489
    %v4491 = vrot.slane %v4437, 5
    %v4492 = vrot.slane %v4491, 4
    %v4493 = vrot.slane %v3907, 5
    %v4494 = vsel %vm1425, %v4492, %v4493
    %v4495 = vrot.slane %v4438, 5
    %v4496 = vrot.slane %v4495, 4
    %v4497 = vrot.slane %v3908, 5
    %v4498 = vsel %vm1425, %v4496, %v4497
    %v4499 = vrot.slane %v4439, 5
    %v4500 = vrot.slane %v4499, 4
    %v4501 = vrot.slane %v3909, 5
    %v4502 = vsel %vm1425, %v4500, %v4501
    %v4503 = vrot.slane %v4440, 5
    %v4504 = vrot.slane %v4503, 4
    %v4505 = vrot.slane %v3910, 5
    %v4506 = vsel %vm1425, %v4504, %v4505
    %v4507 = vrot.slane %v4441, 5
    %v4508 = vrot.slane %v4507, 4
    %v4509 = vrot.slane %v3911, 5
    %v4510 = vsel %vm1425, %v4508, %v4509
    %v4511 = vrot.slane %v4442, 5
    %v4512 = vrot.slane %v4511, 4
    %v4513 = vrot.slane %v3912, 5
    %v4514 = vsel %vm1425, %v4512, %v4513
    %v4515 = vrot.slane %v4443, 5
    %v4516 = vrot.slane %v4515, 4
    %v4517 = vrot.slane %v3913, 5
    %v4518 = vsel %vm1425, %v4516, %v4517
    %v4519 = vrot.slane %v4444, 5
    %v4520 = vrot.slane %v4519, 4
    %v4521 = vrot.slane %v3914, 5
    %v4522 = vsel %vm1425, %v4520, %v4521
    %v4523 = vrot.slane %v4445, 5
    %v4524 = vrot.slane %v4523, 4
    %v4525 = vrot.slane %v3915, 5
    %v4526 = vsel %vm1425, %v4524, %v4525
    %v4527 = vrot.slane %v4446, 5
    %v4528 = vrot.slane %v4527, 4
    %v4529 = vrot.slane %v3916, 5
    %v4530 = vsel %vm1425, %v4528, %v4529
    %v4531 = vrot.slane %v4447, 5
    %v4532 = vrot.slane %v4531, 4
    %v4533 = vrot.slane %v3917, 5
    %v4534 = vsel %vm1425, %v4532, %v4533
    %v4535 = vrot.slane %v4448, 5
    %v4536 = vrot.slane %v4535, 4
    %v4537 = vrot.slane %v3918, 5
    %v4538 = vsel %vm1425, %v4536, %v4537
    %v4539 = vrot.slane %v4449, 5
    %v4540 = vrot.slane %v4539, 4
    %v4541 = vrot.slane %v3919, 5
    %v4542 = vsel %vm1425, %v4540, %v4541
    %v4543 = vrot.slane %v4450, 5
    %v4544 = vrot.slane %v4543, 4
    %v4545 = vrot.slane %v3920, 5
    %v4546 = vsel %vm1425, %v4544, %v4545
    %v4547 = vld [vmem:[#allocation9 + $0x80] sm:$0xf]
    %v4548 = vld [vmem:[#allocation9 + $0x84] sm:$0xf]
    %v4549 = vld [vmem:[#allocation9 + $0x88] sm:$0xf]
    %v4550 = vld [vmem:[#allocation9 + $0x8c] sm:$0xf]
    %v4551 = vld [vmem:[#allocation9 + $0x90] sm:$0xf]
    %v4552 = vld [vmem:[#allocation9 + $0x94] sm:$0xf]
    %v4553 = vld [vmem:[#allocation9 + $0x98] sm:$0xf]
    %v4554 = vld [vmem:[#allocation9 + $0x9c] sm:$0xf]
    %v4555 = vld [vmem:[#allocation9 + $0xa0] sm:$0xf]
    %v4556 = vld [vmem:[#allocation9 + $0xa4] sm:$0xf]
    %v4557 = vld [vmem:[#allocation9 + $0xa8] sm:$0xf]
    %v4558 = vld [vmem:[#allocation9 + $0xac] sm:$0xf]
    %v4559 = vld [vmem:[#allocation9 + $0xb0] sm:$0xf]
    %v4560 = vld [vmem:[#allocation9 + $0xb4] sm:$0xf]
    %v4561 = vld [vmem:[#allocation9 + $0xb8] sm:$0xf]
    %v4562 = vld [vmem:[#allocation9 + $0xbc] sm:$0xf]
    %v4563 = vunpack.c.l.b16 %v4486
    %v4564 = vunpack.c.l.b16 %v4490
    %v4565 = vunpack.c.l.b16 %v4494
    %v4566 = vunpack.c.l.b16 %v4498
    %v4567 = vunpack.c.l.b16 %v4502
    %v4568 = vunpack.c.l.b16 %v4506
    %v4569 = vunpack.c.l.b16 %v4510
    %v4570 = vunpack.c.l.b16 %v4514
    %v4571 = vunpack.c.l.b16 %v4518
    %v4572 = vunpack.c.l.b16 %v4522
    %v4573 = vunpack.c.l.b16 %v4526
    %v4574 = vunpack.c.l.b16 %v4530
    %v4575 = vunpack.c.l.b16 %v4534
    %v4576 = vunpack.c.l.b16 %v4538
    %v4577 = vunpack.c.l.b16 %v4542
    %v4578 = vunpack.c.l.b16 %v4546
    %v4579 = vpack.c.b16 %v4564, %v4563
    %v4580 = vpack.c.b16 %v4566, %v4565
    %v4581 = vpack.c.b16 %v4568, %v4567
    %v4582 = vpack.c.b16 %v4570, %v4569
    %v4583 = vpack.c.b16 %v4572, %v4571
    %v4584 = vpack.c.b16 %v4574, %v4573
    %v4585 = vpack.c.b16 %v4576, %v4575
    %v4586 = vpack.c.b16 %v4578, %v4577
    %v4611 = vunpack.c.l.b16 %v4547
    %v4612 = vunpack.c.l.b16 %v4548
    %v4613 = vunpack.c.l.b16 %v4549
    %v4614 = vunpack.c.l.b16 %v4550
    %v4615 = vunpack.c.l.b16 %v4551
    %v4616 = vunpack.c.l.b16 %v4552
    %v4617 = vunpack.c.l.b16 %v4553
    %v4618 = vunpack.c.l.b16 %v4554
    %v4619 = vunpack.c.l.b16 %v4555
    %v4620 = vunpack.c.l.b16 %v4556
    %v4621 = vunpack.c.l.b16 %v4557
    %v4622 = vunpack.c.l.b16 %v4558
    %v4623 = vunpack.c.l.b16 %v4559
    %v4624 = vunpack.c.l.b16 %v4560
    %v4625 = vunpack.c.l.b16 %v4561
    %v4626 = vunpack.c.l.b16 %v4562
    %v4627 = vpack.c.b16 %v4612, %v4611
    %v4628 = vpack.c.b16 %v4614, %v4613
    %v4629 = vpack.c.b16 %v4616, %v4615
    %v4630 = vpack.c.b16 %v4618, %v4617
    %v4631 = vpack.c.b16 %v4620, %v4619
    %v4632 = vpack.c.b16 %v4622, %v4621
    %v4633 = vpack.c.b16 %v4624, %v4623
    %v4634 = vpack.c.b16 %v4626, %v4625
    %4643 = vmatpush.bf16.msra.mxu0 %v4634
    %4644 = vmatpush.bf16.msra.mxu0 %v4633
    %4645 = vmatpush.bf16.msra.mxu0 %v4632
    %4646 = vmatpush.bf16.msra.mxu0 %v4631
    %4647 = vmatpush.bf16.msra.mxu0 %v4630
    %4648 = vmatpush.bf16.msra.mxu0 %v4629
    %4649 = vmatpush.bf16.msra.mxu0 %v4628
    %4650 = vmatpush.bf16.msra.mxu0 %v4627
    %4651 = vmatmul.bf16.gmra.mxu0 %v4579
    %v4652 = vpop.f32.mrf.mxu0
    %v4653 = vadd.f32 0.0, %v4652
    %v4654 = vpop.f32.mrf.mxu0
    %v4655 = vadd.f32 0.0, %v4654
    %4656 = vmatmul.bf16.gmra.mxu0 %v4580
    %v4657 = vpop.f32.mrf.mxu0
    %v4658 = vadd.f32 0.0, %v4657
    %v4659 = vpop.f32.mrf.mxu0
    %v4660 = vadd.f32 0.0, %v4659
    %4661 = vmatmul.bf16.gmra.mxu0 %v4581
    %v4662 = vpop.f32.mrf.mxu0
    %v4663 = vadd.f32 0.0, %v4662
    %v4664 = vpop.f32.mrf.mxu0
    %v4665 = vadd.f32 0.0, %v4664
    %4666 = vmatmul.bf16.gmra.mxu0 %v4582
    %v4667 = vpop.f32.mrf.mxu0
    %v4668 = vadd.f32 0.0, %v4667
    %v4669 = vpop.f32.mrf.mxu0
    %v4670 = vadd.f32 0.0, %v4669
    %4671 = vmatmul.bf16.gmra.mxu0 %v4583
    %v4672 = vpop.f32.mrf.mxu0
    %v4673 = vadd.f32 0.0, %v4672
    %v4674 = vpop.f32.mrf.mxu0
    %v4675 = vadd.f32 0.0, %v4674
    %4676 = vmatmul.bf16.gmra.mxu0 %v4584
    %v4677 = vpop.f32.mrf.mxu0
    %v4678 = vadd.f32 0.0, %v4677
    %v4679 = vpop.f32.mrf.mxu0
    %v4680 = vadd.f32 0.0, %v4679
    %4681 = vmatmul.bf16.gmra.mxu0 %v4585
    %v4682 = vpop.f32.mrf.mxu0
    %v4683 = vadd.f32 0.0, %v4682
    %v4684 = vpop.f32.mrf.mxu0
    %v4685 = vadd.f32 0.0, %v4684
    %4686 = vmatmul.bf16.gmra.mxu0 %v4586
    %v4687 = vpop.f32.mrf.mxu0
    %v4688 = vadd.f32 0.0, %v4687
    %v4689 = vpop.f32.mrf.mxu0
    %v4690 = vadd.f32 0.0, %v4689
    %4691 = vdwg.mxu0
    %v4692 = vadd.f32 %v4396, %v4653
    %v4693 = vadd.f32 %v4398, %v4655
    %v4694 = vadd.f32 %v4401, %v4658
    %v4695 = vadd.f32 %v4403, %v4660
    %v4696 = vadd.f32 %v4406, %v4663
    %v4697 = vadd.f32 %v4408, %v4665
    %v4698 = vadd.f32 %v4411, %v4668
    %v4699 = vadd.f32 %v4413, %v4670
    %v4700 = vadd.f32 %v4416, %v4673
    %v4701 = vadd.f32 %v4418, %v4675
    %v4702 = vadd.f32 %v4421, %v4678
    %v4703 = vadd.f32 %v4423, %v4680
    %v4704 = vadd.f32 %v4426, %v4683
    %v4705 = vadd.f32 %v4428, %v4685
    %v4706 = vadd.f32 %v4431, %v4688
    %v4707 = vadd.f32 %v4433, %v4690
    %v4708 = vld [vmem:[%s3776] sm:$0xf]
    %v4709 = vld [vmem:[%s3776 + $0x8] sm:$0xf]
    %v4710 = vld [vmem:[%s3776 + $0x10] sm:$0xf]
    %v4711 = vld [vmem:[%s3776 + $0x18] sm:$0xf]
    %v4712 = vld [vmem:[%s3776 + $0x20] sm:$0xf]
    %v4713 = vld [vmem:[%s3776 + $0x28] sm:$0xf]
    %v4714 = vld [vmem:[%s3776 + $0x30] sm:$0xf]
    %v4715 = vld [vmem:[%s3776 + $0x38] sm:$0xf]
    %v4716 = vld [vmem:[%s3776 + $0x50] sm:$0xf]
    %v4717 = vld [vmem:[%s3776 + $0x58] sm:$0xf]
    %v4718 = vld [vmem:[%s3776 + $0x60] sm:$0xf]
    %v4719 = vld [vmem:[%s3776 + $0x68] sm:$0xf]
    %v4720 = vld [vmem:[%s3776 + $0x70] sm:$0xf]
    %v4721 = vld [vmem:[%s3776 + $0x78] sm:$0xf]
    %v4722 = vld [vmem:[%s3776 + $0x80] sm:$0xf]
    %v4723 = vld [vmem:[%s3776 + $0x88] sm:$0xf]
    %v4724 = vld [vmem:[#allocation9 + $0xc0] sm:$0xf]
    %v4725 = vld [vmem:[#allocation9 + $0xc4] sm:$0xf]
    %v4726 = vld [vmem:[#allocation9 + $0xc8] sm:$0xf]
    %v4727 = vld [vmem:[#allocation9 + $0xcc] sm:$0xf]
    %v4728 = vld [vmem:[#allocation9 + $0xd0] sm:$0xf]
    %v4729 = vld [vmem:[#allocation9 + $0xd4] sm:$0xf]
    %v4730 = vld [vmem:[#allocation9 + $0xd8] sm:$0xf]
    %v4731 = vld [vmem:[#allocation9 + $0xdc] sm:$0xf]
    %v4732 = vld [vmem:[#allocation9 + $0xe0] sm:$0xf]
    %v4733 = vld [vmem:[#allocation9 + $0xe4] sm:$0xf]
    %v4734 = vld [vmem:[#allocation9 + $0xe8] sm:$0xf]
    %v4735 = vld [vmem:[#allocation9 + $0xec] sm:$0xf]
    %v4736 = vld [vmem:[#allocation9 + $0xf0] sm:$0xf]
    %v4737 = vld [vmem:[#allocation9 + $0xf4] sm:$0xf]
    %v4738 = vld [vmem:[#allocation9 + $0xf8] sm:$0xf]
    %v4739 = vld [vmem:[#allocation9 + $0xfc] sm:$0xf]
    %v4756 = vunpack.c.l.b16 %v4708
    %v4757 = vunpack.c.l.b16 %v4709
    %v4758 = vunpack.c.l.b16 %v4710
    %v4759 = vunpack.c.l.b16 %v4711
    %v4760 = vunpack.c.l.b16 %v4712
    %v4761 = vunpack.c.l.b16 %v4713
    %v4762 = vunpack.c.l.b16 %v4714
    %v4763 = vunpack.c.l.b16 %v4715
    %v4764 = vunpack.c.l.b16 %v4716
    %v4765 = vunpack.c.l.b16 %v4717
    %v4766 = vunpack.c.l.b16 %v4718
    %v4767 = vunpack.c.l.b16 %v4719
    %v4768 = vunpack.c.l.b16 %v4720
    %v4769 = vunpack.c.l.b16 %v4721
    %v4770 = vunpack.c.l.b16 %v4722
    %v4771 = vunpack.c.l.b16 %v4723
    %v4772 = vpack.c.b16 %v4757, %v4756
    %v4773 = vpack.c.b16 %v4759, %v4758
    %v4774 = vpack.c.b16 %v4761, %v4760
    %v4775 = vpack.c.b16 %v4763, %v4762
    %v4776 = vpack.c.b16 %v4765, %v4764
    %v4777 = vpack.c.b16 %v4767, %v4766
    %v4778 = vpack.c.b16 %v4769, %v4768
    %v4779 = vpack.c.b16 %v4771, %v4770
    %v4804 = vunpack.c.l.b16 %v4724
    %v4805 = vunpack.c.l.b16 %v4725
    %v4806 = vunpack.c.l.b16 %v4726
    %v4807 = vunpack.c.l.b16 %v4727
    %v4808 = vunpack.c.l.b16 %v4728
    %v4809 = vunpack.c.l.b16 %v4729
    %v4810 = vunpack.c.l.b16 %v4730
    %v4811 = vunpack.c.l.b16 %v4731
    %v4812 = vunpack.c.l.b16 %v4732
    %v4813 = vunpack.c.l.b16 %v4733
    %v4814 = vunpack.c.l.b16 %v4734
    %v4815 = vunpack.c.l.b16 %v4735
    %v4816 = vunpack.c.l.b16 %v4736
    %v4817 = vunpack.c.l.b16 %v4737
    %v4818 = vunpack.c.l.b16 %v4738
    %v4819 = vunpack.c.l.b16 %v4739
    %v4820 = vpack.c.b16 %v4805, %v4804
    %v4821 = vpack.c.b16 %v4807, %v4806
    %v4822 = vpack.c.b16 %v4809, %v4808
    %v4823 = vpack.c.b16 %v4811, %v4810
    %v4824 = vpack.c.b16 %v4813, %v4812
    %v4825 = vpack.c.b16 %v4815, %v4814
    %v4826 = vpack.c.b16 %v4817, %v4816
    %v4827 = vpack.c.b16 %v4819, %v4818
    %4836 = vmatpush.bf16.msra.mxu0 %v4827
    %4837 = vmatpush.bf16.msra.mxu0 %v4826
    %4838 = vmatpush.bf16.msra.mxu0 %v4825
    %4839 = vmatpush.bf16.msra.mxu0 %v4824
    %4840 = vmatpush.bf16.msra.mxu0 %v4823
    %4841 = vmatpush.bf16.msra.mxu0 %v4822
    %4842 = vmatpush.bf16.msra.mxu0 %v4821
    %4843 = vmatpush.bf16.msra.mxu0 %v4820
    %4844 = vmatmul.bf16.gmra.mxu0 %v4772
    %v4845 = vpop.f32.mrf.mxu0
    %v4846 = vadd.f32 0.0, %v4845
    %v4847 = vpop.f32.mrf.mxu0
    %v4848 = vadd.f32 0.0, %v4847
    %4849 = vmatmul.bf16.gmra.mxu0 %v4773
    %v4850 = vpop.f32.mrf.mxu0
    %v4851 = vadd.f32 0.0, %v4850
    %v4852 = vpop.f32.mrf.mxu0
    %v4853 = vadd.f32 0.0, %v4852
    %4854 = vmatmul.bf16.gmra.mxu0 %v4774
    %v4855 = vpop.f32.mrf.mxu0
    %v4856 = vadd.f32 0.0, %v4855
    %v4857 = vpop.f32.mrf.mxu0
    %v4858 = vadd.f32 0.0, %v4857
    %4859 = vmatmul.bf16.gmra.mxu0 %v4775
    %v4860 = vpop.f32.mrf.mxu0
    %v4861 = vadd.f32 0.0, %v4860
    %v4862 = vpop.f32.mrf.mxu0
    %v4863 = vadd.f32 0.0, %v4862
    %4864 = vmatmul.bf16.gmra.mxu0 %v4776
    %v4865 = vpop.f32.mrf.mxu0
    %v4866 = vadd.f32 0.0, %v4865
    %v4867 = vpop.f32.mrf.mxu0
    %v4868 = vadd.f32 0.0, %v4867
    %4869 = vmatmul.bf16.gmra.mxu0 %v4777
    %v4870 = vpop.f32.mrf.mxu0
    %v4871 = vadd.f32 0.0, %v4870
    %v4872 = vpop.f32.mrf.mxu0
    %v4873 = vadd.f32 0.0, %v4872
    %4874 = vmatmul.bf16.gmra.mxu0 %v4778
    %v4875 = vpop.f32.mrf.mxu0
    %v4876 = vadd.f32 0.0, %v4875
    %v4877 = vpop.f32.mrf.mxu0
    %v4878 = vadd.f32 0.0, %v4877
    %4879 = vmatmul.bf16.gmra.mxu0 %v4779
    %v4880 = vpop.f32.mrf.mxu0
    %v4881 = vadd.f32 0.0, %v4880
    %v4882 = vpop.f32.mrf.mxu0
    %v4883 = vadd.f32 0.0, %v4882
    %4884 = vdwg.mxu0
    %v4885 = vadd.f32 %v4692, %v4846
    %v4886 = vadd.f32 %v4693, %v4848
    %v4887 = vadd.f32 %v4694, %v4851
    %v4888 = vadd.f32 %v4695, %v4853
    %v4889 = vadd.f32 %v4696, %v4856
    %v4890 = vadd.f32 %v4697, %v4858
    %v4891 = vadd.f32 %v4698, %v4861
    %v4892 = vadd.f32 %v4699, %v4863
    %v4893 = vadd.f32 %v4700, %v4866
    %v4894 = vadd.f32 %v4701, %v4868
    %v4895 = vadd.f32 %v4702, %v4871
    %v4896 = vadd.f32 %v4703, %v4873
    %v4897 = vadd.f32 %v4704, %v4876
    %v4898 = vadd.f32 %v4705, %v4878
    %v4899 = vadd.f32 %v4706, %v4881
    %v4900 = vadd.f32 %v4707, %v4883
    %v4901 = vld [vmem:[%s3776] sm:$0xf]
    %v4902 = vld [vmem:[%s3776 + $0x4] sm:$0x1]
    %v4903 = vld [vmem:[%s3776 + $0x8] sm:$0xf]
    %v4904 = vld [vmem:[%s3776 + $0xc] sm:$0x1]
    %v4905 = vld [vmem:[%s3776 + $0x10] sm:$0xf]
    %v4906 = vld [vmem:[%s3776 + $0x14] sm:$0x1]
    %v4907 = vld [vmem:[%s3776 + $0x18] sm:$0xf]
    %v4908 = vld [vmem:[%s3776 + $0x1c] sm:$0x1]
    %v4909 = vld [vmem:[%s3776 + $0x20] sm:$0xf]
    %v4910 = vld [vmem:[%s3776 + $0x24] sm:$0x1]
    %v4911 = vld [vmem:[%s3776 + $0x28] sm:$0xf]
    %v4912 = vld [vmem:[%s3776 + $0x2c] sm:$0x1]
    %v4913 = vld [vmem:[%s3776 + $0x30] sm:$0xf]
    %v4914 = vld [vmem:[%s3776 + $0x34] sm:$0x1]
    %v4915 = vld [vmem:[%s3776 + $0x38] sm:$0xf]
    %v4916 = vld [vmem:[%s3776 + $0x3c] sm:$0x1]
    %v4917 = vld [vmem:[%s3776 + $0x50] sm:$0xf]
    %v4918 = vld [vmem:[%s3776 + $0x54] sm:$0x1]
    %v4919 = vld [vmem:[%s3776 + $0x58] sm:$0xf]
    %v4920 = vld [vmem:[%s3776 + $0x5c] sm:$0x1]
    %v4921 = vld [vmem:[%s3776 + $0x60] sm:$0xf]
    %v4922 = vld [vmem:[%s3776 + $0x64] sm:$0x1]
    %v4923 = vld [vmem:[%s3776 + $0x68] sm:$0xf]
    %v4924 = vld [vmem:[%s3776 + $0x6c] sm:$0x1]
    %v4925 = vld [vmem:[%s3776 + $0x70] sm:$0xf]
    %v4926 = vld [vmem:[%s3776 + $0x74] sm:$0x1]
    %v4927 = vld [vmem:[%s3776 + $0x78] sm:$0xf]
    %v4928 = vld [vmem:[%s3776 + $0x7c] sm:$0x1]
    %v4929 = vld [vmem:[%s3776 + $0x80] sm:$0xf]
    %v4930 = vld [vmem:[%s3776 + $0x84] sm:$0x1]
    %v4931 = vld [vmem:[%s3776 + $0x88] sm:$0xf]
    %v4932 = vld [vmem:[%s3776 + $0x8c] sm:$0x1]
    %v4934 = vshrl.u32 %v4901, 16
    %v4936 = vrot.slane %v4934, 4
    %v4937 = vshll.u32 %v4901, 16
    %v4939 = vrot.slane %v4937, 5
    %v4940 = vor.u32 %v4936, %v4939
    %v4941 = vrot.slane %v4940, 4
    %v4943 = vshll.u32 %v4902, 16
    %v4945 = vrot.slane %v4943, 5
    %v4946 = vsel %vm860, %v4941, %v4945
    %v4948 = vshrl.u32 %v4903, 16
    %v4950 = vrot.slane %v4948, 4
    %v4951 = vshll.u32 %v4903, 16
    %v4953 = vrot.slane %v4951, 5
    %v4954 = vor.u32 %v4950, %v4953
    %v4955 = vrot.slane %v4954, 4
    %v4957 = vshll.u32 %v4904, 16
    %v4959 = vrot.slane %v4957, 5
    %v4960 = vsel %vm860, %v4955, %v4959
    %v4962 = vshrl.u32 %v4905, 16
    %v4964 = vrot.slane %v4962, 4
    %v4965 = vshll.u32 %v4905, 16
    %v4967 = vrot.slane %v4965, 5
    %v4968 = vor.u32 %v4964, %v4967
    %v4969 = vrot.slane %v4968, 4
    %v4971 = vshll.u32 %v4906, 16
    %v4973 = vrot.slane %v4971, 5
    %v4974 = vsel %vm860, %v4969, %v4973
    %v4976 = vshrl.u32 %v4907, 16
    %v4978 = vrot.slane %v4976, 4
    %v4979 = vshll.u32 %v4907, 16
    %v4981 = vrot.slane %v4979, 5
    %v4982 = vor.u32 %v4978, %v4981
    %v4983 = vrot.slane %v4982, 4
    %v4985 = vshll.u32 %v4908, 16
    %v4987 = vrot.slane %v4985, 5
    %v4988 = vsel %vm860, %v4983, %v4987
    %v4990 = vshrl.u32 %v4909, 16
    %v4992 = vrot.slane %v4990, 4
    %v4993 = vshll.u32 %v4909, 16
    %v4995 = vrot.slane %v4993, 5
    %v4996 = vor.u32 %v4992, %v4995
    %v4997 = vrot.slane %v4996, 4
    %v4999 = vshll.u32 %v4910, 16
    %v5001 = vrot.slane %v4999, 5
    %v5002 = vsel %vm860, %v4997, %v5001
    %v5004 = vshrl.u32 %v4911, 16
    %v5006 = vrot.slane %v5004, 4
    %v5007 = vshll.u32 %v4911, 16
    %v5009 = vrot.slane %v5007, 5
    %v5010 = vor.u32 %v5006, %v5009
    %v5011 = vrot.slane %v5010, 4
    %v5013 = vshll.u32 %v4912, 16
    %v5015 = vrot.slane %v5013, 5
    %v5016 = vsel %vm860, %v5011, %v5015
    %v5018 = vshrl.u32 %v4913, 16
    %v5020 = vrot.slane %v5018, 4
    %v5021 = vshll.u32 %v4913, 16
    %v5023 = vrot.slane %v5021, 5
    %v5024 = vor.u32 %v5020, %v5023
    %v5025 = vrot.slane %v5024, 4
    %v5027 = vshll.u32 %v4914, 16
    %v5029 = vrot.slane %v5027, 5
    %v5030 = vsel %vm860, %v5025, %v5029
    %v5032 = vshrl.u32 %v4915, 16
    %v5034 = vrot.slane %v5032, 4
    %v5035 = vshll.u32 %v4915, 16
    %v5037 = vrot.slane %v5035, 5
    %v5038 = vor.u32 %v5034, %v5037
    %v5039 = vrot.slane %v5038, 4
    %v5041 = vshll.u32 %v4916, 16
    %v5043 = vrot.slane %v5041, 5
    %v5044 = vsel %vm860, %v5039, %v5043
    %v5046 = vshrl.u32 %v4917, 16
    %v5048 = vrot.slane %v5046, 4
    %v5049 = vshll.u32 %v4917, 16
    %v5051 = vrot.slane %v5049, 5
    %v5052 = vor.u32 %v5048, %v5051
    %v5053 = vrot.slane %v5052, 4
    %v5055 = vshll.u32 %v4918, 16
    %v5057 = vrot.slane %v5055, 5
    %v5058 = vsel %vm860, %v5053, %v5057
    %v5060 = vshrl.u32 %v4919, 16
    %v5062 = vrot.slane %v5060, 4
    %v5063 = vshll.u32 %v4919, 16
    %v5065 = vrot.slane %v5063, 5
    %v5066 = vor.u32 %v5062, %v5065
    %v5067 = vrot.slane %v5066, 4
    %v5069 = vshll.u32 %v4920, 16
    %v5071 = vrot.slane %v5069, 5
    %v5072 = vsel %vm860, %v5067, %v5071
    %v5074 = vshrl.u32 %v4921, 16
    %v5076 = vrot.slane %v5074, 4
    %v5077 = vshll.u32 %v4921, 16
    %v5079 = vrot.slane %v5077, 5
    %v5080 = vor.u32 %v5076, %v5079
    %v5081 = vrot.slane %v5080, 4
    %v5083 = vshll.u32 %v4922, 16
    %v5085 = vrot.slane %v5083, 5
    %v5086 = vsel %vm860, %v5081, %v5085
    %v5088 = vshrl.u32 %v4923, 16
    %v5090 = vrot.slane %v5088, 4
    %v5091 = vshll.u32 %v4923, 16
    %v5093 = vrot.slane %v5091, 5
    %v5094 = vor.u32 %v5090, %v5093
    %v5095 = vrot.slane %v5094, 4
    %v5097 = vshll.u32 %v4924, 16
    %v5099 = vrot.slane %v5097, 5
    %v5100 = vsel %vm860, %v5095, %v5099
    %v5102 = vshrl.u32 %v4925, 16
    %v5104 = vrot.slane %v5102, 4
    %v5105 = vshll.u32 %v4925, 16
    %v5107 = vrot.slane %v5105, 5
    %v5108 = vor.u32 %v5104, %v5107
    %v5109 = vrot.slane %v5108, 4
    %v5111 = vshll.u32 %v4926, 16
    %v5113 = vrot.slane %v5111, 5
    %v5114 = vsel %vm860, %v5109, %v5113
    %v5116 = vshrl.u32 %v4927, 16
    %v5118 = vrot.slane %v5116, 4
    %v5119 = vshll.u32 %v4927, 16
    %v5121 = vrot.slane %v5119, 5
    %v5122 = vor.u32 %v5118, %v5121
    %v5123 = vrot.slane %v5122, 4
    %v5125 = vshll.u32 %v4928, 16
    %v5127 = vrot.slane %v5125, 5
    %v5128 = vsel %vm860, %v5123, %v5127
    %v5130 = vshrl.u32 %v4929, 16
    %v5132 = vrot.slane %v5130, 4
    %v5133 = vshll.u32 %v4929, 16
    %v5135 = vrot.slane %v5133, 5
    %v5136 = vor.u32 %v5132, %v5135
    %v5137 = vrot.slane %v5136, 4
    %v5139 = vshll.u32 %v4930, 16
    %v5141 = vrot.slane %v5139, 5
    %v5142 = vsel %vm860, %v5137, %v5141
    %v5144 = vshrl.u32 %v4931, 16
    %v5146 = vrot.slane %v5144, 4
    %v5147 = vshll.u32 %v4931, 16
    %v5149 = vrot.slane %v5147, 5
    %v5150 = vor.u32 %v5146, %v5149
    %v5151 = vrot.slane %v5150, 4
    %v5153 = vshll.u32 %v4932, 16
    %v5155 = vrot.slane %v5153, 5
    %v5156 = vsel %vm860, %v5151, %v5155
    %v5157 = vld [vmem:[#allocation9 + $0x100] sm:$0xf]
    %v5158 = vld [vmem:[#allocation9 + $0x104] sm:$0xf]
    %v5159 = vld [vmem:[#allocation9 + $0x108] sm:$0xf]
    %v5160 = vld [vmem:[#allocation9 + $0x10c] sm:$0xf]
    %v5161 = vld [vmem:[#allocation9 + $0x110] sm:$0xf]
    %v5162 = vld [vmem:[#allocation9 + $0x114] sm:$0xf]
    %v5163 = vld [vmem:[#allocation9 + $0x118] sm:$0xf]
    %v5164 = vld [vmem:[#allocation9 + $0x11c] sm:$0xf]
    %v5165 = vld [vmem:[#allocation9 + $0x120] sm:$0xf]
    %v5166 = vld [vmem:[#allocation9 + $0x124] sm:$0xf]
    %v5167 = vld [vmem:[#allocation9 + $0x128] sm:$0xf]
    %v5168 = vld [vmem:[#allocation9 + $0x12c] sm:$0xf]
    %v5169 = vld [vmem:[#allocation9 + $0x130] sm:$0xf]
    %v5170 = vld [vmem:[#allocation9 + $0x134] sm:$0xf]
    %v5171 = vld [vmem:[#allocation9 + $0x138] sm:$0xf]
    %v5172 = vld [vmem:[#allocation9 + $0x13c] sm:$0xf]
    %v5173 = vunpack.c.l.b16 %v4946
    %v5174 = vunpack.c.l.b16 %v4960
    %v5175 = vunpack.c.l.b16 %v4974
    %v5176 = vunpack.c.l.b16 %v4988
    %v5177 = vunpack.c.l.b16 %v5002
    %v5178 = vunpack.c.l.b16 %v5016
    %v5179 = vunpack.c.l.b16 %v5030
    %v5180 = vunpack.c.l.b16 %v5044
    %v5181 = vunpack.c.l.b16 %v5058
    %v5182 = vunpack.c.l.b16 %v5072
    %v5183 = vunpack.c.l.b16 %v5086
    %v5184 = vunpack.c.l.b16 %v5100
    %v5185 = vunpack.c.l.b16 %v5114
    %v5186 = vunpack.c.l.b16 %v5128
    %v5187 = vunpack.c.l.b16 %v5142
    %v5188 = vunpack.c.l.b16 %v5156
    %v5189 = vpack.c.b16 %v5174, %v5173
    %v5190 = vpack.c.b16 %v5176, %v5175
    %v5191 = vpack.c.b16 %v5178, %v5177
    %v5192 = vpack.c.b16 %v5180, %v5179
    %v5193 = vpack.c.b16 %v5182, %v5181
    %v5194 = vpack.c.b16 %v5184, %v5183
    %v5195 = vpack.c.b16 %v5186, %v5185
    %v5196 = vpack.c.b16 %v5188, %v5187
    %v5221 = vunpack.c.l.b16 %v5157
    %v5222 = vunpack.c.l.b16 %v5158
    %v5223 = vunpack.c.l.b16 %v5159
    %v5224 = vunpack.c.l.b16 %v5160
    %v5225 = vunpack.c.l.b16 %v5161
    %v5226 = vunpack.c.l.b16 %v5162
    %v5227 = vunpack.c.l.b16 %v5163
    %v5228 = vunpack.c.l.b16 %v5164
    %v5229 = vunpack.c.l.b16 %v5165
    %v5230 = vunpack.c.l.b16 %v5166
    %v5231 = vunpack.c.l.b16 %v5167
    %v5232 = vunpack.c.l.b16 %v5168
    %v5233 = vunpack.c.l.b16 %v5169
    %v5234 = vunpack.c.l.b16 %v5170
    %v5235 = vunpack.c.l.b16 %v5171
    %v5236 = vunpack.c.l.b16 %v5172
    %v5237 = vpack.c.b16 %v5222, %v5221
    %v5238 = vpack.c.b16 %v5224, %v5223
    %v5239 = vpack.c.b16 %v5226, %v5225
    %v5240 = vpack.c.b16 %v5228, %v5227
    %v5241 = vpack.c.b16 %v5230, %v5229
    %v5242 = vpack.c.b16 %v5232, %v5231
    %v5243 = vpack.c.b16 %v5234, %v5233
    %v5244 = vpack.c.b16 %v5236, %v5235
    %5253 = vmatpush.bf16.msra.mxu0 %v5244
    %5254 = vmatpush.bf16.msra.mxu0 %v5243
    %5255 = vmatpush.bf16.msra.mxu0 %v5242
    %5256 = vmatpush.bf16.msra.mxu0 %v5241
    %5257 = vmatpush.bf16.msra.mxu0 %v5240
    %5258 = vmatpush.bf16.msra.mxu0 %v5239
    %5259 = vmatpush.bf16.msra.mxu0 %v5238
    %5260 = vmatpush.bf16.msra.mxu0 %v5237
    %5261 = vmatmul.bf16.gmra.mxu0 %v5189
    %v5262 = vpop.f32.mrf.mxu0
    %v5263 = vadd.f32 0.0, %v5262
    %v5264 = vpop.f32.mrf.mxu0
    %v5265 = vadd.f32 0.0, %v5264
    %5266 = vmatmul.bf16.gmra.mxu0 %v5190
    %v5267 = vpop.f32.mrf.mxu0
    %v5268 = vadd.f32 0.0, %v5267
    %v5269 = vpop.f32.mrf.mxu0
    %v5270 = vadd.f32 0.0, %v5269
    %5271 = vmatmul.bf16.gmra.mxu0 %v5191
    %v5272 = vpop.f32.mrf.mxu0
    %v5273 = vadd.f32 0.0, %v5272
    %v5274 = vpop.f32.mrf.mxu0
    %v5275 = vadd.f32 0.0, %v5274
    %5276 = vmatmul.bf16.gmra.mxu0 %v5192
    %v5277 = vpop.f32.mrf.mxu0
    %v5278 = vadd.f32 0.0, %v5277
    %v5279 = vpop.f32.mrf.mxu0
    %v5280 = vadd.f32 0.0, %v5279
    %5281 = vmatmul.bf16.gmra.mxu0 %v5193
    %v5282 = vpop.f32.mrf.mxu0
    %v5283 = vadd.f32 0.0, %v5282
    %v5284 = vpop.f32.mrf.mxu0
    %v5285 = vadd.f32 0.0, %v5284
    %5286 = vmatmul.bf16.gmra.mxu0 %v5194
    %v5287 = vpop.f32.mrf.mxu0
    %v5288 = vadd.f32 0.0, %v5287
    %v5289 = vpop.f32.mrf.mxu0
    %v5290 = vadd.f32 0.0, %v5289
    %5291 = vmatmul.bf16.gmra.mxu0 %v5195
    %v5292 = vpop.f32.mrf.mxu0
    %v5293 = vadd.f32 0.0, %v5292
    %v5294 = vpop.f32.mrf.mxu0
    %v5295 = vadd.f32 0.0, %v5294
    %5296 = vmatmul.bf16.gmra.mxu0 %v5196
    %v5297 = vpop.f32.mrf.mxu0
    %v5298 = vadd.f32 0.0, %v5297
    %v5299 = vpop.f32.mrf.mxu0
    %v5300 = vadd.f32 0.0, %v5299
    %5301 = vdwg.mxu0
    %v5302 = vadd.f32 %v4885, %v5263
    %v5303 = vadd.f32 %v4886, %v5265
    %v5304 = vadd.f32 %v4887, %v5268
    %v5305 = vadd.f32 %v4888, %v5270
    %v5306 = vadd.f32 %v4889, %v5273
    %v5307 = vadd.f32 %v4890, %v5275
    %v5308 = vadd.f32 %v4891, %v5278
    %v5309 = vadd.f32 %v4892, %v5280
    %v5310 = vadd.f32 %v4893, %v5283
    %v5311 = vadd.f32 %v4894, %v5285
    %v5312 = vadd.f32 %v4895, %v5288
    %v5313 = vadd.f32 %v4896, %v5290
    %v5314 = vadd.f32 %v4897, %v5293
    %v5315 = vadd.f32 %v4898, %v5295
    %v5316 = vadd.f32 %v4899, %v5298
    %v5317 = vadd.f32 %v4900, %v5300
    %v5318 = vld [vmem:[%s3776] sm:$0xe]
    %v5319 = vld [vmem:[%s3776 + $0x8] sm:$0xe]
    %v5320 = vld [vmem:[%s3776 + $0x10] sm:$0xe]
    %v5321 = vld [vmem:[%s3776 + $0x18] sm:$0xe]
    %v5322 = vld [vmem:[%s3776 + $0x20] sm:$0xe]
    %v5323 = vld [vmem:[%s3776 + $0x28] sm:$0xe]
    %v5324 = vld [vmem:[%s3776 + $0x30] sm:$0xe]
    %v5325 = vld [vmem:[%s3776 + $0x38] sm:$0xe]
    %v5326 = vld [vmem:[%s3776 + $0x50] sm:$0xe]
    %v5327 = vld [vmem:[%s3776 + $0x58] sm:$0xe]
    %v5328 = vld [vmem:[%s3776 + $0x60] sm:$0xe]
    %v5329 = vld [vmem:[%s3776 + $0x68] sm:$0xe]
    %v5330 = vld [vmem:[%s3776 + $0x70] sm:$0xe]
    %v5331 = vld [vmem:[%s3776 + $0x78] sm:$0xe]
    %v5332 = vld [vmem:[%s3776 + $0x80] sm:$0xe]
    %v5333 = vld [vmem:[%s3776 + $0x88] sm:$0xe]
    %v5366 = vrot.slane %v5318, 5
    %v5367 = vrot.slane %v5366, 4
    %v5368 = vrot.slane %v4902, 5
    %v5369 = vsel %vm1425, %v5367, %v5368
    %v5370 = vrot.slane %v5319, 5
    %v5371 = vrot.slane %v5370, 4
    %v5372 = vrot.slane %v4904, 5
    %v5373 = vsel %vm1425, %v5371, %v5372
    %v5374 = vrot.slane %v5320, 5
    %v5375 = vrot.slane %v5374, 4
    %v5376 = vrot.slane %v4906, 5
    %v5377 = vsel %vm1425, %v5375, %v5376
    %v5378 = vrot.slane %v5321, 5
    %v5379 = vrot.slane %v5378, 4
    %v5380 = vrot.slane %v4908, 5
    %v5381 = vsel %vm1425, %v5379, %v5380
    %v5382 = vrot.slane %v5322, 5
    %v5383 = vrot.slane %v5382, 4
    %v5384 = vrot.slane %v4910, 5
    %v5385 = vsel %vm1425, %v5383, %v5384
    %v5386 = vrot.slane %v5323, 5
    %v5387 = vrot.slane %v5386, 4
    %v5388 = vrot.slane %v4912, 5
    %v5389 = vsel %vm1425, %v5387, %v5388
    %v5390 = vrot.slane %v5324, 5
    %v5391 = vrot.slane %v5390, 4
    %v5392 = vrot.slane %v4914, 5
    %v5393 = vsel %vm1425, %v5391, %v5392
    %v5394 = vrot.slane %v5325, 5
    %v5395 = vrot.slane %v5394, 4
    %v5396 = vrot.slane %v4916, 5
    %v5397 = vsel %vm1425, %v5395, %v5396
    %v5398 = vrot.slane %v5326, 5
    %v5399 = vrot.slane %v5398, 4
    %v5400 = vrot.slane %v4918, 5
    %v5401 = vsel %vm1425, %v5399, %v5400
    %v5402 = vrot.slane %v5327, 5
    %v5403 = vrot.slane %v5402, 4
    %v5404 = vrot.slane %v4920, 5
    %v5405 = vsel %vm1425, %v5403, %v5404
    %v5406 = vrot.slane %v5328, 5
    %v5407 = vrot.slane %v5406, 4
    %v5408 = vrot.slane %v4922, 5
    %v5409 = vsel %vm1425, %v5407, %v5408
    %v5410 = vrot.slane %v5329, 5
    %v5411 = vrot.slane %v5410, 4
    %v5412 = vrot.slane %v4924, 5
    %v5413 = vsel %vm1425, %v5411, %v5412
    %v5414 = vrot.slane %v5330, 5
    %v5415 = vrot.slane %v5414, 4
    %v5416 = vrot.slane %v4926, 5
    %v5417 = vsel %vm1425, %v5415, %v5416
    %v5418 = vrot.slane %v5331, 5
    %v5419 = vrot.slane %v5418, 4
    %v5420 = vrot.slane %v4928, 5
    %v5421 = vsel %vm1425, %v5419, %v5420
    %v5422 = vrot.slane %v5332, 5
    %v5423 = vrot.slane %v5422, 4
    %v5424 = vrot.slane %v4930, 5
    %v5425 = vsel %vm1425, %v5423, %v5424
    %v5426 = vrot.slane %v5333, 5
    %v5427 = vrot.slane %v5426, 4
    %v5428 = vrot.slane %v4932, 5
    %v5429 = vsel %vm1425, %v5427, %v5428
    %v5430 = vld [vmem:[#allocation9 + $0x140] sm:$0xf]
    %v5431 = vld [vmem:[#allocation9 + $0x144] sm:$0xf]
    %v5432 = vld [vmem:[#allocation9 + $0x148] sm:$0xf]
    %v5433 = vld [vmem:[#allocation9 + $0x14c] sm:$0xf]
    %v5434 = vld [vmem:[#allocation9 + $0x150] sm:$0xf]
    %v5435 = vld [vmem:[#allocation9 + $0x154] sm:$0xf]
    %v5436 = vld [vmem:[#allocation9 + $0x158] sm:$0xf]
    %v5437 = vld [vmem:[#allocation9 + $0x15c] sm:$0xf]
    %v5438 = vld [vmem:[#allocation9 + $0x160] sm:$0xf]
    %v5439 = vld [vmem:[#allocation9 + $0x164] sm:$0xf]
    %v5440 = vld [vmem:[#allocation9 + $0x168] sm:$0xf]
    %v5441 = vld [vmem:[#allocation9 + $0x16c] sm:$0xf]
    %v5442 = vld [vmem:[#allocation9 + $0x170] sm:$0xf]
    %v5443 = vld [vmem:[#allocation9 + $0x174] sm:$0xf]
    %v5444 = vld [vmem:[#allocation9 + $0x178] sm:$0xf]
    %v5445 = vld [vmem:[#allocation9 + $0x17c] sm:$0xf]
    %v5446 = vunpack.c.l.b16 %v5369
    %v5447 = vunpack.c.l.b16 %v5373
    %v5448 = vunpack.c.l.b16 %v5377
    %v5449 = vunpack.c.l.b16 %v5381
    %v5450 = vunpack.c.l.b16 %v5385
    %v5451 = vunpack.c.l.b16 %v5389
    %v5452 = vunpack.c.l.b16 %v5393
    %v5453 = vunpack.c.l.b16 %v5397
    %v5454 = vunpack.c.l.b16 %v5401
    %v5455 = vunpack.c.l.b16 %v5405
    %v5456 = vunpack.c.l.b16 %v5409
    %v5457 = vunpack.c.l.b16 %v5413
    %v5458 = vunpack.c.l.b16 %v5417
    %v5459 = vunpack.c.l.b16 %v5421
    %v5460 = vunpack.c.l.b16 %v5425
    %v5461 = vunpack.c.l.b16 %v5429
    %v5462 = vpack.c.b16 %v5447, %v5446
    %v5463 = vpack.c.b16 %v5449, %v5448
    %v5464 = vpack.c.b16 %v5451, %v5450
    %v5465 = vpack.c.b16 %v5453, %v5452
    %v5466 = vpack.c.b16 %v5455, %v5454
    %v5467 = vpack.c.b16 %v5457, %v5456
    %v5468 = vpack.c.b16 %v5459, %v5458
    %v5469 = vpack.c.b16 %v5461, %v5460
    %v5494 = vunpack.c.l.b16 %v5430
    %v5495 = vunpack.c.l.b16 %v5431
    %v5496 = vunpack.c.l.b16 %v5432
    %v5497 = vunpack.c.l.b16 %v5433
    %v5498 = vunpack.c.l.b16 %v5434
    %v5499 = vunpack.c.l.b16 %v5435
    %v5500 = vunpack.c.l.b16 %v5436
    %v5501 = vunpack.c.l.b16 %v5437
    %v5502 = vunpack.c.l.b16 %v5438
    %v5503 = vunpack.c.l.b16 %v5439
    %v5504 = vunpack.c.l.b16 %v5440
    %v5505 = vunpack.c.l.b16 %v5441
    %v5506 = vunpack.c.l.b16 %v5442
    %v5507 = vunpack.c.l.b16 %v5443
    %v5508 = vunpack.c.l.b16 %v5444
    %v5509 = vunpack.c.l.b16 %v5445
    %v5510 = vpack.c.b16 %v5495, %v5494
    %v5511 = vpack.c.b16 %v5497, %v5496
    %v5512 = vpack.c.b16 %v5499, %v5498
    %v5513 = vpack.c.b16 %v5501, %v5500
    %v5514 = vpack.c.b16 %v5503, %v5502
    %v5515 = vpack.c.b16 %v5505, %v5504
    %v5516 = vpack.c.b16 %v5507, %v5506
    %v5517 = vpack.c.b16 %v5509, %v5508
    %5526 = vmatpush.bf16.msra.mxu0 %v5517
    %5527 = vmatpush.bf16.msra.mxu0 %v5516
    %5528 = vmatpush.bf16.msra.mxu0 %v5515
    %5529 = vmatpush.bf16.msra.mxu0 %v5514
    %5530 = vmatpush.bf16.msra.mxu0 %v5513
    %5531 = vmatpush.bf16.msra.mxu0 %v5512
    %5532 = vmatpush.bf16.msra.mxu0 %v5511
    %5533 = vmatpush.bf16.msra.mxu0 %v5510
    %5534 = vmatmul.bf16.gmra.mxu0 %v5462
    %v5535 = vpop.f32.mrf.mxu0
    %v5536 = vadd.f32 0.0, %v5535
    %v5537 = vpop.f32.mrf.mxu0
    %v5538 = vadd.f32 0.0, %v5537
    %5539 = vmatmul.bf16.gmra.mxu0 %v5463
    %v5540 = vpop.f32.mrf.mxu0
    %v5541 = vadd.f32 0.0, %v5540
    %v5542 = vpop.f32.mrf.mxu0
    %v5543 = vadd.f32 0.0, %v5542
    %5544 = vmatmul.bf16.gmra.mxu0 %v5464
    %v5545 = vpop.f32.mrf.mxu0
    %v5546 = vadd.f32 0.0, %v5545
    %v5547 = vpop.f32.mrf.mxu0
    %v5548 = vadd.f32 0.0, %v5547
    %5549 = vmatmul.bf16.gmra.mxu0 %v5465
    %v5550 = vpop.f32.mrf.mxu0
    %v5551 = vadd.f32 0.0, %v5550
    %v5552 = vpop.f32.mrf.mxu0
    %v5553 = vadd.f32 0.0, %v5552
    %5554 = vmatmul.bf16.gmra.mxu0 %v5466
    %v5555 = vpop.f32.mrf.mxu0
    %v5556 = vadd.f32 0.0, %v5555
    %v5557 = vpop.f32.mrf.mxu0
    %v5558 = vadd.f32 0.0, %v5557
    %5559 = vmatmul.bf16.gmra.mxu0 %v5467
    %v5560 = vpop.f32.mrf.mxu0
    %v5561 = vadd.f32 0.0, %v5560
    %v5562 = vpop.f32.mrf.mxu0
    %v5563 = vadd.f32 0.0, %v5562
    %5564 = vmatmul.bf16.gmra.mxu0 %v5468
    %v5565 = vpop.f32.mrf.mxu0
    %v5566 = vadd.f32 0.0, %v5565
    %v5567 = vpop.f32.mrf.mxu0
    %v5568 = vadd.f32 0.0, %v5567
    %5569 = vmatmul.bf16.gmra.mxu0 %v5469
    %v5570 = vpop.f32.mrf.mxu0
    %v5571 = vadd.f32 0.0, %v5570
    %v5572 = vpop.f32.mrf.mxu0
    %v5573 = vadd.f32 0.0, %v5572
    %5574 = vdwg.mxu0
    %v5575 = vadd.f32 %v5302, %v5536
    %v5576 = vadd.f32 %v5303, %v5538
    %v5577 = vadd.f32 %v5304, %v5541
    %v5578 = vadd.f32 %v5305, %v5543
    %v5579 = vadd.f32 %v5306, %v5546
    %v5580 = vadd.f32 %v5307, %v5548
    %v5581 = vadd.f32 %v5308, %v5551
    %v5582 = vadd.f32 %v5309, %v5553
    %v5583 = vadd.f32 %v5310, %v5556
    %v5584 = vadd.f32 %v5311, %v5558
    %v5585 = vadd.f32 %v5312, %v5561
    %v5586 = vadd.f32 %v5313, %v5563
    %v5587 = vadd.f32 %v5314, %v5566
    %v5588 = vadd.f32 %v5315, %v5568
    %v5589 = vadd.f32 %v5316, %v5571
    %v5590 = vadd.f32 %v5317, %v5573
    %s5591 = scalar_lea.vmem [#allocation3], 16
    %v5592 = vld [vmem:[%s5591] sm:$0xf]
    %v5593 = vld [vmem:[%s5591 + $0x8] sm:$0xf]
    %v5594 = vld [vmem:[%s5591 + $0x10] sm:$0xf]
    %v5595 = vld [vmem:[%s5591 + $0x18] sm:$0xf]
    %v5596 = vld [vmem:[%s5591 + $0x20] sm:$0xf]
    %v5597 = vld [vmem:[%s5591 + $0x28] sm:$0xf]
    %v5598 = vld [vmem:[%s5591 + $0x30] sm:$0xf]
    %v5599 = vld [vmem:[%s5591 + $0x38] sm:$0xf]
    %v5600 = vld [vmem:[%s5591 + $0x50] sm:$0xf]
    %v5601 = vld [vmem:[%s5591 + $0x58] sm:$0xf]
    %v5602 = vld [vmem:[%s5591 + $0x60] sm:$0xf]
    %v5603 = vld [vmem:[%s5591 + $0x68] sm:$0xf]
    %v5604 = vld [vmem:[%s5591 + $0x70] sm:$0xf]
    %v5605 = vld [vmem:[%s5591 + $0x78] sm:$0xf]
    %v5606 = vld [vmem:[%s5591 + $0x80] sm:$0xf]
    %v5607 = vld [vmem:[%s5591 + $0x88] sm:$0xf]
    %v5608 = vld [vmem:[#allocation9 + $0x180] sm:$0xf]
    %v5609 = vld [vmem:[#allocation9 + $0x184] sm:$0xf]
    %v5610 = vld [vmem:[#allocation9 + $0x188] sm:$0xf]
    %v5611 = vld [vmem:[#allocation9 + $0x18c] sm:$0xf]
    %v5612 = vld [vmem:[#allocation9 + $0x190] sm:$0xf]
    %v5613 = vld [vmem:[#allocation9 + $0x194] sm:$0xf]
    %v5614 = vld [vmem:[#allocation9 + $0x198] sm:$0xf]
    %v5615 = vld [vmem:[#allocation9 + $0x19c] sm:$0xf]
    %v5616 = vld [vmem:[#allocation9 + $0x1a0] sm:$0xf]
    %v5617 = vld [vmem:[#allocation9 + $0x1a4] sm:$0xf]
    %v5618 = vld [vmem:[#allocation9 + $0x1a8] sm:$0xf]
    %v5619 = vld [vmem:[#allocation9 + $0x1ac] sm:$0xf]
    %v5620 = vld [vmem:[#allocation9 + $0x1b0] sm:$0xf]
    %v5621 = vld [vmem:[#allocation9 + $0x1b4] sm:$0xf]
    %v5622 = vld [vmem:[#allocation9 + $0x1b8] sm:$0xf]
    %v5623 = vld [vmem:[#allocation9 + $0x1bc] sm:$0xf]
    %v5640 = vunpack.c.l.b16 %v5592
    %v5641 = vunpack.c.l.b16 %v5593
    %v5642 = vunpack.c.l.b16 %v5594
    %v5643 = vunpack.c.l.b16 %v5595
    %v5644 = vunpack.c.l.b16 %v5596
    %v5645 = vunpack.c.l.b16 %v5597
    %v5646 = vunpack.c.l.b16 %v5598
    %v5647 = vunpack.c.l.b16 %v5599
    %v5648 = vunpack.c.l.b16 %v5600
    %v5649 = vunpack.c.l.b16 %v5601
    %v5650 = vunpack.c.l.b16 %v5602
    %v5651 = vunpack.c.l.b16 %v5603
    %v5652 = vunpack.c.l.b16 %v5604
    %v5653 = vunpack.c.l.b16 %v5605
    %v5654 = vunpack.c.l.b16 %v5606
    %v5655 = vunpack.c.l.b16 %v5607
    %v5656 = vpack.c.b16 %v5641, %v5640
    %v5657 = vpack.c.b16 %v5643, %v5642
    %v5658 = vpack.c.b16 %v5645, %v5644
    %v5659 = vpack.c.b16 %v5647, %v5646
    %v5660 = vpack.c.b16 %v5649, %v5648
    %v5661 = vpack.c.b16 %v5651, %v5650
    %v5662 = vpack.c.b16 %v5653, %v5652
    %v5663 = vpack.c.b16 %v5655, %v5654
    %v5688 = vunpack.c.l.b16 %v5608
    %v5689 = vunpack.c.l.b16 %v5609
    %v5690 = vunpack.c.l.b16 %v5610
    %v5691 = vunpack.c.l.b16 %v5611
    %v5692 = vunpack.c.l.b16 %v5612
    %v5693 = vunpack.c.l.b16 %v5613
    %v5694 = vunpack.c.l.b16 %v5614
    %v5695 = vunpack.c.l.b16 %v5615
    %v5696 = vunpack.c.l.b16 %v5616
    %v5697 = vunpack.c.l.b16 %v5617
    %v5698 = vunpack.c.l.b16 %v5618
    %v5699 = vunpack.c.l.b16 %v5619
    %v5700 = vunpack.c.l.b16 %v5620
    %v5701 = vunpack.c.l.b16 %v5621
    %v5702 = vunpack.c.l.b16 %v5622
    %v5703 = vunpack.c.l.b16 %v5623
    %v5704 = vpack.c.b16 %v5689, %v5688
    %v5705 = vpack.c.b16 %v5691, %v5690
    %v5706 = vpack.c.b16 %v5693, %v5692
    %v5707 = vpack.c.b16 %v5695, %v5694
    %v5708 = vpack.c.b16 %v5697, %v5696
    %v5709 = vpack.c.b16 %v5699, %v5698
    %v5710 = vpack.c.b16 %v5701, %v5700
    %v5711 = vpack.c.b16 %v5703, %v5702
    %5720 = vmatpush.bf16.msra.mxu0 %v5711
    %5721 = vmatpush.bf16.msra.mxu0 %v5710
    %5722 = vmatpush.bf16.msra.mxu0 %v5709
    %5723 = vmatpush.bf16.msra.mxu0 %v5708
    %5724 = vmatpush.bf16.msra.mxu0 %v5707
    %5725 = vmatpush.bf16.msra.mxu0 %v5706
    %5726 = vmatpush.bf16.msra.mxu0 %v5705
    %5727 = vmatpush.bf16.msra.mxu0 %v5704
    %5728 = vmatmul.bf16.gmra.mxu0 %v5656
    %v5729 = vpop.f32.mrf.mxu0
    %v5730 = vadd.f32 0.0, %v5729
    %v5731 = vpop.f32.mrf.mxu0
    %v5732 = vadd.f32 0.0, %v5731
    %5733 = vmatmul.bf16.gmra.mxu0 %v5657
    %v5734 = vpop.f32.mrf.mxu0
    %v5735 = vadd.f32 0.0, %v5734
    %v5736 = vpop.f32.mrf.mxu0
    %v5737 = vadd.f32 0.0, %v5736
    %5738 = vmatmul.bf16.gmra.mxu0 %v5658
    %v5739 = vpop.f32.mrf.mxu0
    %v5740 = vadd.f32 0.0, %v5739
    %v5741 = vpop.f32.mrf.mxu0
    %v5742 = vadd.f32 0.0, %v5741
    %5743 = vmatmul.bf16.gmra.mxu0 %v5659
    %v5744 = vpop.f32.mrf.mxu0
    %v5745 = vadd.f32 0.0, %v5744
    %v5746 = vpop.f32.mrf.mxu0
    %v5747 = vadd.f32 0.0, %v5746
    %5748 = vmatmul.bf16.gmra.mxu0 %v5660
    %v5749 = vpop.f32.mrf.mxu0
    %v5750 = vadd.f32 0.0, %v5749
    %v5751 = vpop.f32.mrf.mxu0
    %v5752 = vadd.f32 0.0, %v5751
    %5753 = vmatmul.bf16.gmra.mxu0 %v5661
    %v5754 = vpop.f32.mrf.mxu0
    %v5755 = vadd.f32 0.0, %v5754
    %v5756 = vpop.f32.mrf.mxu0
    %v5757 = vadd.f32 0.0, %v5756
    %5758 = vmatmul.bf16.gmra.mxu0 %v5662
    %v5759 = vpop.f32.mrf.mxu0
    %v5760 = vadd.f32 0.0, %v5759
    %v5761 = vpop.f32.mrf.mxu0
    %v5762 = vadd.f32 0.0, %v5761
    %5763 = vmatmul.bf16.gmra.mxu0 %v5663
    %v5764 = vpop.f32.mrf.mxu0
    %v5765 = vadd.f32 0.0, %v5764
    %v5766 = vpop.f32.mrf.mxu0
    %v5767 = vadd.f32 0.0, %v5766
    %5768 = vdwg.mxu0
    %v5769 = vadd.f32 %v5575, %v5730
    %v5770 = vadd.f32 %v5576, %v5732
    %v5771 = vadd.f32 %v5577, %v5735
    %v5772 = vadd.f32 %v5578, %v5737
    %v5773 = vadd.f32 %v5579, %v5740
    %v5774 = vadd.f32 %v5580, %v5742
    %v5775 = vadd.f32 %v5581, %v5745
    %v5776 = vadd.f32 %v5582, %v5747
    %v5777 = vadd.f32 %v5583, %v5750
    %v5778 = vadd.f32 %v5584, %v5752
    %v5779 = vadd.f32 %v5585, %v5755
    %v5780 = vadd.f32 %v5586, %v5757
    %v5781 = vadd.f32 %v5587, %v5760
    %v5782 = vadd.f32 %v5588, %v5762
    %v5783 = vadd.f32 %v5589, %v5765
    %v5784 = vadd.f32 %v5590, %v5767
    %v5785 = vld [vmem:[%s5591] sm:$0xf]
    %v5786 = vld [vmem:[%s5591 + $0x4] sm:$0x1]
    %v5787 = vld [vmem:[%s5591 + $0x8] sm:$0xf]
    %v5788 = vld [vmem:[%s5591 + $0xc] sm:$0x1]
    %v5789 = vld [vmem:[%s5591 + $0x10] sm:$0xf]
    %v5790 = vld [vmem:[%s5591 + $0x14] sm:$0x1]
    %v5791 = vld [vmem:[%s5591 + $0x18] sm:$0xf]
    %v5792 = vld [vmem:[%s5591 + $0x1c] sm:$0x1]
    %v5793 = vld [vmem:[%s5591 + $0x20] sm:$0xf]
    %v5794 = vld [vmem:[%s5591 + $0x24] sm:$0x1]
    %v5795 = vld [vmem:[%s5591 + $0x28] sm:$0xf]
    %v5796 = vld [vmem:[%s5591 + $0x2c] sm:$0x1]
    %v5797 = vld [vmem:[%s5591 + $0x30] sm:$0xf]
    %v5798 = vld [vmem:[%s5591 + $0x34] sm:$0x1]
    %v5799 = vld [vmem:[%s5591 + $0x38] sm:$0xf]
    %v5800 = vld [vmem:[%s5591 + $0x3c] sm:$0x1]
    %v5801 = vld [vmem:[%s5591 + $0x50] sm:$0xf]
    %v5802 = vld [vmem:[%s5591 + $0x54] sm:$0x1]
    %v5803 = vld [vmem:[%s5591 + $0x58] sm:$0xf]
    %v5804 = vld [vmem:[%s5591 + $0x5c] sm:$0x1]
    %v5805 = vld [vmem:[%s5591 + $0x60] sm:$0xf]
    %v5806 = vld [vmem:[%s5591 + $0x64] sm:$0x1]
    %v5807 = vld [vmem:[%s5591 + $0x68] sm:$0xf]
    %v5808 = vld [vmem:[%s5591 + $0x6c] sm:$0x1]
    %v5809 = vld [vmem:[%s5591 + $0x70] sm:$0xf]
    %v5810 = vld [vmem:[%s5591 + $0x74] sm:$0x1]
    %v5811 = vld [vmem:[%s5591 + $0x78] sm:$0xf]
    %v5812 = vld [vmem:[%s5591 + $0x7c] sm:$0x1]
    %v5813 = vld [vmem:[%s5591 + $0x80] sm:$0xf]
    %v5814 = vld [vmem:[%s5591 + $0x84] sm:$0x1]
    %v5815 = vld [vmem:[%s5591 + $0x88] sm:$0xf]
    %v5816 = vld [vmem:[%s5591 + $0x8c] sm:$0x1]
    %v5818 = vshrl.u32 %v5785, 16
    %v5820 = vrot.slane %v5818, 4
    %v5821 = vshll.u32 %v5785, 16
    %v5823 = vrot.slane %v5821, 5
    %v5824 = vor.u32 %v5820, %v5823
    %v5825 = vrot.slane %v5824, 4
    %v5827 = vshll.u32 %v5786, 16
    %v5829 = vrot.slane %v5827, 5
    %v5830 = vsel %vm860, %v5825, %v5829
    %v5832 = vshrl.u32 %v5787, 16
    %v5834 = vrot.slane %v5832, 4
    %v5835 = vshll.u32 %v5787, 16
    %v5837 = vrot.slane %v5835, 5
    %v5838 = vor.u32 %v5834, %v5837
    %v5839 = vrot.slane %v5838, 4
    %v5841 = vshll.u32 %v5788, 16
    %v5843 = vrot.slane %v5841, 5
    %v5844 = vsel %vm860, %v5839, %v5843
    %v5846 = vshrl.u32 %v5789, 16
    %v5848 = vrot.slane %v5846, 4
    %v5849 = vshll.u32 %v5789, 16
    %v5851 = vrot.slane %v5849, 5
    %v5852 = vor.u32 %v5848, %v5851
    %v5853 = vrot.slane %v5852, 4
    %v5855 = vshll.u32 %v5790, 16
    %v5857 = vrot.slane %v5855, 5
    %v5858 = vsel %vm860, %v5853, %v5857
    %v5860 = vshrl.u32 %v5791, 16
    %v5862 = vrot.slane %v5860, 4
    %v5863 = vshll.u32 %v5791, 16
    %v5865 = vrot.slane %v5863, 5
    %v5866 = vor.u32 %v5862, %v5865
    %v5867 = vrot.slane %v5866, 4
    %v5869 = vshll.u32 %v5792, 16
    %v5871 = vrot.slane %v5869, 5
    %v5872 = vsel %vm860, %v5867, %v5871
    %v5874 = vshrl.u32 %v5793, 16
    %v5876 = vrot.slane %v5874, 4
    %v5877 = vshll.u32 %v5793, 16
    %v5879 = vrot.slane %v5877, 5
    %v5880 = vor.u32 %v5876, %v5879
    %v5881 = vrot.slane %v5880, 4
    %v5883 = vshll.u32 %v5794, 16
    %v5885 = vrot.slane %v5883, 5
    %v5886 = vsel %vm860, %v5881, %v5885
    %v5888 = vshrl.u32 %v5795, 16
    %v5890 = vrot.slane %v5888, 4
    %v5891 = vshll.u32 %v5795, 16
    %v5893 = vrot.slane %v5891, 5
    %v5894 = vor.u32 %v5890, %v5893
    %v5895 = vrot.slane %v5894, 4
    %v5897 = vshll.u32 %v5796, 16
    %v5899 = vrot.slane %v5897, 5
    %v5900 = vsel %vm860, %v5895, %v5899
    %v5902 = vshrl.u32 %v5797, 16
    %v5904 = vrot.slane %v5902, 4
    %v5905 = vshll.u32 %v5797, 16
    %v5907 = vrot.slane %v5905, 5
    %v5908 = vor.u32 %v5904, %v5907
    %v5909 = vrot.slane %v5908, 4
    %v5911 = vshll.u32 %v5798, 16
    %v5913 = vrot.slane %v5911, 5
    %v5914 = vsel %vm860, %v5909, %v5913
    %v5916 = vshrl.u32 %v5799, 16
    %v5918 = vrot.slane %v5916, 4
    %v5919 = vshll.u32 %v5799, 16
    %v5921 = vrot.slane %v5919, 5
    %v5922 = vor.u32 %v5918, %v5921
    %v5923 = vrot.slane %v5922, 4
    %v5925 = vshll.u32 %v5800, 16
    %v5927 = vrot.slane %v5925, 5
    %v5928 = vsel %vm860, %v5923, %v5927
    %v5930 = vshrl.u32 %v5801, 16
    %v5932 = vrot.slane %v5930, 4
    %v5933 = vshll.u32 %v5801, 16
    %v5935 = vrot.slane %v5933, 5
    %v5936 = vor.u32 %v5932, %v5935
    %v5937 = vrot.slane %v5936, 4
    %v5939 = vshll.u32 %v5802, 16
    %v5941 = vrot.slane %v5939, 5
    %v5942 = vsel %vm860, %v5937, %v5941
    %v5944 = vshrl.u32 %v5803, 16
    %v5946 = vrot.slane %v5944, 4
    %v5947 = vshll.u32 %v5803, 16
    %v5949 = vrot.slane %v5947, 5
    %v5950 = vor.u32 %v5946, %v5949
    %v5951 = vrot.slane %v5950, 4
    %v5953 = vshll.u32 %v5804, 16
    %v5955 = vrot.slane %v5953, 5
    %v5956 = vsel %vm860, %v5951, %v5955
    %v5958 = vshrl.u32 %v5805, 16
    %v5960 = vrot.slane %v5958, 4
    %v5961 = vshll.u32 %v5805, 16
    %v5963 = vrot.slane %v5961, 5
    %v5964 = vor.u32 %v5960, %v5963
    %v5965 = vrot.slane %v5964, 4
    %v5967 = vshll.u32 %v5806, 16
    %v5969 = vrot.slane %v5967, 5
    %v5970 = vsel %vm860, %v5965, %v5969
    %v5972 = vshrl.u32 %v5807, 16
    %v5974 = vrot.slane %v5972, 4
    %v5975 = vshll.u32 %v5807, 16
    %v5977 = vrot.slane %v5975, 5
    %v5978 = vor.u32 %v5974, %v5977
    %v5979 = vrot.slane %v5978, 4
    %v5981 = vshll.u32 %v5808, 16
    %v5983 = vrot.slane %v5981, 5
    %v5984 = vsel %vm860, %v5979, %v5983
    %v5986 = vshrl.u32 %v5809, 16
    %v5988 = vrot.slane %v5986, 4
    %v5989 = vshll.u32 %v5809, 16
    %v5991 = vrot.slane %v5989, 5
    %v5992 = vor.u32 %v5988, %v5991
    %v5993 = vrot.slane %v5992, 4
    %v5995 = vshll.u32 %v5810, 16
    %v5997 = vrot.slane %v5995, 5
    %v5998 = vsel %vm860, %v5993, %v5997
    %v6000 = vshrl.u32 %v5811, 16
    %v6002 = vrot.slane %v6000, 4
    %v6003 = vshll.u32 %v5811, 16
    %v6005 = vrot.slane %v6003, 5
    %v6006 = vor.u32 %v6002, %v6005
    %v6007 = vrot.slane %v6006, 4
    %v6009 = vshll.u32 %v5812, 16
    %v6011 = vrot.slane %v6009, 5
    %v6012 = vsel %vm860, %v6007, %v6011
    %v6014 = vshrl.u32 %v5813, 16
    %v6016 = vrot.slane %v6014, 4
    %v6017 = vshll.u32 %v5813, 16
    %v6019 = vrot.slane %v6017, 5
    %v6020 = vor.u32 %v6016, %v6019
    %v6021 = vrot.slane %v6020, 4
    %v6023 = vshll.u32 %v5814, 16
    %v6025 = vrot.slane %v6023, 5
    %v6026 = vsel %vm860, %v6021, %v6025
    %v6028 = vshrl.u32 %v5815, 16
    %v6030 = vrot.slane %v6028, 4
    %v6031 = vshll.u32 %v5815, 16
    %v6033 = vrot.slane %v6031, 5
    %v6034 = vor.u32 %v6030, %v6033
    %v6035 = vrot.slane %v6034, 4
    %v6037 = vshll.u32 %v5816, 16
    %v6039 = vrot.slane %v6037, 5
    %v6040 = vsel %vm860, %v6035, %v6039
    %v6041 = vld [vmem:[#allocation9 + $0x1c0] sm:$0xf]
    %v6042 = vld [vmem:[#allocation9 + $0x1c4] sm:$0xf]
    %v6043 = vld [vmem:[#allocation9 + $0x1c8] sm:$0xf]
    %v6044 = vld [vmem:[#allocation9 + $0x1cc] sm:$0xf]
    %v6045 = vld [vmem:[#allocation9 + $0x1d0] sm:$0xf]
    %v6046 = vld [vmem:[#allocation9 + $0x1d4] sm:$0xf]
    %v6047 = vld [vmem:[#allocation9 + $0x1d8] sm:$0xf]
    %v6048 = vld [vmem:[#allocation9 + $0x1dc] sm:$0xf]
    %v6049 = vld [vmem:[#allocation9 + $0x1e0] sm:$0xf]
    %v6050 = vld [vmem:[#allocation9 + $0x1e4] sm:$0xf]
    %v6051 = vld [vmem:[#allocation9 + $0x1e8] sm:$0xf]
    %v6052 = vld [vmem:[#allocation9 + $0x1ec] sm:$0xf]
    %v6053 = vld [vmem:[#allocation9 + $0x1f0] sm:$0xf]
    %v6054 = vld [vmem:[#allocation9 + $0x1f4] sm:$0xf]
    %v6055 = vld [vmem:[#allocation9 + $0x1f8] sm:$0xf]
    %v6056 = vld [vmem:[#allocation9 + $0x1fc] sm:$0xf]
    %v6057 = vunpack.c.l.b16 %v5830
    %v6058 = vunpack.c.l.b16 %v5844
    %v6059 = vunpack.c.l.b16 %v5858
    %v6060 = vunpack.c.l.b16 %v5872
    %v6061 = vunpack.c.l.b16 %v5886
    %v6062 = vunpack.c.l.b16 %v5900
    %v6063 = vunpack.c.l.b16 %v5914
    %v6064 = vunpack.c.l.b16 %v5928
    %v6065 = vunpack.c.l.b16 %v5942
    %v6066 = vunpack.c.l.b16 %v5956
    %v6067 = vunpack.c.l.b16 %v5970
    %v6068 = vunpack.c.l.b16 %v5984
    %v6069 = vunpack.c.l.b16 %v5998
    %v6070 = vunpack.c.l.b16 %v6012
    %v6071 = vunpack.c.l.b16 %v6026
    %v6072 = vunpack.c.l.b16 %v6040
    %v6073 = vpack.c.b16 %v6058, %v6057
    %v6074 = vpack.c.b16 %v6060, %v6059
    %v6075 = vpack.c.b16 %v6062, %v6061
    %v6076 = vpack.c.b16 %v6064, %v6063
    %v6077 = vpack.c.b16 %v6066, %v6065
    %v6078 = vpack.c.b16 %v6068, %v6067
    %v6079 = vpack.c.b16 %v6070, %v6069
    %v6080 = vpack.c.b16 %v6072, %v6071
    %v6105 = vunpack.c.l.b16 %v6041
    %v6106 = vunpack.c.l.b16 %v6042
    %v6107 = vunpack.c.l.b16 %v6043
    %v6108 = vunpack.c.l.b16 %v6044
    %v6109 = vunpack.c.l.b16 %v6045
    %v6110 = vunpack.c.l.b16 %v6046
    %v6111 = vunpack.c.l.b16 %v6047
    %v6112 = vunpack.c.l.b16 %v6048
    %v6113 = vunpack.c.l.b16 %v6049
    %v6114 = vunpack.c.l.b16 %v6050
    %v6115 = vunpack.c.l.b16 %v6051
    %v6116 = vunpack.c.l.b16 %v6052
    %v6117 = vunpack.c.l.b16 %v6053
    %v6118 = vunpack.c.l.b16 %v6054
    %v6119 = vunpack.c.l.b16 %v6055
    %v6120 = vunpack.c.l.b16 %v6056
    %v6121 = vpack.c.b16 %v6106, %v6105
    %v6122 = vpack.c.b16 %v6108, %v6107
    %v6123 = vpack.c.b16 %v6110, %v6109
    %v6124 = vpack.c.b16 %v6112, %v6111
    %v6125 = vpack.c.b16 %v6114, %v6113
    %v6126 = vpack.c.b16 %v6116, %v6115
    %v6127 = vpack.c.b16 %v6118, %v6117
    %v6128 = vpack.c.b16 %v6120, %v6119
    %6137 = vmatpush.bf16.msra.mxu0 %v6128
    %6138 = vmatpush.bf16.msra.mxu0 %v6127
    %6139 = vmatpush.bf16.msra.mxu0 %v6126
    %6140 = vmatpush.bf16.msra.mxu0 %v6125
    %6141 = vmatpush.bf16.msra.mxu0 %v6124
    %6142 = vmatpush.bf16.msra.mxu0 %v6123
    %6143 = vmatpush.bf16.msra.mxu0 %v6122
    %6144 = vmatpush.bf16.msra.mxu0 %v6121
    %6145 = vmatmul.bf16.gmra.mxu0 %v6073
    %v6146 = vpop.f32.mrf.mxu0
    %v6147 = vadd.f32 0.0, %v6146
    %v6148 = vpop.f32.mrf.mxu0
    %v6149 = vadd.f32 0.0, %v6148
    %6150 = vmatmul.bf16.gmra.mxu0 %v6074
    %v6151 = vpop.f32.mrf.mxu0
    %v6152 = vadd.f32 0.0, %v6151
    %v6153 = vpop.f32.mrf.mxu0
    %v6154 = vadd.f32 0.0, %v6153
    %6155 = vmatmul.bf16.gmra.mxu0 %v6075
    %v6156 = vpop.f32.mrf.mxu0
    %v6157 = vadd.f32 0.0, %v6156
    %v6158 = vpop.f32.mrf.mxu0
    %v6159 = vadd.f32 0.0, %v6158
    %6160 = vmatmul.bf16.gmra.mxu0 %v6076
    %v6161 = vpop.f32.mrf.mxu0
    %v6162 = vadd.f32 0.0, %v6161
    %v6163 = vpop.f32.mrf.mxu0
    %v6164 = vadd.f32 0.0, %v6163
    %6165 = vmatmul.bf16.gmra.mxu0 %v6077
    %v6166 = vpop.f32.mrf.mxu0
    %v6167 = vadd.f32 0.0, %v6166
    %v6168 = vpop.f32.mrf.mxu0
    %v6169 = vadd.f32 0.0, %v6168
    %6170 = vmatmul.bf16.gmra.mxu0 %v6078
    %v6171 = vpop.f32.mrf.mxu0
    %v6172 = vadd.f32 0.0, %v6171
    %v6173 = vpop.f32.mrf.mxu0
    %v6174 = vadd.f32 0.0, %v6173
    %6175 = vmatmul.bf16.gmra.mxu0 %v6079
    %v6176 = vpop.f32.mrf.mxu0
    %v6177 = vadd.f32 0.0, %v6176
    %v6178 = vpop.f32.mrf.mxu0
    %v6179 = vadd.f32 0.0, %v6178
    %6180 = vmatmul.bf16.gmra.mxu0 %v6080
    %v6181 = vpop.f32.mrf.mxu0
    %v6182 = vadd.f32 0.0, %v6181
    %v6183 = vpop.f32.mrf.mxu0
    %v6184 = vadd.f32 0.0, %v6183
    %6185 = vdwg.mxu0
    %v6186 = vadd.f32 %v5769, %v6147
    %v6187 = vadd.f32 %v5770, %v6149
    %v6188 = vadd.f32 %v5771, %v6152
    %v6189 = vadd.f32 %v5772, %v6154
    %v6190 = vadd.f32 %v5773, %v6157
    %v6191 = vadd.f32 %v5774, %v6159
    %v6192 = vadd.f32 %v5775, %v6162
    %v6193 = vadd.f32 %v5776, %v6164
    %v6194 = vadd.f32 %v5777, %v6167
    %v6195 = vadd.f32 %v5778, %v6169
    %v6196 = vadd.f32 %v5779, %v6172
    %v6197 = vadd.f32 %v5780, %v6174
    %v6198 = vadd.f32 %v5781, %v6177
    %v6199 = vadd.f32 %v5782, %v6179
    %v6200 = vadd.f32 %v5783, %v6182
    %v6201 = vadd.f32 %v5784, %v6184
    %v6202 = vld [vmem:[%s5591] sm:$0xe]
    %v6203 = vld [vmem:[%s5591 + $0x8] sm:$0xe]
    %v6204 = vld [vmem:[%s5591 + $0x10] sm:$0xe]
    %v6205 = vld [vmem:[%s5591 + $0x18] sm:$0xe]
    %v6206 = vld [vmem:[%s5591 + $0x20] sm:$0xe]
    %v6207 = vld [vmem:[%s5591 + $0x28] sm:$0xe]
    %v6208 = vld [vmem:[%s5591 + $0x30] sm:$0xe]
    %v6209 = vld [vmem:[%s5591 + $0x38] sm:$0xe]
    %v6210 = vld [vmem:[%s5591 + $0x50] sm:$0xe]
    %v6211 = vld [vmem:[%s5591 + $0x58] sm:$0xe]
    %v6212 = vld [vmem:[%s5591 + $0x60] sm:$0xe]
    %v6213 = vld [vmem:[%s5591 + $0x68] sm:$0xe]
    %v6214 = vld [vmem:[%s5591 + $0x70] sm:$0xe]
    %v6215 = vld [vmem:[%s5591 + $0x78] sm:$0xe]
    %v6216 = vld [vmem:[%s5591 + $0x80] sm:$0xe]
    %v6217 = vld [vmem:[%s5591 + $0x88] sm:$0xe]
    %v6250 = vrot.slane %v6202, 5
    %v6251 = vrot.slane %v6250, 4
    %v6252 = vrot.slane %v5786, 5
    %v6253 = vsel %vm1425, %v6251, %v6252
    %v6254 = vrot.slane %v6203, 5
    %v6255 = vrot.slane %v6254, 4
    %v6256 = vrot.slane %v5788, 5
    %v6257 = vsel %vm1425, %v6255, %v6256
    %v6258 = vrot.slane %v6204, 5
    %v6259 = vrot.slane %v6258, 4
    %v6260 = vrot.slane %v5790, 5
    %v6261 = vsel %vm1425, %v6259, %v6260
    %v6262 = vrot.slane %v6205, 5
    %v6263 = vrot.slane %v6262, 4
    %v6264 = vrot.slane %v5792, 5
    %v6265 = vsel %vm1425, %v6263, %v6264
    %v6266 = vrot.slane %v6206, 5
    %v6267 = vrot.slane %v6266, 4
    %v6268 = vrot.slane %v5794, 5
    %v6269 = vsel %vm1425, %v6267, %v6268
    %v6270 = vrot.slane %v6207, 5
    %v6271 = vrot.slane %v6270, 4
    %v6272 = vrot.slane %v5796, 5
    %v6273 = vsel %vm1425, %v6271, %v6272
    %v6274 = vrot.slane %v6208, 5
    %v6275 = vrot.slane %v6274, 4
    %v6276 = vrot.slane %v5798, 5
    %v6277 = vsel %vm1425, %v6275, %v6276
    %v6278 = vrot.slane %v6209, 5
    %v6279 = vrot.slane %v6278, 4
    %v6280 = vrot.slane %v5800, 5
    %v6281 = vsel %vm1425, %v6279, %v6280
    %v6282 = vrot.slane %v6210, 5
    %v6283 = vrot.slane %v6282, 4
    %v6284 = vrot.slane %v5802, 5
    %v6285 = vsel %vm1425, %v6283, %v6284
    %v6286 = vrot.slane %v6211, 5
    %v6287 = vrot.slane %v6286, 4
    %v6288 = vrot.slane %v5804, 5
    %v6289 = vsel %vm1425, %v6287, %v6288
    %v6290 = vrot.slane %v6212, 5
    %v6291 = vrot.slane %v6290, 4
    %v6292 = vrot.slane %v5806, 5
    %v6293 = vsel %vm1425, %v6291, %v6292
    %v6294 = vrot.slane %v6213, 5
    %v6295 = vrot.slane %v6294, 4
    %v6296 = vrot.slane %v5808, 5
    %v6297 = vsel %vm1425, %v6295, %v6296
    %v6298 = vrot.slane %v6214, 5
    %v6299 = vrot.slane %v6298, 4
    %v6300 = vrot.slane %v5810, 5
    %v6301 = vsel %vm1425, %v6299, %v6300
    %v6302 = vrot.slane %v6215, 5
    %v6303 = vrot.slane %v6302, 4
    %v6304 = vrot.slane %v5812, 5
    %v6305 = vsel %vm1425, %v6303, %v6304
    %v6306 = vrot.slane %v6216, 5
    %v6307 = vrot.slane %v6306, 4
    %v6308 = vrot.slane %v5814, 5
    %v6309 = vsel %vm1425, %v6307, %v6308
    %v6310 = vrot.slane %v6217, 5
    %v6311 = vrot.slane %v6310, 4
    %v6312 = vrot.slane %v5816, 5
    %v6313 = vsel %vm1425, %v6311, %v6312
    %v6314 = vld [vmem:[#allocation9 + $0x200] sm:$0xf]
    %v6315 = vld [vmem:[#allocation9 + $0x204] sm:$0xf]
    %v6316 = vld [vmem:[#allocation9 + $0x208] sm:$0xf]
    %v6317 = vld [vmem:[#allocation9 + $0x20c] sm:$0xf]
    %v6318 = vld [vmem:[#allocation9 + $0x210] sm:$0xf]
    %v6319 = vld [vmem:[#allocation9 + $0x214] sm:$0xf]
    %v6320 = vld [vmem:[#allocation9 + $0x218] sm:$0xf]
    %v6321 = vld [vmem:[#allocation9 + $0x21c] sm:$0xf]
    %v6322 = vld [vmem:[#allocation9 + $0x220] sm:$0xf]
    %v6323 = vld [vmem:[#allocation9 + $0x224] sm:$0xf]
    %v6324 = vld [vmem:[#allocation9 + $0x228] sm:$0xf]
    %v6325 = vld [vmem:[#allocation9 + $0x22c] sm:$0xf]
    %v6326 = vld [vmem:[#allocation9 + $0x230] sm:$0xf]
    %v6327 = vld [vmem:[#allocation9 + $0x234] sm:$0xf]
    %v6328 = vld [vmem:[#allocation9 + $0x238] sm:$0xf]
    %v6329 = vld [vmem:[#allocation9 + $0x23c] sm:$0xf]
    %v6330 = vunpack.c.l.b16 %v6253
    %v6331 = vunpack.c.l.b16 %v6257
    %v6332 = vunpack.c.l.b16 %v6261
    %v6333 = vunpack.c.l.b16 %v6265
    %v6334 = vunpack.c.l.b16 %v6269
    %v6335 = vunpack.c.l.b16 %v6273
    %v6336 = vunpack.c.l.b16 %v6277
    %v6337 = vunpack.c.l.b16 %v6281
    %v6338 = vunpack.c.l.b16 %v6285
    %v6339 = vunpack.c.l.b16 %v6289
    %v6340 = vunpack.c.l.b16 %v6293
    %v6341 = vunpack.c.l.b16 %v6297
    %v6342 = vunpack.c.l.b16 %v6301
    %v6343 = vunpack.c.l.b16 %v6305
    %v6344 = vunpack.c.l.b16 %v6309
    %v6345 = vunpack.c.l.b16 %v6313
    %v6346 = vpack.c.b16 %v6331, %v6330
    %v6347 = vpack.c.b16 %v6333, %v6332
    %v6348 = vpack.c.b16 %v6335, %v6334
    %v6349 = vpack.c.b16 %v6337, %v6336
    %v6350 = vpack.c.b16 %v6339, %v6338
    %v6351 = vpack.c.b16 %v6341, %v6340
    %v6352 = vpack.c.b16 %v6343, %v6342
    %v6353 = vpack.c.b16 %v6345, %v6344
    %v6378 = vunpack.c.l.b16 %v6314
    %v6379 = vunpack.c.l.b16 %v6315
    %v6380 = vunpack.c.l.b16 %v6316
    %v6381 = vunpack.c.l.b16 %v6317
    %v6382 = vunpack.c.l.b16 %v6318
    %v6383 = vunpack.c.l.b16 %v6319
    %v6384 = vunpack.c.l.b16 %v6320
    %v6385 = vunpack.c.l.b16 %v6321
    %v6386 = vunpack.c.l.b16 %v6322
    %v6387 = vunpack.c.l.b16 %v6323
    %v6388 = vunpack.c.l.b16 %v6324
    %v6389 = vunpack.c.l.b16 %v6325
    %v6390 = vunpack.c.l.b16 %v6326
    %v6391 = vunpack.c.l.b16 %v6327
    %v6392 = vunpack.c.l.b16 %v6328
    %v6393 = vunpack.c.l.b16 %v6329
    %v6394 = vpack.c.b16 %v6379, %v6378
    %v6395 = vpack.c.b16 %v6381, %v6380
    %v6396 = vpack.c.b16 %v6383, %v6382
    %v6397 = vpack.c.b16 %v6385, %v6384
    %v6398 = vpack.c.b16 %v6387, %v6386
    %v6399 = vpack.c.b16 %v6389, %v6388
    %v6400 = vpack.c.b16 %v6391, %v6390
    %v6401 = vpack.c.b16 %v6393, %v6392
    %6410 = vmatpush.bf16.msra.mxu0 %v6401
    %6411 = vmatpush.bf16.msra.mxu0 %v6400
    %6412 = vmatpush.bf16.msra.mxu0 %v6399
    %6413 = vmatpush.bf16.msra.mxu0 %v6398
    %6414 = vmatpush.bf16.msra.mxu0 %v6397
    %6415 = vmatpush.bf16.msra.mxu0 %v6396
    %6416 = vmatpush.bf16.msra.mxu0 %v6395
    %6417 = vmatpush.bf16.msra.mxu0 %v6394
    %6418 = vmatmul.bf16.gmra.mxu0 %v6346
    %v6419 = vpop.f32.mrf.mxu0
    %v6420 = vadd.f32 0.0, %v6419
    %v6421 = vpop.f32.mrf.mxu0
    %v6422 = vadd.f32 0.0, %v6421
    %6423 = vmatmul.bf16.gmra.mxu0 %v6347
    %v6424 = vpop.f32.mrf.mxu0
    %v6425 = vadd.f32 0.0, %v6424
    %v6426 = vpop.f32.mrf.mxu0
    %v6427 = vadd.f32 0.0, %v6426
    %6428 = vmatmul.bf16.gmra.mxu0 %v6348
    %v6429 = vpop.f32.mrf.mxu0
    %v6430 = vadd.f32 0.0, %v6429
    %v6431 = vpop.f32.mrf.mxu0
    %v6432 = vadd.f32 0.0, %v6431
    %6433 = vmatmul.bf16.gmra.mxu0 %v6349
    %v6434 = vpop.f32.mrf.mxu0
    %v6435 = vadd.f32 0.0, %v6434
    %v6436 = vpop.f32.mrf.mxu0
    %v6437 = vadd.f32 0.0, %v6436
    %6438 = vmatmul.bf16.gmra.mxu0 %v6350
    %v6439 = vpop.f32.mrf.mxu0
    %v6440 = vadd.f32 0.0, %v6439
    %v6441 = vpop.f32.mrf.mxu0
    %v6442 = vadd.f32 0.0, %v6441
    %6443 = vmatmul.bf16.gmra.mxu0 %v6351
    %v6444 = vpop.f32.mrf.mxu0
    %v6445 = vadd.f32 0.0, %v6444
    %v6446 = vpop.f32.mrf.mxu0
    %v6447 = vadd.f32 0.0, %v6446
    %6448 = vmatmul.bf16.gmra.mxu0 %v6352
    %v6449 = vpop.f32.mrf.mxu0
    %v6450 = vadd.f32 0.0, %v6449
    %v6451 = vpop.f32.mrf.mxu0
    %v6452 = vadd.f32 0.0, %v6451
    %6453 = vmatmul.bf16.gmra.mxu0 %v6353
    %v6454 = vpop.f32.mrf.mxu0
    %v6455 = vadd.f32 0.0, %v6454
    %v6456 = vpop.f32.mrf.mxu0
    %v6457 = vadd.f32 0.0, %v6456
    %6458 = vdwg.mxu0
    %v6459 = vadd.f32 %v6186, %v6420
    %v6460 = vadd.f32 %v6187, %v6422
    %v6461 = vadd.f32 %v6188, %v6425
    %v6462 = vadd.f32 %v6189, %v6427
    %v6463 = vadd.f32 %v6190, %v6430
    %v6464 = vadd.f32 %v6191, %v6432
    %v6465 = vadd.f32 %v6192, %v6435
    %v6466 = vadd.f32 %v6193, %v6437
    %v6467 = vadd.f32 %v6194, %v6440
    %v6468 = vadd.f32 %v6195, %v6442
    %v6469 = vadd.f32 %v6196, %v6445
    %v6470 = vadd.f32 %v6197, %v6447
    %v6471 = vadd.f32 %v6198, %v6450
    %v6472 = vadd.f32 %v6199, %v6452
    %v6473 = vadd.f32 %v6200, %v6455
    %v6474 = vadd.f32 %v6201, %v6457
    %v6475 = vadd.f32 %v6459, %v6460
    %v6476 = vadd.f32 %v6475, %v6461
    %v6477 = vadd.f32 %v6476, %v6462
    %v6478 = vadd.f32 %v6477, %v6463
    %v6479 = vadd.f32 %v6478, %v6464
    %v6480 = vadd.f32 %v6479, %v6465
    %v6481 = vadd.f32 %v6480, %v6466
    %v6482 = vadd.f32 %v6481, %v6467
    %v6483 = vadd.f32 %v6482, %v6468
    %v6484 = vadd.f32 %v6483, %v6469
    %v6485 = vadd.f32 %v6484, %v6470
    %v6486 = vadd.f32 %v6485, %v6471
    %v6487 = vadd.f32 %v6486, %v6472
    %v6488 = vadd.f32 %v6487, %v6473
    %v6489 = vadd.f32 %v6488, %v6474
    %v6490 = vrot.slane %v6489, 4
    %v6491 = vadd.f32 %v6489, %v6490
    %v6492 = vrot.slane %v6491, 2
    %v6493 = vadd.f32 %v6491, %v6492
    %v6494 = vrot.slane %v6493, 1
    %v6495 = vadd.f32 %v6493, %v6494
    %v6496 = vmul.f32 %v6495, 0.0078125
    %v6497 = vsub.f32 %v6459, %v6496
    %v6498 = vsub.f32 %v6460, %v6496
    %v6499 = vsub.f32 %v6461, %v6496
    %v6500 = vsub.f32 %v6462, %v6496
    %v6501 = vsub.f32 %v6463, %v6496
    %v6502 = vsub.f32 %v6464, %v6496
    %v6503 = vsub.f32 %v6465, %v6496
    %v6504 = vsub.f32 %v6466, %v6496
    %v6505 = vsub.f32 %v6467, %v6496
    %v6506 = vsub.f32 %v6468, %v6496
    %v6507 = vsub.f32 %v6469, %v6496
    %v6508 = vsub.f32 %v6470, %v6496
    %v6509 = vsub.f32 %v6471, %v6496
    %v6510 = vsub.f32 %v6472, %v6496
    %v6511 = vsub.f32 %v6473, %v6496
    %v6512 = vsub.f32 %v6474, %v6496
    %v6513 = vmul.f32 %v6497, %v6497
    %v6514 = vmul.f32 %v6498, %v6498
    %v6515 = vmul.f32 %v6499, %v6499
    %v6516 = vmul.f32 %v6500, %v6500
    %v6517 = vmul.f32 %v6501, %v6501
    %v6518 = vmul.f32 %v6502, %v6502
    %v6519 = vmul.f32 %v6503, %v6503
    %v6520 = vmul.f32 %v6504, %v6504
    %v6521 = vmul.f32 %v6505, %v6505
    %v6522 = vmul.f32 %v6506, %v6506
    %v6523 = vmul.f32 %v6507, %v6507
    %v6524 = vmul.f32 %v6508, %v6508
    %v6525 = vmul.f32 %v6509, %v6509
    %v6526 = vmul.f32 %v6510, %v6510
    %v6527 = vmul.f32 %v6511, %v6511
    %v6528 = vmul.f32 %v6512, %v6512
    %v6529 = vadd.f32 %v6513, %v6514
    %v6530 = vadd.f32 %v6529, %v6515
    %v6531 = vadd.f32 %v6530, %v6516
    %v6532 = vadd.f32 %v6531, %v6517
    %v6533 = vadd.f32 %v6532, %v6518
    %v6534 = vadd.f32 %v6533, %v6519
    %v6535 = vadd.f32 %v6534, %v6520
    %v6536 = vadd.f32 %v6535, %v6521
    %v6537 = vadd.f32 %v6536, %v6522
    %v6538 = vadd.f32 %v6537, %v6523
    %v6539 = vadd.f32 %v6538, %v6524
    %v6540 = vadd.f32 %v6539, %v6525
    %v6541 = vadd.f32 %v6540, %v6526
    %v6542 = vadd.f32 %v6541, %v6527
    %v6543 = vadd.f32 %v6542, %v6528
    %v6544 = vrot.slane %v6543, 4
    %v6545 = vadd.f32 %v6543, %v6544
    %v6546 = vrot.slane %v6545, 2
    %v6547 = vadd.f32 %v6545, %v6546
    %v6548 = vrot.slane %v6547, 1
    %v6549 = vadd.f32 %v6547, %v6548
    %v6550 = vmul.f32 %v6549, 0.0078125
    %v6551 = vadd.f32 %v6550, 1e-05
    %v6552 = vrsqrt.pop %v6551
    %v6553 = vmul.f32 %v6552, %v6551
    %v6554 = vmul.f32 %v6553, %v6552
    %v6555 = vmul.f32 0.5, %v6554
    %v6556 = vsub.f32 1.5, %v6555
    %v6557 = vmul.f32 %v6552, %v6556
    %vm6558 = vweird.f32 %v6551
    %vm6559 = vweird.f32 %v6552
    %vm6560 = vmor %vm6558, %vm6559
    %v6561 = vsel %vm6560, %v6552, %v6557
    %v6562 = vld [vmem:[%s5] sm:$0x1]
    %v6563 = vmul.f32 %v6561, %v6562
    %v6564 = vperm.slane %v6563, 0
    %v6565 = vmul.f32 %v6497, %v6564
    %v6566 = vmul.f32 %v6498, %v6564
    %v6567 = vmul.f32 %v6499, %v6564
    %v6568 = vmul.f32 %v6500, %v6564
    %v6569 = vmul.f32 %v6501, %v6564
    %v6570 = vmul.f32 %v6502, %v6564
    %v6571 = vmul.f32 %v6503, %v6564
    %v6572 = vmul.f32 %v6504, %v6564
    %v6573 = vmul.f32 %v6505, %v6564
    %v6574 = vmul.f32 %v6506, %v6564
    %v6575 = vmul.f32 %v6507, %v6564
    %v6576 = vmul.f32 %v6508, %v6564
    %v6577 = vmul.f32 %v6509, %v6564
    %v6578 = vmul.f32 %v6510, %v6564
    %v6579 = vmul.f32 %v6511, %v6564
    %v6580 = vmul.f32 %v6512, %v6564
    %v6581 = vld [vmem:[%s6] sm:$0x1]
    %v6583 = vperm.slane %v6581, 0
    %v6585 = vadd.f32 %v6565, %v6583
    %v6586 = vadd.f32 %v6566, %v6583
    %v6587 = vadd.f32 %v6567, %v6583
    %v6588 = vadd.f32 %v6568, %v6583
    %v6589 = vadd.f32 %v6569, %v6583
    %v6590 = vadd.f32 %v6570, %v6583
    %v6591 = vadd.f32 %v6571, %v6583
    %v6592 = vadd.f32 %v6572, %v6583
    %v6593 = vadd.f32 %v6573, %v6583
    %v6594 = vadd.f32 %v6574, %v6583
    %v6595 = vadd.f32 %v6575, %v6583
    %v6596 = vadd.f32 %v6576, %v6583
    %v6597 = vadd.f32 %v6577, %v6583
    %v6598 = vadd.f32 %v6578, %v6583
    %v6599 = vadd.f32 %v6579, %v6583
    %v6600 = vadd.f32 %v6580, %v6583
    %v6601 = vmax.f32 %v6585, 0.0
    %v6602 = vmax.f32 %v6586, 0.0
    %v6603 = vmax.f32 %v6587, 0.0
    %v6604 = vmax.f32 %v6588, 0.0
    %v6605 = vmax.f32 %v6589, 0.0
    %v6606 = vmax.f32 %v6590, 0.0
    %v6607 = vmax.f32 %v6591, 0.0
    %v6608 = vmax.f32 %v6592, 0.0
    %v6609 = vmax.f32 %v6593, 0.0
    %v6610 = vmax.f32 %v6594, 0.0
    %v6611 = vmax.f32 %v6595, 0.0
    %v6612 = vmax.f32 %v6596, 0.0
    %v6613 = vmax.f32 %v6597, 0.0
    %v6614 = vmax.f32 %v6598, 0.0
    %v6615 = vmax.f32 %v6599, 0.0
    %v6616 = vmax.f32 %v6600, 0.0
    %6617 = vst [vmem:[#allocation10] sm:$0xff] %v6601
    %6618 = vst [vmem:[#allocation10 + $0x8] sm:$0xff] %v6602
    %6619 = vst [vmem:[#allocation10 + $0x10] sm:$0xff] %v6603
    %6620 = vst [vmem:[#allocation10 + $0x18] sm:$0xff] %v6604
    %6621 = vst [vmem:[#allocation10 + $0x20] sm:$0xff] %v6605
    %6622 = vst [vmem:[#allocation10 + $0x28] sm:$0xff] %v6606
    %6623 = vst [vmem:[#allocation10 + $0x30] sm:$0xff] %v6607
    %6624 = vst [vmem:[#allocation10 + $0x38] sm:$0xff] %v6608
    %6625 = vst [vmem:[#allocation10 + $0x40] sm:$0xff] %v6609
    %6626 = vst [vmem:[#allocation10 + $0x48] sm:$0xff] %v6610
    %6627 = vst [vmem:[#allocation10 + $0x50] sm:$0xff] %v6611
    %6628 = vst [vmem:[#allocation10 + $0x58] sm:$0xff] %v6612
    %6629 = vst [vmem:[#allocation10 + $0x60] sm:$0xff] %v6613
    %6630 = vst [vmem:[#allocation10 + $0x68] sm:$0xff] %v6614
    %6631 = vst [vmem:[#allocation10 + $0x70] sm:$0xff] %v6615
    %6632 = vst [vmem:[#allocation10 + $0x78] sm:$0xff] %v6616
    // Predicated region
    $region42: #{tpu_custom_call.1} parent=1 // pred_check
      _
    $region43: #{tpu_custom_call.1} parent=1 // pred_check_branch
      %6634 = sbr.rel (0) target = $region45
    $region44: #{tpu_custom_call.1} parent=1 // pred_region
      %6636 = vsyncadd [#allocation6], 0
      %s6637 = sshll.u32 [#allocation10], 4
      %s6638 = int_to_ptr.vmem [resolvable:$true] %s6637
      %s6639 = sshll.u32 %s7, 4
      %s6640 = int_to_ptr.hbm [resolvable:$true] %s6639
      %6645 = dma.vmem_to_hbm [thread:$0]  %s6638, 2048, %s6640, [#allocation6], 128, 128, 8
    $region45: #{tpu_custom_call.1} parent=1 // pred_fallthru
      _
    // Predicated region
    $region46: #{tpu_custom_call.1} parent=1 // pred_check
      _
    $region47: #{tpu_custom_call.1} parent=1 // pred_check_branch
      %6647 = sbr.rel (0) target = $region49
    $region48: #{tpu_custom_call.1} parent=1 // pred_region
      %6649 = dma.done [#allocation6], 2048
    $region49: #{tpu_custom_call.1} parent=1 // pred_fallthru
      _
    %6650 = vsyncpa [#allocation5], 1
    %6651 = vsyncpa [#allocation8], 1
    %6652 = vsyncpa [#allocation6], 1

</llo_original>
